<compile_context>
chip_gen: v7x
topology: tpu7x:2x2x1
jax: 0.10.0
libtpu: 0.0.40
codegen_flags: <defaults>
</compile_context>

<pallas_src>
import jax
import jax.numpy as jnp
from jax.experimental import pallas as pl
from jax.experimental.pallas import tpu as pltpu


def _view_max_kernel(x_ref, w_ref, b_ref, aux_ref, pooled_ref, acc_ref):
    """One (batch-tile, spatial-tile) grid step.

    x_ref:      (TB, R, NKT, 128)  NKT 128-lane spatial groups for TB batch
                                   elements, all R = V*C rows, native dtype
    w_ref:      (C, F)             backbone linear weight, pre-scaled by 1/S
    b_ref:      (1, F)             backbone linear bias (f32)
    aux_ref:    (TB, V, F)         per-view features              (output)
    pooled_ref: (TB, F)            max over views                 (output)
    acc_ref:    (TB, R, 1, 128)    lane-shaped f32 partial-sum accumulator
    """
    s = pl.program_id(1)

    @pl.when(s == 0)
    def _init():
        acc_ref[...] = jnp.zeros_like(acc_ref)

    # Hot loop: fold this tile's NKT sublane groups into the lane-shaped
    # accumulator.  This is (mostly) plain VPU vreg adds; the expensive
    # cross-lane (XLU) reduce is deferred to the finalize step.  Input stays
    # in its native dtype; accumulation is f32.
    acc_ref[...] += jnp.sum(x_ref[...].astype(jnp.float32), axis=2,
                            keepdims=True)

    @pl.when(s == pl.num_programs(1) - 1)
    def _finalize():
        tb, n_views, n_feat = aux_ref.shape
        n_chan = w_ref.shape[0]
        # Single cross-lane reduce per batch tile: (TB, R, 1, 128) -> (TB, R).
        feats = jnp.sum(acc_ref[...], axis=-1)[:, :, 0]
        bias = b_ref[...]                                  # (1, F)
        per_view = []
        pooled = None
        # Tiny C-channel contraction: unrolled VPU FMAs.  An MXU matmul with
        # rows < 8 and K = C would waste a full systolic tile for ~zero FLOPs.
        for v in range(n_views):
            proj = jnp.zeros((tb, n_feat), jnp.float32) + bias
            for c in range(n_chan):
                i0 = v * n_chan + c
                proj = proj + feats[:, i0:i0 + 1] * w_ref[c:c + 1, :]
            per_view.append(proj[:, None, :])
            pooled = proj if pooled is None else jnp.maximum(pooled, proj)
        # Assemble the whole aux block and store it once (no V separate
        # narrow masked sub-stores).
        aux_ref[...] = jnp.concatenate(per_view, axis=1).astype(aux_ref.dtype)
        pooled_ref[...] = pooled.astype(pooled_ref.dtype)


def _device_budgets():
    """Per-generation (input-stream budget, vmem_limit_bytes, multi_core)."""
    cap = None
    cores = 1
    try:
        info = pltpu.get_tpu_info()
        cap = getattr(info, "vmem_capacity_bytes", None)
        for name in ("num_cores", "core_count", "num_tensorcores",
                     "tensorcore_count"):
            val = getattr(info, name, None)
            if isinstance(val, int) and val > 1:
                cores = val
                break
    except Exception:
        pass
    if cap is not None and cap >= (100 << 20):
        # v5e / v6e: 128 MiB physical VMEM, single TensorCore -> big tiles,
        # no ">=2 batch steps" clamp.
        return 64 << 20, 96 << 20, False
    # v7x (64 MiB VMEM per TC) or unknown chip: stay conservative and keep
    # enough batch grid steps to feed 2 TensorCores when present.
    return 32 << 20, 40 << 20, cores >= 2


def _auto_spatial_tile(rows, nk_raw, itemsize, in_budget_bytes):
    """Pick NKT (128-lane groups per spatial step).

    Returns (nkt, nk_total) with nk_total a multiple of nkt, nkt a multiple of
    8 (or the full extent), the double-buffered input tile within budget, and
    padding (nk_total - nk_raw) minimized over tiles within 2x of the max.
    """
    per_nk = rows * 128 * itemsize           # bytes per lane-group per batch
    tile_budget = max(in_budget_bytes // 2, per_nk)
    if per_nk * nk_raw <= tile_budget:
        return nk_raw, nk_raw                # whole extent in one step
    nk_max = max(8, (tile_budget // per_nk) // 8 * 8)
    nk_min = max(8, nk_max // 2)
    best_nkt = nk_max
    best_total = pl.cdiv(nk_raw, nk_max) * nk_max
    nkt = nk_max
    while nkt >= nk_min and best_total != nk_raw:
        total = pl.cdiv(nk_raw, nkt) * nkt
        if total < best_total:
            best_nkt, best_total = nkt, total
        nkt -= 8
    return best_nkt, best_total


def _auto_batch_tile(B, rows, nkt, itemsize, in_budget_bytes, multi_core):
    per_batch = rows * nkt * 128 * itemsize
    tile_budget = max(in_budget_bytes // 2, per_batch)
    max_tb = max(1, tile_budget // per_batch)
    if multi_core and B >= 2:
        # Keep >=2 batch grid steps so both v7x TensorCores get work.
        max_tb = min(max_tb, B // 2)
    max_tb = min(max_tb, B)
    for cand in range(int(max_tb), 0, -1):
        if B % cand == 0:
            return cand
    return 1


def view_max_aggregate(mvimages, w, b, *, batch_tile=None, spatial_tile=None):
    """mvimages: (B, V, C, D, H, W); w: (C, F); b: (F,).

    Synthetic backbone = global average pool over (D, H, W) + linear(C -> F),
    identity lifting_net, then max over views.  Returns (pooled.squeeze(), aux).
    """
    B, V, C, D, H, W = mvimages.shape
    F = w.shape[1]
    S = D * H * W
    rows = V * C

    # Fold 1/S of the global average pool into the weight -> kernel only sums.
    w_scaled = w.astype(jnp.float32) / jnp.float32(S)
    b2 = b.reshape(1, F).astype(jnp.float32)

    # Stream the video in its native dtype (no wrapper upcast).
    x = mvimages.reshape(B, rows, S)
    itemsize = x.dtype.itemsize

    in_budget, vmem_limit, multi_core = _device_budgets()

    nk_raw = pl.cdiv(S, 128)
    if spatial_tile is not None:
        assert spatial_tile % 128 == 0, spatial_tile
        nkt = spatial_tile // 128
        nk_total = pl.cdiv(nk_raw, nkt) * nkt
    else:
        nkt, nk_total = _auto_spatial_tile(rows, nk_raw, itemsize, in_budget)
    assert nkt % 8 == 0 or nkt == nk_total, (nkt, nk_total)

    s_pad = nk_total * 128
    if s_pad != S:
        # Zero padding is harmless: the kernel only sums and the true 1/S is
        # already folded into w_scaled.
        x = jnp.pad(x, ((0, 0), (0, 0), (0, s_pad - S)))
    x = x.reshape(B, rows, nk_total, 128)

    if batch_tile is not None:
        tb = batch_tile
    else:
        tb = _auto_batch_tile(B, rows, nkt, itemsize, in_budget, multi_core)
    assert B % tb == 0, (B, tb)

    grid = (B // tb, nk_total // nkt)

    def _run(batch_sem, spatial_sem):
        return pl.pallas_call(
            _view_max_kernel,
            out_shape=(
                jax.ShapeDtypeStruct((B, V, F), jnp.float32),
                jax.ShapeDtypeStruct((B, F), jnp.float32),
            ),
            grid_spec=pltpu.PrefetchScalarGridSpec(
                num_scalar_prefetch=0,
                grid=grid,
                in_specs=[
                    pl.BlockSpec((tb, rows, nkt, 128), lambda i, s: (i, 0, s, 0)),
                    pl.BlockSpec((C, F), lambda i, s: (0, 0)),
                    pl.BlockSpec((1, F), lambda i, s: (0, 0)),
                ],
                out_specs=[
                    pl.BlockSpec((tb, V, F), lambda i, s: (i, 0, 0)),
                    pl.BlockSpec((tb, F), lambda i, s: (i, 0)),
                ],
                scratch_shapes=[pltpu.VMEM((tb, rows, 1, 128), jnp.float32)],
            ),
            compiler_params=pltpu.CompilerParams(
                dimension_semantics=(batch_sem, spatial_sem),
                vmem_limit_bytes=vmem_limit,
            ),
        )(x, w_scaled, b2)

    if multi_core and grid[0] >= 2 and grid[0] % 2 == 0:
        # v7x: shard the batch axis across the 2 TensorCores for real.
        try:
            aux, pooled = _run(pltpu.CORE_PARALLEL, pltpu.ARBITRARY)
        except Exception:
            # TODO(synk): CORE_PARALLEL not supported on this chip/toolchain;
            # fall back to plain parallel semantics.
            aux, pooled = _run("parallel", "arbitrary")
    else:
        aux, pooled = _run("parallel", "arbitrary")

    # torch's pooled_view.squeeze(): drop any singleton dims.
    return jnp.squeeze(pooled), aux


def _reference(mvimages, w, b):
    B, V, C, D, H, W = mvimages.shape
    feats = jnp.mean(mvimages.astype(jnp.float32).reshape(B, V, C, -1), axis=-1)
    aux = jnp.einsum("bvc,cf->bvf", feats, w.astype(jnp.float32)) + b
    pooled = jnp.max(aux, axis=1)
    return jnp.squeeze(pooled), aux


if __name__ == "__main__":
    key = jax.random.PRNGKey(0)
    k_x, k_w, k_b, k_x2, k_w2, k_b2 = jax.random.split(key, 6)

    # Case 1: S multiple of 128; spatial_tile=1024 forces a 2-step spatial
    # reduction, exercising the init / accumulate / finalize path.
    B, V, C, D, H, W, F = 2, 3, 4, 8, 16, 16, 32          # S = 2048
    mv = jax.random.normal(k_x, (B, V, C, D, H, W), dtype=jnp.float32)
    w = jax.random.normal(k_w, (C, F), dtype=jnp.float32) * 0.1
    b = jax.random.normal(k_b, (F,), dtype=jnp.float32) * 0.1
    pooled, aux = view_max_aggregate(mv, w, b, spatial_tile=1024)
    jax.block_until_ready((pooled, aux))
    ref_pooled, ref_aux = _reference(mv, w, b)
    assert pooled.shape == (B, F), pooled.shape
    assert aux.shape == (B, V, F), aux.shape
    assert jnp.allclose(pooled, ref_pooled, atol=1e-3, rtol=1e-3)
    assert jnp.allclose(aux, ref_aux, atol=1e-3, rtol=1e-3)

    # Case 2: S NOT a multiple of 128 (315) -> exercises the zero-padding path
    # and the fully automatic tiler (no divisibility requirements any more).
    B2, V2, C2, D2, H2, W2, F2 = 2, 2, 3, 5, 7, 9, 16     # S = 315
    mv2 = jax.random.normal(k_x2, (B2, V2, C2, D2, H2, W2), dtype=jnp.float32)
    w2 = jax.random.normal(k_w2, (C2, F2), dtype=jnp.float32) * 0.1
    b2 = jax.random.normal(k_b2, (F2,), dtype=jnp.float32) * 0.1
    pooled2, aux2 = view_max_aggregate(mv2, w2, b2)
    jax.block_until_ready((pooled2, aux2))
    ref_pooled2, ref_aux2 = _reference(mv2, w2, b2)
    assert pooled2.shape == (B2, F2), pooled2.shape
    assert aux2.shape == (B2, V2, F2), aux2.shape
    assert jnp.allclose(pooled2, ref_pooled2, atol=1e-3, rtol=1e-3)
    assert jnp.allclose(aux2, ref_aux2, atol=1e-3, rtol=1e-3)

    print("KERNEL_OK")
</pallas_src>

<mosaic_0001>
module attributes {stable_mosaic.version = 11 : i64} {
  func.func @_view_max_kernel(%arg0: i32, %arg1: i32, %arg2: memref<2x12x8x128xf32, #tpu.memory_space<vmem>>, %arg3: memref<4x32xf32, #tpu.memory_space<vmem>>, %arg4: memref<1x32xf32, #tpu.memory_space<vmem>>, %arg5: memref<2x3x32xf32, #tpu.memory_space<vmem>>, %arg6: memref<2x32xf32, #tpu.memory_space<vmem>>, %arg7: memref<2x12x1x128xf32, #tpu.memory_space<vmem>>) attributes {dimension_semantics = [#tpu.dimension_semantics<parallel>, #tpu.dimension_semantics<arbitrary>], iteration_bounds = array<i64: 1, 2>, scalar_prefetch = 0 : i64, scratch_operands = 1 : i64, tpu.core_type = #tpu.core_type<tc>, window_params = [{transform_indices = @transform_0, window_bounds = array<i64: 2, 12, 8, 128>}, {pipeline_mode = #tpu.pipeline_mode<synchronous>, transform_indices = @transform_1, window_bounds = array<i64: 4, 32>}, {pipeline_mode = #tpu.pipeline_mode<synchronous>, transform_indices = @transform_2, window_bounds = array<i64: 1, 32>}, {transform_indices = @transform_3, window_bounds = array<i64: 2, 3, 32>}, {transform_indices = @transform_4, window_bounds = array<i64: 2, 32>}]} {
    %c0_i32 = arith.constant 0 : i32
    %0 = arith.cmpi eq, %arg1, %c0_i32 : i32
    %1 = arith.extui %0 : i1 to i32
    %c0_i32_0 = arith.constant 0 : i32
    %2 = arith.cmpi ne, %1, %c0_i32_0 : i32
    scf.if %2 {
      %cst_13 = arith.constant 0.000000e+00 : f32
      %12 = vector.broadcast %cst_13 : f32 to vector<2x12x1x128xf32>
      %c0_14 = arith.constant 0 : index
      %c0_15 = arith.constant 0 : index
      %c0_16 = arith.constant 0 : index
      %c0_17 = arith.constant 0 : index
      %13 = vector.load %arg7[%c0_14, %c0_15, %c0_16, %c0_17] : memref<2x12x1x128xf32, #tpu.memory_space<vmem>>, vector<2x12x1x128xf32>
      tpu.vector_store %arg7[%c0_14, %c0_15, %c0_16, %c0_17], %12 {strides = array<i32>} : memref<2x12x1x128xf32, #tpu.memory_space<vmem>>, vector<2x12x1x128xf32>,
    } else {
    }
    %c0 = arith.constant 0 : index
    %c0_1 = arith.constant 0 : index
    %c0_2 = arith.constant 0 : index
    %c0_3 = arith.constant 0 : index
    %3 = vector.load %arg7[%c0, %c0_1, %c0_2, %c0_3] : memref<2x12x1x128xf32, #tpu.memory_space<vmem>>, vector<2x12x1x128xf32>
    %c0_4 = arith.constant 0 : index
    %c0_5 = arith.constant 0 : index
    %c0_6 = arith.constant 0 : index
    %c0_7 = arith.constant 0 : index
    %4 = vector.load %arg2[%c0_4, %c0_5, %c0_6, %c0_7] : memref<2x12x8x128xf32, #tpu.memory_space<vmem>>, vector<2x12x8x128xf32>
    %cst = arith.constant dense<0.000000e+00> : vector<2x12x128xf32>
    %5 = vector.multi_reduction <add>, %4, %cst [2] : vector<2x12x8x128xf32> to vector<2x12x128xf32>
    %6 = vector.shape_cast %5 : vector<2x12x128xf32> to vector<2x12x1x128xf32>
    %7 = arith.addf %3, %6 : vector<2x12x1x128xf32>
    %c0_8 = arith.constant 0 : index
    %c0_9 = arith.constant 0 : index
    %c0_10 = arith.constant 0 : index
    %c0_11 = arith.constant 0 : index
    %8 = vector.load %arg7[%c0_8, %c0_9, %c0_10, %c0_11] : memref<2x12x1x128xf32, #tpu.memory_space<vmem>>, vector<2x12x1x128xf32>
    tpu.vector_store %arg7[%c0_8, %c0_9, %c0_10, %c0_11], %7 {strides = array<i32>} : memref<2x12x1x128xf32, #tpu.memory_space<vmem>>, vector<2x12x1x128xf32>,
    %c1_i32 = arith.constant 1 : i32
    %9 = arith.cmpi eq, %arg1, %c1_i32 : i32
    %10 = arith.extui %9 : i1 to i32
    %c0_i32_12 = arith.constant 0 : i32
    %11 = arith.cmpi ne, %10, %c0_i32_12 : i32
    scf.if %11 {
      %c0_13 = arith.constant 0 : index
      %c0_14 = arith.constant 0 : index
      %c0_15 = arith.constant 0 : index
      %c0_16 = arith.constant 0 : index
      %12 = vector.load %arg7[%c0_13, %c0_14, %c0_15, %c0_16] : memref<2x12x1x128xf32, #tpu.memory_space<vmem>>, vector<2x12x1x128xf32>
      %cst_17 = arith.constant dense<0.000000e+00> : vector<2x12x1xf32>
      %13 = vector.multi_reduction <add>, %12, %cst_17 [3] : vector<2x12x1x128xf32> to vector<2x12x1xf32>
      %14 = vector.shape_cast %13 : vector<2x12x1xf32> to vector<2x12xf32>
      %c0_18 = arith.constant 0 : index
      %c0_19 = arith.constant 0 : index
      %15 = vector.load %arg4[%c0_18, %c0_19] : memref<1x32xf32, #tpu.memory_space<vmem>>, vector<1x32xf32>
      %cst_20 = arith.constant 0.000000e+00 : f32
      %16 = vector.broadcast %cst_20 : f32 to vector<2x32xf32>
      %17 = vector.broadcast %15 : vector<1x32xf32> to vector<2x32xf32>
      %18 = arith.addf %16, %17 : vector<2x32xf32>
      %19 = vector.extract_strided_slice %14 {offsets = [0, 0], sizes = [2, 1], strides = [1, 1]} : vector<2x12xf32> to vector<2x1xf32>
      %c0_21 = arith.constant 0 : index
      %c0_22 = arith.constant 0 : index
      %20 = vector.load %arg3[%c0_21, %c0_22] : memref<4x32xf32, #tpu.memory_space<vmem>>, vector<1x32xf32>
      %21 = vector.broadcast %19 : vector<2x1xf32> to vector<2x32xf32>
      %22 = vector.broadcast %20 : vector<1x32xf32> to vector<2x32xf32>
      %23 = arith.mulf %21, %22 : vector<2x32xf32>
      %24 = arith.addf %18, %23 : vector<2x32xf32>
      %25 = vector.extract_strided_slice %14 {offsets = [0, 1], sizes = [2, 1], strides = [1, 1]} : vector<2x12xf32> to vector<2x1xf32>
      %c1 = arith.constant 1 : index
      %c0_23 = arith.constant 0 : index
      %26 = vector.load %arg3[%c1, %c0_23] : memref<4x32xf32, #tpu.memory_space<vmem>>, vector<1x32xf32>
      %27 = vector.broadcast %25 : vector<2x1xf32> to vector<2x32xf32>
      %28 = vector.broadcast %26 : vector<1x32xf32> to vector<2x32xf32>
      %29 = arith.mulf %27, %28 : vector<2x32xf32>
      %30 = arith.addf %24, %29 : vector<2x32xf32>
      %31 = vector.extract_strided_slice %14 {offsets = [0, 2], sizes = [2, 1], strides = [1, 1]} : vector<2x12xf32> to vector<2x1xf32>
      %c2 = arith.constant 2 : index
      %c0_24 = arith.constant 0 : index
      %32 = vector.load %arg3[%c2, %c0_24] : memref<4x32xf32, #tpu.memory_space<vmem>>, vector<1x32xf32>
      %33 = vector.broadcast %31 : vector<2x1xf32> to vector<2x32xf32>
      %34 = vector.broadcast %32 : vector<1x32xf32> to vector<2x32xf32>
      %35 = arith.mulf %33, %34 : vector<2x32xf32>
      %36 = arith.addf %30, %35 : vector<2x32xf32>
      %37 = vector.extract_strided_slice %14 {offsets = [0, 3], sizes = [2, 1], strides = [1, 1]} : vector<2x12xf32> to vector<2x1xf32>
      %c3 = arith.constant 3 : index
      %c0_25 = arith.constant 0 : index
      %38 = vector.load %arg3[%c3, %c0_25] : memref<4x32xf32, #tpu.memory_space<vmem>>, vector<1x32xf32>
      %39 = vector.broadcast %37 : vector<2x1xf32> to vector<2x32xf32>
      %40 = vector.broadcast %38 : vector<1x32xf32> to vector<2x32xf32>
      %41 = arith.mulf %39, %40 : vector<2x32xf32>
      %42 = arith.addf %36, %41 : vector<2x32xf32>
      %43 = vector.shape_cast %42 : vector<2x32xf32> to vector<2x1x32xf32>
      %cst_26 = arith.constant 0.000000e+00 : f32
      %44 = vector.broadcast %cst_26 : f32 to vector<2x32xf32>
      %45 = vector.broadcast %15 : vector<1x32xf32> to vector<2x32xf32>
      %46 = arith.addf %44, %45 : vector<2x32xf32>
      %47 = vector.extract_strided_slice %14 {offsets = [0, 4], sizes = [2, 1], strides = [1, 1]} : vector<2x12xf32> to vector<2x1xf32>
      %c0_27 = arith.constant 0 : index
      %c0_28 = arith.constant 0 : index
      %48 = vector.load %arg3[%c0_27, %c0_28] : memref<4x32xf32, #tpu.memory_space<vmem>>, vector<1x32xf32>
      %49 = vector.broadcast %47 : vector<2x1xf32> to vector<2x32xf32>
      %50 = vector.broadcast %48 : vector<1x32xf32> to vector<2x32xf32>
      %51 = arith.mulf %49, %50 : vector<2x32xf32>
      %52 = arith.addf %46, %51 : vector<2x32xf32>
      %53 = vector.extract_strided_slice %14 {offsets = [0, 5], sizes = [2, 1], strides = [1, 1]} : vector<2x12xf32> to vector<2x1xf32>
      %c1_29 = arith.constant 1 : index
      %c0_30 = arith.constant 0 : index
      %54 = vector.load %arg3[%c1_29, %c0_30] : memref<4x32xf32, #tpu.memory_space<vmem>>, vector<1x32xf32>
      %55 = vector.broadcast %53 : vector<2x1xf32> to vector<2x32xf32>
      %56 = vector.broadcast %54 : vector<1x32xf32> to vector<2x32xf32>
      %57 = arith.mulf %55, %56 : vector<2x32xf32>
      %58 = arith.addf %52, %57 : vector<2x32xf32>
      %59 = vector.extract_strided_slice %14 {offsets = [0, 6], sizes = [2, 1], strides = [1, 1]} : vector<2x12xf32> to vector<2x1xf32>
      %c2_31 = arith.constant 2 : index
      %c0_32 = arith.constant 0 : index
      %60 = vector.load %arg3[%c2_31, %c0_32] : memref<4x32xf32, #tpu.memory_space<vmem>>, vector<1x32xf32>
      %61 = vector.broadcast %59 : vector<2x1xf32> to vector<2x32xf32>
      %62 = vector.broadcast %60 : vector<1x32xf32> to vector<2x32xf32>
      %63 = arith.mulf %61, %62 : vector<2x32xf32>
      %64 = arith.addf %58, %63 : vector<2x32xf32>
      %65 = vector.extract_strided_slice %14 {offsets = [0, 7], sizes = [2, 1], strides = [1, 1]} : vector<2x12xf32> to vector<2x1xf32>
      %c3_33 = arith.constant 3 : index
      %c0_34 = arith.constant 0 : index
      %66 = vector.load %arg3[%c3_33, %c0_34] : memref<4x32xf32, #tpu.memory_space<vmem>>, vector<1x32xf32>
      %67 = vector.broadcast %65 : vector<2x1xf32> to vector<2x32xf32>
      %68 = vector.broadcast %66 : vector<1x32xf32> to vector<2x32xf32>
      %69 = arith.mulf %67, %68 : vector<2x32xf32>
      %70 = arith.addf %64, %69 : vector<2x32xf32>
      %71 = vector.shape_cast %70 : vector<2x32xf32> to vector<2x1x32xf32>
      %72 = arith.maximumf %42, %70 : vector<2x32xf32>
      %cst_35 = arith.constant 0.000000e+00 : f32
      %73 = vector.broadcast %cst_35 : f32 to vector<2x32xf32>
      %74 = vector.broadcast %15 : vector<1x32xf32> to vector<2x32xf32>
      %75 = arith.addf %73, %74 : vector<2x32xf32>
      %76 = vector.extract_strided_slice %14 {offsets = [0, 8], sizes = [2, 1], strides = [1, 1]} : vector<2x12xf32> to vector<2x1xf32>
      %c0_36 = arith.constant 0 : index
      %c0_37 = arith.constant 0 : index
      %77 = vector.load %arg3[%c0_36, %c0_37] : memref<4x32xf32, #tpu.memory_space<vmem>>, vector<1x32xf32>
      %78 = vector.broadcast %76 : vector<2x1xf32> to vector<2x32xf32>
      %79 = vector.broadcast %77 : vector<1x32xf32> to vector<2x32xf32>
      %80 = arith.mulf %78, %79 : vector<2x32xf32>
      %81 = arith.addf %75, %80 : vector<2x32xf32>
      %82 = vector.extract_strided_slice %14 {offsets = [0, 9], sizes = [2, 1], strides = [1, 1]} : vector<2x12xf32> to vector<2x1xf32>
      %c1_38 = arith.constant 1 : index
      %c0_39 = arith.constant 0 : index
      %83 = vector.load %arg3[%c1_38, %c0_39] : memref<4x32xf32, #tpu.memory_space<vmem>>, vector<1x32xf32>
      %84 = vector.broadcast %82 : vector<2x1xf32> to vector<2x32xf32>
      %85 = vector.broadcast %83 : vector<1x32xf32> to vector<2x32xf32>
      %86 = arith.mulf %84, %85 : vector<2x32xf32>
      %87 = arith.addf %81, %86 : vector<2x32xf32>
      %88 = vector.extract_strided_slice %14 {offsets = [0, 10], sizes = [2, 1], strides = [1, 1]} : vector<2x12xf32> to vector<2x1xf32>
      %c2_40 = arith.constant 2 : index
      %c0_41 = arith.constant 0 : index
      %89 = vector.load %arg3[%c2_40, %c0_41] : memref<4x32xf32, #tpu.memory_space<vmem>>, vector<1x32xf32>
      %90 = vector.broadcast %88 : vector<2x1xf32> to vector<2x32xf32>
      %91 = vector.broadcast %89 : vector<1x32xf32> to vector<2x32xf32>
      %92 = arith.mulf %90, %91 : vector<2x32xf32>
      %93 = arith.addf %87, %92 : vector<2x32xf32>
      %94 = vector.extract_strided_slice %14 {offsets = [0, 11], sizes = [2, 1], strides = [1, 1]} : vector<2x12xf32> to vector<2x1xf32>
      %c3_42 = arith.constant 3 : index
      %c0_43 = arith.constant 0 : index
      %95 = vector.load %arg3[%c3_42, %c0_43] : memref<4x32xf32, #tpu.memory_space<vmem>>, vector<1x32xf32>
      %96 = vector.broadcast %94 : vector<2x1xf32> to vector<2x32xf32>
      %97 = vector.broadcast %95 : vector<1x32xf32> to vector<2x32xf32>
      %98 = arith.mulf %96, %97 : vector<2x32xf32>
      %99 = arith.addf %93, %98 : vector<2x32xf32>
      %100 = vector.shape_cast %99 : vector<2x32xf32> to vector<2x1x32xf32>
      %101 = arith.maximumf %72, %99 : vector<2x32xf32>
      %102 = tpu.concatenate %43, %71, %100 in 1 : vector<2x1x32xf32>, vector<2x1x32xf32>, vector<2x1x32xf32> -> vector<2x3x32xf32>
      %c0_44 = arith.constant 0 : index
      %c0_45 = arith.constant 0 : index
      %c0_46 = arith.constant 0 : index
      %103 = vector.load %arg5[%c0_44, %c0_45, %c0_46] : memref<2x3x32xf32, #tpu.memory_space<vmem>>, vector<2x3x32xf32>
      tpu.vector_store %arg5[%c0_44, %c0_45, %c0_46], %102 {strides = array<i32>} : memref<2x3x32xf32, #tpu.memory_space<vmem>>, vector<2x3x32xf32>,
      %c0_47 = arith.constant 0 : index
      %c0_48 = arith.constant 0 : index
      %104 = vector.load %arg6[%c0_47, %c0_48] : memref<2x32xf32, #tpu.memory_space<vmem>>, vector<2x32xf32>
      tpu.vector_store %arg6[%c0_47, %c0_48], %101 {strides = array<i32>} : memref<2x32xf32, #tpu.memory_space<vmem>>, vector<2x32xf32>,
    } else {
    }
    return
  }
  func.func @transform_0(%arg0: i32, %arg1: i32) -> (i32, i32, i32, i32) {
    %c0_i32 = arith.constant 0 : i32
    %c0_i32_0 = arith.constant 0 : i32
    %c0_i32_1 = arith.constant 0 : i32
    return %arg0, %c0_i32, %arg1, %c0_i32_0 : i32, i32, i32, i32
  }
  func.func @transform_1(%arg0: i32, %arg1: i32) -> (i32, i32) {
    %c0_i32 = arith.constant 0 : i32
    %c0_i32_0 = arith.constant 0 : i32
    %c0_i32_1 = arith.constant 0 : i32
    return %c0_i32, %c0_i32_0 : i32, i32
  }
  func.func @transform_2(%arg0: i32, %arg1: i32) -> (i32, i32) {
    %c0_i32 = arith.constant 0 : i32
    %c0_i32_0 = arith.constant 0 : i32
    %c0_i32_1 = arith.constant 0 : i32
    return %c0_i32, %c0_i32_0 : i32, i32
  }
  func.func @transform_3(%arg0: i32, %arg1: i32) -> (i32, i32, i32) {
    %c0_i32 = arith.constant 0 : i32
    %c0_i32_0 = arith.constant 0 : i32
    %c0_i32_1 = arith.constant 0 : i32
    return %arg0, %c0_i32, %c0_i32_0 : i32, i32, i32
  }
  func.func @transform_4(%arg0: i32, %arg1: i32) -> (i32, i32) {
    %c0_i32 = arith.constant 0 : i32
    %c0_i32_0 = arith.constant 0 : i32
    return %arg0, %c0_i32 : i32, i32
  }
}

</mosaic_0001>

<llo_original>
// kernel: tpu_custom_call.1
$region0: #{tpu_custom_call.1}
  #allocation0 [shape = 'u32[]', space=smem, size = 0x4, offset = 0x4, fixed_abs, tag = 'smem constant byte address 0x4 - core index']
  #allocation1 [shape = 'u32[144,128]{1,0:T(1,128)}', space=vmem, size = 0x12000, scoped, tag = 'internal scratch']
  #allocation2 [shape = 'f32[2,12,1,128]{3,2,1,0:T(1,128)}', space=vmem, size = 0x3000, scoped, tag = 'scratch operand']
  %s0 = inlined_call_operand.hbm [shape: f32[2,12,16,128], index: 0, kind: input, shape index: {}]
  %s1 = inlined_call_operand.hbm [shape: f32[4,32], index: 1, kind: input, shape index: {}]
  %s2 = inlined_call_operand.vmem [shape: f32[1,32], index: 2, kind: input, shape index: {}]
  %s3 = inlined_call_operand.vmem [shape: f32[2,3,32], index: 3, kind: output, shape index: {0}]
  %s4 = inlined_call_operand.hbm [shape: f32[2,32], index: 4, kind: output, shape index: {1}]
  %5 = xla_tuple %s3, %s4
  %s6 = sld [smem:[#allocation0]]
  $region69: #{tpu_custom_call.1} parent=0
    _
  %s8 = ssub.s32 1, %s6
  %s9 = scalar_select 0, %s8, %s6
  $region1: #{tpu_custom_call.1} parent=0
    #allocation3 [shape = 'u8[196608]{0}', space=vmem, size = 0x30000, scoped, tag = 'input window, operand 0']
    #allocation4 [shape = 's32[2]{0}', space=sflag, size = 0x8, scoped, tag = 'scoped memory for tpu_custom_call.1']
    #allocation5 [shape = 's32[2]{0}', space=sflag, size = 0x8, scoped, tag = 'scoped memory for tpu_custom_call.1']
    #allocation6 [shape = 'u8[2048]{0}', space=vmem, size = 0x800, scoped, tag = 'input window, operand 1, single buffered']
    #allocation7 [shape = 's32[1]{0}', space=sflag, size = 0x4, scoped, tag = 'scoped memory for tpu_custom_call.1']
    #allocation8 [shape = 'u8[1024]{0}', space=vmem, size = 0x400, scoped, tag = 'output window, operand 1, single buffered']
    %10 = vsyncpa [#allocation4], 0
    %s11 = scalar_lea.sflag [#allocation4], 1
    %12 = vsyncpa %s11, 0
    %13 = vsyncpa [#allocation7], 0
    %14 = vsyncpa [#allocation5], 0
    loop: start=0, step=1, limit=4
    $region2: #{tpu_custom_call.1} parent=1 // loop_pre_header
      _
    $region3: #{tpu_custom_call.1} parent=1 // loop_header
      %s16 = sphi 0, %s20
      %p17 = scmp.ge.s32.totalorder %s16, 4
      %s23 = sphi 0, %s35
      %s24 = sphi 0, %s31
      %s25 = sphi 0, %s23
      %s26 = sphi 0, %s24
      %s27 = sphi 0, %s25
      %s28 = sphi 0, %s26
      %s40 = sphi 0, %s42
      %s43 = sphi 0, %s40
      %s44 = sphi 0, %s43
      %s60 = sphi 0, %s44
      %s64 = sphi 0, %s64
      %s66 = sphi 0, %s64
      %s67 = sphi 0, %s66
      %s81 = sphi 0, %s67
      %s85 = sphi 0, %s85
      %s87 = sphi 0, %s85
      %s88 = sphi 0, %s87
      %s102 = sphi 0, %s88
      %s108 = sphi 0, %s110
      %s111 = sphi 0, %s108
      %s112 = sphi 0, %s111
      %s128 = sphi 0, %s112
      %s134 = sphi 0, %s136
      %s137 = sphi 0, %s134
      %s138 = sphi 0, %s137
      %s154 = sphi 0, %s138
    $region4: #{tpu_custom_call.1} parent=1 // loop_header_branch
      %19 = sbr.rel (%p17) target = $region8
    $region5: #{tpu_custom_call.1} parent=1 // loop_body
      %s21 = ssub.s32 %s16, 1
      %s22 = ssub.s32 %s16, 2
      %s29 = sadd.s32 1, %s24
      %p30 = scmp.ge.s32.totalorder %s29, 2
      %s31 = scalar_select %p30, 0, %s29
      %s32 = sadd.s32 1, %s23
      %s33 = scalar_select %p30, %s32, %s23
      %p34 = scmp.ge.s32.totalorder %s33, 1
      %s35 = scalar_select %p34, 0, %s33
      %s36 = ssub.s32 %s23, %s35
      %s37 = ssub.s32 %s24, %s31
      %s38 = sor.u32 %s36, %s37
      %p39 = scmp.eq.s32.totalorder %s38, 0
      %s41 = sadd.s32 %s40, 1
      %s42 = scalar_select %p39, %s40, %s41
      %p45 = pneg %p39
      %p46 = scmp.eq.s32.totalorder %s16, 1
      %p47 = por %p45, %p46
      %p48 = scmp.ne.s32.totalorder %s40, %s43
      %p49 = scmp.eq.s32.totalorder %s16, 0
      %p50 = por %p48, %p49
      %p51 = scmp.ne.s32.totalorder %s40, %s43
      %p52 = scmp.eq.s32.totalorder %s21, 1
      %p53 = por %p51, %p52
      %p54 = scmp.ne.s32.totalorder %s43, %s44
      %p55 = scmp.eq.s32.totalorder %s21, 0
      %p56 = por %p54, %p55
      %p57 = scmp.ne.s32.totalorder %s43, %s44
      %p58 = scmp.eq.s32.totalorder %s22, 1
      %p59 = por %p57, %p58
      %p61 = scmp.ne.s32.totalorder %s44, %s60
      %p62 = scmp.eq.s32.totalorder %s22, 0
      %p63 = por %p61, %p62
      %s65 = sadd.s32 %s64, 1
      %p68 = scmp.eq.s32.totalorder %s16, 1
      %p69 = scmp.ne.s32.totalorder %s64, %s66
      %p70 = scmp.eq.s32.totalorder %s16, 0
      %p71 = por %p69, %p70
      %p72 = scmp.ne.s32.totalorder %s64, %s66
      %p73 = scmp.eq.s32.totalorder %s21, 1
      %p74 = por %p72, %p73
      %p75 = scmp.ne.s32.totalorder %s66, %s67
      %p76 = scmp.eq.s32.totalorder %s21, 0
      %p77 = por %p75, %p76
      %p78 = scmp.ne.s32.totalorder %s66, %s67
      %p79 = scmp.eq.s32.totalorder %s22, 1
      %p80 = por %p78, %p79
      %p82 = scmp.ne.s32.totalorder %s67, %s81
      %p83 = scmp.eq.s32.totalorder %s22, 0
      %p84 = por %p82, %p83
      %s86 = sadd.s32 %s85, 1
      %p89 = scmp.eq.s32.totalorder %s16, 1
      %p90 = scmp.ne.s32.totalorder %s85, %s87
      %p91 = scmp.eq.s32.totalorder %s16, 0
      %p92 = por %p90, %p91
      %p93 = scmp.ne.s32.totalorder %s85, %s87
      %p94 = scmp.eq.s32.totalorder %s21, 1
      %p95 = por %p93, %p94
      %p96 = scmp.ne.s32.totalorder %s87, %s88
      %p97 = scmp.eq.s32.totalorder %s21, 0
      %p98 = por %p96, %p97
      %p99 = scmp.ne.s32.totalorder %s87, %s88
      %p100 = scmp.eq.s32.totalorder %s22, 1
      %p101 = por %p99, %p100
      %p103 = scmp.ne.s32.totalorder %s88, %s102
      %p104 = scmp.eq.s32.totalorder %s22, 0
      %p105 = por %p103, %p104
      %s106 = ssub.s32 %s23, %s35
      %p107 = scmp.eq.s32.totalorder %s106, 0
      %s109 = sadd.s32 %s108, 1
      %s110 = scalar_select %p107, %s108, %s109
      %p113 = pneg %p107
      %p114 = scmp.eq.s32.totalorder %s16, 1
      %p115 = por %p113, %p114
      %p116 = scmp.ne.s32.totalorder %s108, %s111
      %p117 = scmp.eq.s32.totalorder %s16, 0
      %p118 = por %p116, %p117
      %p119 = scmp.ne.s32.totalorder %s108, %s111
      %p120 = scmp.eq.s32.totalorder %s21, 1
      %p121 = por %p119, %p120
      %p122 = scmp.ne.s32.totalorder %s111, %s112
      %p123 = scmp.eq.s32.totalorder %s21, 0
      %p124 = por %p122, %p123
      %p125 = scmp.ne.s32.totalorder %s111, %s112
      %p126 = scmp.eq.s32.totalorder %s22, 1
      %p127 = por %p125, %p126
      %p129 = scmp.ne.s32.totalorder %s112, %s128
      %p130 = scmp.eq.s32.totalorder %s22, 0
      %p131 = por %p129, %p130
      %s132 = ssub.s32 %s23, %s35
      %p133 = scmp.eq.s32.totalorder %s132, 0
      %s135 = sadd.s32 %s134, 1
      %s136 = scalar_select %p133, %s134, %s135
      %p139 = pneg %p133
      %p140 = scmp.eq.s32.totalorder %s16, 1
      %p141 = por %p139, %p140
      %p142 = scmp.ne.s32.totalorder %s134, %s137
      %p143 = scmp.eq.s32.totalorder %s16, 0
      %p144 = por %p142, %p143
      %p145 = scmp.ne.s32.totalorder %s134, %s137
      %p146 = scmp.eq.s32.totalorder %s21, 1
      %p147 = por %p145, %p146
      %p148 = scmp.ne.s32.totalorder %s137, %s138
      %p149 = scmp.eq.s32.totalorder %s21, 0
      %p150 = por %p148, %p149
      %p151 = scmp.ne.s32.totalorder %s137, %s138
      %p152 = scmp.eq.s32.totalorder %s22, 1
      %p153 = por %p151, %p152
      %p155 = scmp.ne.s32.totalorder %s138, %s154
      %p156 = scmp.eq.s32.totalorder %s22, 0
      %p157 = por %p155, %p156
      %p158 = scmp.le.s32.totalorder 1, %s16
      %p159 = scmp.lt.s32.totalorder %s16, 3
      %p160 = pnand %p158, %p159
      %p161 = pneg %p160
      // Predicated region
      $region9: #{tpu_custom_call.1} parent=5 // pred_check
        _
      $region10: #{tpu_custom_call.1} parent=5 // pred_check_branch
        %163 = sbr.rel (%p160) target = $region12
      $region11: #{tpu_custom_call.1} parent=5 // pred_region
        %s164 = ssub.s32 %s16, 1
        // Predicated region
        $region13: #{tpu_custom_call.1} parent=11 // pred_check
          %p165 = pneg %p77
        $region14: #{tpu_custom_call.1} parent=11 // pred_check_branch
          %167 = sbr.rel (%p165) target = $region16
        $region15: #{tpu_custom_call.1} parent=11 // pred_region
          %s169 = ssub.s32 64, 64
          %170 = vsyncadd [#allocation7], %s169
          %s172 = sshll.u32 [#allocation6], 4
          %s173 = int_to_ptr.vmem [resolvable:$true] %s172
          %175 = dma.hbm_to_vmem [thread:$0]  %s1, 64, %s173, [#allocation7]
        $region16: #{tpu_custom_call.1} parent=11 // pred_fallthru
          _
        // Predicated region
        $region17: #{tpu_custom_call.1} parent=11 // pred_check
          %p176 = pneg %p98
        $region18: #{tpu_custom_call.1} parent=11 // pred_check_branch
          %178 = sbr.rel (%p176) target = $region20
        $region19: #{tpu_custom_call.1} parent=11 // pred_region
          _
        $region20: #{tpu_custom_call.1} parent=11 // pred_fallthru
          _
      $region12: #{tpu_custom_call.1} parent=5 // pred_fallthru
        _
      %p179 = scmp.lt.s32.totalorder %s16, 2
      // Predicated region
      $region21: #{tpu_custom_call.1} parent=5 // pred_check
        %p180 = pneg %p179
      $region22: #{tpu_custom_call.1} parent=5 // pred_check_branch
        %182 = sbr.rel (%p180) target = $region24
      $region23: #{tpu_custom_call.1} parent=5 // pred_region
        // Predicated region
        $region25: #{tpu_custom_call.1} parent=23 // pred_check
          %p183 = pneg %p50
        $region26: #{tpu_custom_call.1} parent=23 // pred_check_branch
          %185 = sbr.rel (%p183) target = $region28
        $region27: #{tpu_custom_call.1} parent=23 // pred_region
          %s186 = sand.u32 %s40, 1
          %s187 = scalar_lea.sflag [#allocation4], %s186
          %s188 = sand.u32 %s40, 1
          %s189 = smul.addr %s188, 192
          %s190 = scalar_lea.vmem [#allocation3], %s189
          %s191 = smul.u32 2, %s23
          %s193 = ssub.s32 3072, 3072
          %194 = vsyncadd %s187, %s193
          %s195 = smul.addr %s191, 24
          %s196 = sadd.s32 %s24, %s195
          %s197 = smul.addr %s196, 128
          %s198 = scalar_lea.hbm %s0, %s197
          %s199 = sshll.u32 %s190, 4
          %s200 = int_to_ptr.vmem [resolvable:$true] %s199
          %205 = dma.hbm_to_vmem [thread:$0]  %s198, 3072, %s200, %s187, 256, 128, 8
        $region28: #{tpu_custom_call.1} parent=23 // pred_fallthru
          _
      $region24: #{tpu_custom_call.1} parent=5 // pred_fallthru
        _
      %p206 = scmp.le.s32.totalorder 1, %s16
      %p207 = scmp.lt.s32.totalorder %s16, 3
      %p208 = pnand %p206, %p207
      %p209 = pneg %p208
      // Predicated region
      $region29: #{tpu_custom_call.1} parent=5 // pred_check
        _
      $region30: #{tpu_custom_call.1} parent=5 // pred_check_branch
        %211 = sbr.rel (%p208) target = $region32
      $region31: #{tpu_custom_call.1} parent=5 // pred_region
        %s212 = ssub.s32 %s16, 1
        %s213 = sand.u32 %s43, 1
        %s214 = scalar_lea.sflag [#allocation4], %s213
        %s215 = sand.u32 %s43, 1
        %s216 = smul.addr %s215, 192
        %s217 = scalar_lea.vmem [#allocation3], %s216
        // Predicated region
        $region33: #{tpu_custom_call.1} parent=31 // pred_check
          %p218 = pneg %p56
        $region34: #{tpu_custom_call.1} parent=31 // pred_check_branch
          %220 = sbr.rel (%p218) target = $region36
        $region35: #{tpu_custom_call.1} parent=31 // pred_region
          %221 = dma.done %s214, 3072
        $region36: #{tpu_custom_call.1} parent=31 // pred_fallthru
          _
        // Predicated region
        $region37: #{tpu_custom_call.1} parent=31 // pred_check
          %p222 = pneg %p77
        $region38: #{tpu_custom_call.1} parent=31 // pred_check_branch
          %224 = sbr.rel (%p222) target = $region40
        $region39: #{tpu_custom_call.1} parent=31 // pred_region
          %225 = dma.done [#allocation7], 64
        $region40: #{tpu_custom_call.1} parent=31 // pred_fallthru
          _
        %s226 = sand.u32 %s43, 1
        %s227 = scalar_lea.sflag [#allocation4], %s226
        %s228 = sand.u32 %s43, 1
        %s229 = smul.addr %s228, 192
        %s230 = scalar_lea.vmem [#allocation3], %s229
        %p231 = pneg %p56
        %p232 = pneg %p53
        %p233 = pneg %p77
        %p234 = pneg %p74
        %p235 = pneg %p98
        %p236 = pneg %p95
        %p237 = pneg %p124
        %p238 = pneg %p121
        %s239 = smul.u32 2, %s25
        %p240 = scmp.lt.s32.totalorder %s239, 1
        %s241 = scalar_select %p240, %s239, 1
        %s242 = smul.addr %s241, 4
        %s243 = scalar_lea.vmem %s3, %s242
        %p244 = pneg %p150
        %p245 = pneg %p147
        %s246 = smul.u32 2, %s25
        %s247 = smul.u32 2, %s25
        %p248 = scmp.lt.s32.totalorder %s247, 1
        %s249 = scalar_select %p248, %s247, 1
        %s250 = smul.addr %s249, 4
        %s251 = scalar_lea.vmem %s3, %s250
        %s252 = smul.u32 2, %s25
        %p253 = scmp.eq.s32.totalorder %s26, 0
        // Predicated region
        $region41: #{tpu_custom_call.1} parent=31 // pred_check
          %p254 = pneg %p253
        $region42: #{tpu_custom_call.1} parent=31 // pred_check_branch
          %256 = sbr.rel (%p254) target = $region44
        $region43: #{tpu_custom_call.1} parent=31 // pred_region
          %257 = vst [vmem:[#allocation2] sm:$0x1] 0.0
          %258 = vst [vmem:[#allocation2 + $0x1] sm:$0x1] 0.0
          %259 = vst [vmem:[#allocation2 + $0x2] sm:$0x1] 0.0
          %260 = vst [vmem:[#allocation2 + $0x3] sm:$0x1] 0.0
          %261 = vst [vmem:[#allocation2 + $0x4] sm:$0x1] 0.0
          %262 = vst [vmem:[#allocation2 + $0x5] sm:$0x1] 0.0
          %263 = vst [vmem:[#allocation2 + $0x6] sm:$0x1] 0.0
          %264 = vst [vmem:[#allocation2 + $0x7] sm:$0x1] 0.0
          %265 = vst [vmem:[#allocation2 + $0x8] sm:$0x1] 0.0
          %266 = vst [vmem:[#allocation2 + $0x9] sm:$0x1] 0.0
          %267 = vst [vmem:[#allocation2 + $0xa] sm:$0x1] 0.0
          %268 = vst [vmem:[#allocation2 + $0xb] sm:$0x1] 0.0
          %269 = vst [vmem:[#allocation2 + $0xc] sm:$0x1] 0.0
          %270 = vst [vmem:[#allocation2 + $0xd] sm:$0x1] 0.0
          %271 = vst [vmem:[#allocation2 + $0xe] sm:$0x1] 0.0
          %272 = vst [vmem:[#allocation2 + $0xf] sm:$0x1] 0.0
          %273 = vst [vmem:[#allocation2 + $0x10] sm:$0x1] 0.0
          %274 = vst [vmem:[#allocation2 + $0x11] sm:$0x1] 0.0
          %275 = vst [vmem:[#allocation2 + $0x12] sm:$0x1] 0.0
          %276 = vst [vmem:[#allocation2 + $0x13] sm:$0x1] 0.0
          %277 = vst [vmem:[#allocation2 + $0x14] sm:$0x1] 0.0
          %278 = vst [vmem:[#allocation2 + $0x15] sm:$0x1] 0.0
          %279 = vst [vmem:[#allocation2 + $0x16] sm:$0x1] 0.0
          %280 = vst [vmem:[#allocation2 + $0x17] sm:$0x1] 0.0
        $region44: #{tpu_custom_call.1} parent=31 // pred_fallthru
          _
        %v281 = vld [vmem:[#allocation2] sm:$0x1]
        %v282 = vld [vmem:[#allocation2 + $0x1] sm:$0x1]
        %v283 = vld [vmem:[#allocation2 + $0x2] sm:$0x1]
        %v284 = vld [vmem:[#allocation2 + $0x3] sm:$0x1]
        %v285 = vld [vmem:[#allocation2 + $0x4] sm:$0x1]
        %v286 = vld [vmem:[#allocation2 + $0x5] sm:$0x1]
        %v287 = vld [vmem:[#allocation2 + $0x6] sm:$0x1]
        %v288 = vld [vmem:[#allocation2 + $0x7] sm:$0x1]
        %v289 = vld [vmem:[#allocation2 + $0x8] sm:$0x1]
        %v290 = vld [vmem:[#allocation2 + $0x9] sm:$0x1]
        %v291 = vld [vmem:[#allocation2 + $0xa] sm:$0x1]
        %v292 = vld [vmem:[#allocation2 + $0xb] sm:$0x1]
        %v293 = vld [vmem:[#allocation2 + $0xc] sm:$0x1]
        %v294 = vld [vmem:[#allocation2 + $0xd] sm:$0x1]
        %v295 = vld [vmem:[#allocation2 + $0xe] sm:$0x1]
        %v296 = vld [vmem:[#allocation2 + $0xf] sm:$0x1]
        %v297 = vld [vmem:[#allocation2 + $0x10] sm:$0x1]
        %v298 = vld [vmem:[#allocation2 + $0x11] sm:$0x1]
        %v299 = vld [vmem:[#allocation2 + $0x12] sm:$0x1]
        %v300 = vld [vmem:[#allocation2 + $0x13] sm:$0x1]
        %v301 = vld [vmem:[#allocation2 + $0x14] sm:$0x1]
        %v302 = vld [vmem:[#allocation2 + $0x15] sm:$0x1]
        %v303 = vld [vmem:[#allocation2 + $0x16] sm:$0x1]
        %v304 = vld [vmem:[#allocation2 + $0x17] sm:$0x1]
        %v305 = vld [vmem:[%s217] sm:$0xff]
        %v306 = vld [vmem:[%s217 + $0x8] sm:$0xff]
        %v307 = vld [vmem:[%s217 + $0x10] sm:$0xff]
        %v308 = vld [vmem:[%s217 + $0x18] sm:$0xff]
        %v309 = vld [vmem:[%s217 + $0x20] sm:$0xff]
        %v310 = vld [vmem:[%s217 + $0x28] sm:$0xff]
        %v311 = vld [vmem:[%s217 + $0x30] sm:$0xff]
        %v312 = vld [vmem:[%s217 + $0x38] sm:$0xff]
        %v313 = vld [vmem:[%s217 + $0x40] sm:$0xff]
        %v314 = vld [vmem:[%s217 + $0x48] sm:$0xff]
        %v315 = vld [vmem:[%s217 + $0x50] sm:$0xff]
        %v316 = vld [vmem:[%s217 + $0x58] sm:$0xff]
        %v317 = vld [vmem:[%s217 + $0x60] sm:$0xff]
        %v318 = vld [vmem:[%s217 + $0x68] sm:$0xff]
        %v319 = vld [vmem:[%s217 + $0x70] sm:$0xff]
        %v320 = vld [vmem:[%s217 + $0x78] sm:$0xff]
        %v321 = vld [vmem:[%s217 + $0x80] sm:$0xff]
        %v322 = vld [vmem:[%s217 + $0x88] sm:$0xff]
        %v323 = vld [vmem:[%s217 + $0x90] sm:$0xff]
        %v324 = vld [vmem:[%s217 + $0x98] sm:$0xff]
        %v325 = vld [vmem:[%s217 + $0xa0] sm:$0xff]
        %v326 = vld [vmem:[%s217 + $0xa8] sm:$0xff]
        %v327 = vld [vmem:[%s217 + $0xb0] sm:$0xff]
        %v328 = vld [vmem:[%s217 + $0xb8] sm:$0xff]
        %v329 = vrot.slane %v305, 4
        %v330 = vadd.f32 %v305, %v329
        %v331 = vrot.slane %v330, 2
        %v332 = vadd.f32 %v330, %v331
        %v333 = vrot.slane %v332, 1
        %v334 = vadd.f32 %v332, %v333
        %v335 = vrot.slane %v306, 4
        %v336 = vadd.f32 %v306, %v335
        %v337 = vrot.slane %v336, 2
        %v338 = vadd.f32 %v336, %v337
        %v339 = vrot.slane %v338, 1
        %v340 = vadd.f32 %v338, %v339
        %v341 = vrot.slane %v307, 4
        %v342 = vadd.f32 %v307, %v341
        %v343 = vrot.slane %v342, 2
        %v344 = vadd.f32 %v342, %v343
        %v345 = vrot.slane %v344, 1
        %v346 = vadd.f32 %v344, %v345
        %v347 = vrot.slane %v308, 4
        %v348 = vadd.f32 %v308, %v347
        %v349 = vrot.slane %v348, 2
        %v350 = vadd.f32 %v348, %v349
        %v351 = vrot.slane %v350, 1
        %v352 = vadd.f32 %v350, %v351
        %v353 = vrot.slane %v309, 4
        %v354 = vadd.f32 %v309, %v353
        %v355 = vrot.slane %v354, 2
        %v356 = vadd.f32 %v354, %v355
        %v357 = vrot.slane %v356, 1
        %v358 = vadd.f32 %v356, %v357
        %v359 = vrot.slane %v310, 4
        %v360 = vadd.f32 %v310, %v359
        %v361 = vrot.slane %v360, 2
        %v362 = vadd.f32 %v360, %v361
        %v363 = vrot.slane %v362, 1
        %v364 = vadd.f32 %v362, %v363
        %v365 = vrot.slane %v311, 4
        %v366 = vadd.f32 %v311, %v365
        %v367 = vrot.slane %v366, 2
        %v368 = vadd.f32 %v366, %v367
        %v369 = vrot.slane %v368, 1
        %v370 = vadd.f32 %v368, %v369
        %v371 = vrot.slane %v312, 4
        %v372 = vadd.f32 %v312, %v371
        %v373 = vrot.slane %v372, 2
        %v374 = vadd.f32 %v372, %v373
        %v375 = vrot.slane %v374, 1
        %v376 = vadd.f32 %v374, %v375
        %v377 = vrot.slane %v313, 4
        %v378 = vadd.f32 %v313, %v377
        %v379 = vrot.slane %v378, 2
        %v380 = vadd.f32 %v378, %v379
        %v381 = vrot.slane %v380, 1
        %v382 = vadd.f32 %v380, %v381
        %v383 = vrot.slane %v314, 4
        %v384 = vadd.f32 %v314, %v383
        %v385 = vrot.slane %v384, 2
        %v386 = vadd.f32 %v384, %v385
        %v387 = vrot.slane %v386, 1
        %v388 = vadd.f32 %v386, %v387
        %v389 = vrot.slane %v315, 4
        %v390 = vadd.f32 %v315, %v389
        %v391 = vrot.slane %v390, 2
        %v392 = vadd.f32 %v390, %v391
        %v393 = vrot.slane %v392, 1
        %v394 = vadd.f32 %v392, %v393
        %v395 = vrot.slane %v316, 4
        %v396 = vadd.f32 %v316, %v395
        %v397 = vrot.slane %v396, 2
        %v398 = vadd.f32 %v396, %v397
        %v399 = vrot.slane %v398, 1
        %v400 = vadd.f32 %v398, %v399
        %v401 = vrot.slane %v317, 4
        %v402 = vadd.f32 %v317, %v401
        %v403 = vrot.slane %v402, 2
        %v404 = vadd.f32 %v402, %v403
        %v405 = vrot.slane %v404, 1
        %v406 = vadd.f32 %v404, %v405
        %v407 = vrot.slane %v318, 4
        %v408 = vadd.f32 %v318, %v407
        %v409 = vrot.slane %v408, 2
        %v410 = vadd.f32 %v408, %v409
        %v411 = vrot.slane %v410, 1
        %v412 = vadd.f32 %v410, %v411
        %v413 = vrot.slane %v319, 4
        %v414 = vadd.f32 %v319, %v413
        %v415 = vrot.slane %v414, 2
        %v416 = vadd.f32 %v414, %v415
        %v417 = vrot.slane %v416, 1
        %v418 = vadd.f32 %v416, %v417
        %v419 = vrot.slane %v320, 4
        %v420 = vadd.f32 %v320, %v419
        %v421 = vrot.slane %v420, 2
        %v422 = vadd.f32 %v420, %v421
        %v423 = vrot.slane %v422, 1
        %v424 = vadd.f32 %v422, %v423
        %v425 = vrot.slane %v321, 4
        %v426 = vadd.f32 %v321, %v425
        %v427 = vrot.slane %v426, 2
        %v428 = vadd.f32 %v426, %v427
        %v429 = vrot.slane %v428, 1
        %v430 = vadd.f32 %v428, %v429
        %v431 = vrot.slane %v322, 4
        %v432 = vadd.f32 %v322, %v431
        %v433 = vrot.slane %v432, 2
        %v434 = vadd.f32 %v432, %v433
        %v435 = vrot.slane %v434, 1
        %v436 = vadd.f32 %v434, %v435
        %v437 = vrot.slane %v323, 4
        %v438 = vadd.f32 %v323, %v437
        %v439 = vrot.slane %v438, 2
        %v440 = vadd.f32 %v438, %v439
        %v441 = vrot.slane %v440, 1
        %v442 = vadd.f32 %v440, %v441
        %v443 = vrot.slane %v324, 4
        %v444 = vadd.f32 %v324, %v443
        %v445 = vrot.slane %v444, 2
        %v446 = vadd.f32 %v444, %v445
        %v447 = vrot.slane %v446, 1
        %v448 = vadd.f32 %v446, %v447
        %v449 = vrot.slane %v325, 4
        %v450 = vadd.f32 %v325, %v449
        %v451 = vrot.slane %v450, 2
        %v452 = vadd.f32 %v450, %v451
        %v453 = vrot.slane %v452, 1
        %v454 = vadd.f32 %v452, %v453
        %v455 = vrot.slane %v326, 4
        %v456 = vadd.f32 %v326, %v455
        %v457 = vrot.slane %v456, 2
        %v458 = vadd.f32 %v456, %v457
        %v459 = vrot.slane %v458, 1
        %v460 = vadd.f32 %v458, %v459
        %v461 = vrot.slane %v327, 4
        %v462 = vadd.f32 %v327, %v461
        %v463 = vrot.slane %v462, 2
        %v464 = vadd.f32 %v462, %v463
        %v465 = vrot.slane %v464, 1
        %v466 = vadd.f32 %v464, %v465
        %v467 = vrot.slane %v328, 4
        %v468 = vadd.f32 %v328, %v467
        %v469 = vrot.slane %v468, 2
        %v470 = vadd.f32 %v468, %v469
        %v471 = vrot.slane %v470, 1
        %v472 = vadd.f32 %v470, %v471
        %v473 = vadd.f32 %v281, %v334
        %v474 = vadd.f32 %v282, %v340
        %v475 = vadd.f32 %v283, %v346
        %v476 = vadd.f32 %v284, %v352
        %v477 = vadd.f32 %v285, %v358
        %v478 = vadd.f32 %v286, %v364
        %v479 = vadd.f32 %v287, %v370
        %v480 = vadd.f32 %v288, %v376
        %v481 = vadd.f32 %v289, %v382
        %v482 = vadd.f32 %v290, %v388
        %v483 = vadd.f32 %v291, %v394
        %v484 = vadd.f32 %v292, %v400
        %v485 = vadd.f32 %v293, %v406
        %v486 = vadd.f32 %v294, %v412
        %v487 = vadd.f32 %v295, %v418
        %v488 = vadd.f32 %v296, %v424
        %v489 = vadd.f32 %v297, %v430
        %v490 = vadd.f32 %v298, %v436
        %v491 = vadd.f32 %v299, %v442
        %v492 = vadd.f32 %v300, %v448
        %v493 = vadd.f32 %v301, %v454
        %v494 = vadd.f32 %v302, %v460
        %v495 = vadd.f32 %v303, %v466
        %v496 = vadd.f32 %v304, %v472
        %497 = vst [vmem:[#allocation2] sm:$0x1] %v473
        %498 = vst [vmem:[#allocation2 + $0x1] sm:$0x1] %v474
        %499 = vst [vmem:[#allocation2 + $0x2] sm:$0x1] %v475
        %500 = vst [vmem:[#allocation2 + $0x3] sm:$0x1] %v476
        %501 = vst [vmem:[#allocation2 + $0x4] sm:$0x1] %v477
        %502 = vst [vmem:[#allocation2 + $0x5] sm:$0x1] %v478
        %503 = vst [vmem:[#allocation2 + $0x6] sm:$0x1] %v479
        %504 = vst [vmem:[#allocation2 + $0x7] sm:$0x1] %v480
        %505 = vst [vmem:[#allocation2 + $0x8] sm:$0x1] %v481
        %506 = vst [vmem:[#allocation2 + $0x9] sm:$0x1] %v482
        %507 = vst [vmem:[#allocation2 + $0xa] sm:$0x1] %v483
        %508 = vst [vmem:[#allocation2 + $0xb] sm:$0x1] %v484
        %509 = vst [vmem:[#allocation2 + $0xc] sm:$0x1] %v485
        %510 = vst [vmem:[#allocation2 + $0xd] sm:$0x1] %v486
        %511 = vst [vmem:[#allocation2 + $0xe] sm:$0x1] %v487
        %512 = vst [vmem:[#allocation2 + $0xf] sm:$0x1] %v488
        %513 = vst [vmem:[#allocation2 + $0x10] sm:$0x1] %v489
        %514 = vst [vmem:[#allocation2 + $0x11] sm:$0x1] %v490
        %515 = vst [vmem:[#allocation2 + $0x12] sm:$0x1] %v491
        %516 = vst [vmem:[#allocation2 + $0x13] sm:$0x1] %v492
        %517 = vst [vmem:[#allocation2 + $0x14] sm:$0x1] %v493
        %518 = vst [vmem:[#allocation2 + $0x15] sm:$0x1] %v494
        %519 = vst [vmem:[#allocation2 + $0x16] sm:$0x1] %v495
        %520 = vst [vmem:[#allocation2 + $0x17] sm:$0x1] %v496
        %p521 = scmp.eq.s32.totalorder %s26, 1
        // Predicated region
        $region45: #{tpu_custom_call.1} parent=31 // pred_check
          %p522 = pneg %p521
        $region46: #{tpu_custom_call.1} parent=31 // pred_check_branch
          %524 = sbr.rel (%p522) target = $region48
        $region47: #{tpu_custom_call.1} parent=31 // pred_region
          %v525 = vld [vmem:[#allocation2] sm:$0x1]
          %v526 = vld [vmem:[#allocation2 + $0x1] sm:$0x1]
          %v527 = vld [vmem:[#allocation2 + $0x2] sm:$0x1]
          %v528 = vld [vmem:[#allocation2 + $0x3] sm:$0x1]
          %v529 = vld [vmem:[#allocation2 + $0x4] sm:$0x1]
          %v530 = vld [vmem:[#allocation2 + $0x5] sm:$0x1]
          %v531 = vld [vmem:[#allocation2 + $0x6] sm:$0x1]
          %v532 = vld [vmem:[#allocation2 + $0x7] sm:$0x1]
          %v533 = vld [vmem:[#allocation2 + $0x8] sm:$0x1]
          %v534 = vld [vmem:[#allocation2 + $0x9] sm:$0x1]
          %v535 = vld [vmem:[#allocation2 + $0xa] sm:$0x1]
          %v536 = vld [vmem:[#allocation2 + $0xb] sm:$0x1]
          %v537 = vld [vmem:[#allocation2 + $0xc] sm:$0x1]
          %v538 = vld [vmem:[#allocation2 + $0xd] sm:$0x1]
          %v539 = vld [vmem:[#allocation2 + $0xe] sm:$0x1]
          %v540 = vld [vmem:[#allocation2 + $0xf] sm:$0x1]
          %v541 = vld [vmem:[#allocation2 + $0x10] sm:$0x1]
          %v542 = vld [vmem:[#allocation2 + $0x11] sm:$0x1]
          %v543 = vld [vmem:[#allocation2 + $0x12] sm:$0x1]
          %v544 = vld [vmem:[#allocation2 + $0x13] sm:$0x1]
          %v545 = vld [vmem:[#allocation2 + $0x14] sm:$0x1]
          %v546 = vld [vmem:[#allocation2 + $0x15] sm:$0x1]
          %v547 = vld [vmem:[#allocation2 + $0x16] sm:$0x1]
          %v548 = vld [vmem:[#allocation2 + $0x17] sm:$0x1]
          %vm549 = vcmask 1040384
          %v550 = vsel %vm549, %v525, 0.0
          %551 = vadd.xlane.f32.xlu0 %v550
          %v552 = vpop.xlane.xlu0 %551
          %v553 = vsel %vm549, %v526, 0.0
          %554 = vadd.xlane.f32.xlu0 %v553
          %v555 = vpop.xlane.xlu0 %554
          %v556 = vsel %vm549, %v527, 0.0
          %557 = vadd.xlane.f32.xlu0 %v556
          %v558 = vpop.xlane.xlu0 %557
          %v559 = vsel %vm549, %v528, 0.0
          %560 = vadd.xlane.f32.xlu0 %v559
          %v561 = vpop.xlane.xlu0 %560
          %v562 = vsel %vm549, %v529, 0.0
          %563 = vadd.xlane.f32.xlu0 %v562
          %v564 = vpop.xlane.xlu0 %563
          %v565 = vsel %vm549, %v530, 0.0
          %566 = vadd.xlane.f32.xlu0 %v565
          %v567 = vpop.xlane.xlu0 %566
          %v568 = vsel %vm549, %v531, 0.0
          %569 = vadd.xlane.f32.xlu0 %v568
          %v570 = vpop.xlane.xlu0 %569
          %v571 = vsel %vm549, %v532, 0.0
          %572 = vadd.xlane.f32.xlu0 %v571
          %v573 = vpop.xlane.xlu0 %572
          %v574 = vsel %vm549, %v533, 0.0
          %575 = vadd.xlane.f32.xlu0 %v574
          %v576 = vpop.xlane.xlu0 %575
          %v577 = vsel %vm549, %v534, 0.0
          %578 = vadd.xlane.f32.xlu0 %v577
          %v579 = vpop.xlane.xlu0 %578
          %v580 = vsel %vm549, %v535, 0.0
          %581 = vadd.xlane.f32.xlu0 %v580
          %v582 = vpop.xlane.xlu0 %581
          %v583 = vsel %vm549, %v536, 0.0
          %584 = vadd.xlane.f32.xlu0 %v583
          %v585 = vpop.xlane.xlu0 %584
          %v586 = vsel %vm549, %v537, 0.0
          %587 = vadd.xlane.f32.xlu0 %v586
          %v588 = vpop.xlane.xlu0 %587
          %v589 = vsel %vm549, %v538, 0.0
          %590 = vadd.xlane.f32.xlu0 %v589
          %v591 = vpop.xlane.xlu0 %590
          %v592 = vsel %vm549, %v539, 0.0
          %593 = vadd.xlane.f32.xlu0 %v592
          %v594 = vpop.xlane.xlu0 %593
          %v595 = vsel %vm549, %v540, 0.0
          %596 = vadd.xlane.f32.xlu0 %v595
          %v597 = vpop.xlane.xlu0 %596
          %v598 = vsel %vm549, %v541, 0.0
          %599 = vadd.xlane.f32.xlu0 %v598
          %v600 = vpop.xlane.xlu0 %599
          %v601 = vsel %vm549, %v542, 0.0
          %602 = vadd.xlane.f32.xlu0 %v601
          %v603 = vpop.xlane.xlu0 %602
          %v604 = vsel %vm549, %v543, 0.0
          %605 = vadd.xlane.f32.xlu0 %v604
          %v606 = vpop.xlane.xlu0 %605
          %v607 = vsel %vm549, %v544, 0.0
          %608 = vadd.xlane.f32.xlu0 %v607
          %v609 = vpop.xlane.xlu0 %608
          %v610 = vsel %vm549, %v545, 0.0
          %611 = vadd.xlane.f32.xlu0 %v610
          %v612 = vpop.xlane.xlu0 %611
          %v613 = vsel %vm549, %v546, 0.0
          %614 = vadd.xlane.f32.xlu0 %v613
          %v615 = vpop.xlane.xlu0 %614
          %v616 = vsel %vm549, %v547, 0.0
          %617 = vadd.xlane.f32.xlu0 %v616
          %v618 = vpop.xlane.xlu0 %617
          %v619 = vsel %vm549, %v548, 0.0
          %620 = vadd.xlane.f32.xlu0 %v619
          %v621 = vpop.xlane.xlu0 %620
          %v622 = vld [vmem:[%s2] sm:$0x1]
          %v624 = vlaneseq
          %v625 = vshrl.u32 %v624, 7
          %v626 = vsub.s32 0, %v625
          %v627 = vrot.slane %v622, %v626
          %v629 = vadd.f32 %v627, 0.0
          %v630 = vld [vmem:[#allocation6] sm:$0x1]
          %v631 = vlaneseq
          %v632 = vshrl.u32 %v631, 7
          %v633 = vsub.s32 0, %v632
          %v634 = vrot.slane %v630, %v633
          %637 = vbcast.lane.b32.xlu0 %v634, 256
          %v638 = vpop.permute.xlu0 %637
          %s640 = sor.u32 256, 8
          %641 = vbcast.lane.b32.xlu0 %v634, %s640
          %v642 = vpop.permute.xlu0 %641
          %s644 = sor.u32 256, 16
          %645 = vbcast.lane.b32.xlu0 %v634, %s644
          %v646 = vpop.permute.xlu0 %645
          %s648 = sor.u32 256, 24
          %649 = vbcast.lane.b32.xlu0 %v634, %s648
          %v650 = vpop.permute.xlu0 %649
          %v651 = vlaneseq
          %v652 = vshrl.u32 %v651, 7
          %v653 = vsub.s32 0, %v652
          %v654 = vrot.slane %v638, %v653
          %656 = vbcast.lane.b32.xlu0 %v654, 256
          %v657 = vpop.permute.xlu0 %656
          %v658 = vlaneseq
          %v659 = vshrl.u32 %v658, 7
          %v660 = vsub.s32 1, %v659
          %v661 = vrot.slane %v638, %v660
          %663 = vbcast.lane.b32.xlu0 %v661, 256
          %v664 = vpop.permute.xlu0 %663
          %v665 = vlaneseq
          %v666 = vshrl.u32 %v665, 7
          %v667 = vsub.s32 2, %v666
          %v668 = vrot.slane %v638, %v667
          %670 = vbcast.lane.b32.xlu0 %v668, 256
          %v671 = vpop.permute.xlu0 %670
          %v672 = vlaneseq
          %v673 = vshrl.u32 %v672, 7
          %v674 = vsub.s32 3, %v673
          %v675 = vrot.slane %v638, %v674
          %677 = vbcast.lane.b32.xlu0 %v675, 256
          %v678 = vpop.permute.xlu0 %677
          %v679 = vlaneseq
          %v680 = vshrl.u32 %v679, 7
          %v681 = vsub.s32 4, %v680
          %v682 = vrot.slane %v638, %v681
          %684 = vbcast.lane.b32.xlu0 %v682, 256
          %v685 = vpop.permute.xlu0 %684
          %v686 = vlaneseq
          %v687 = vshrl.u32 %v686, 7
          %v688 = vsub.s32 5, %v687
          %v689 = vrot.slane %v638, %v688
          %691 = vbcast.lane.b32.xlu0 %v689, 256
          %v692 = vpop.permute.xlu0 %691
          %v693 = vlaneseq
          %v694 = vshrl.u32 %v693, 7
          %v695 = vsub.s32 6, %v694
          %v696 = vrot.slane %v638, %v695
          %698 = vbcast.lane.b32.xlu0 %v696, 256
          %v699 = vpop.permute.xlu0 %698
          %v700 = vlaneseq
          %v701 = vshrl.u32 %v700, 7
          %v702 = vsub.s32 7, %v701
          %v703 = vrot.slane %v638, %v702
          %705 = vbcast.lane.b32.xlu0 %v703, 256
          %v706 = vpop.permute.xlu0 %705
          %v707 = vlaneseq
          %v708 = vshrl.u32 %v707, 7
          %v709 = vsub.s32 0, %v708
          %v710 = vrot.slane %v642, %v709
          %712 = vbcast.lane.b32.xlu0 %v710, 256
          %v713 = vpop.permute.xlu0 %712
          %v714 = vlaneseq
          %v715 = vshrl.u32 %v714, 7
          %v716 = vsub.s32 1, %v715
          %v717 = vrot.slane %v642, %v716
          %719 = vbcast.lane.b32.xlu0 %v717, 256
          %v720 = vpop.permute.xlu0 %719
          %v721 = vlaneseq
          %v722 = vshrl.u32 %v721, 7
          %v723 = vsub.s32 2, %v722
          %v724 = vrot.slane %v642, %v723
          %726 = vbcast.lane.b32.xlu0 %v724, 256
          %v727 = vpop.permute.xlu0 %726
          %v728 = vlaneseq
          %v729 = vshrl.u32 %v728, 7
          %v730 = vsub.s32 3, %v729
          %v731 = vrot.slane %v642, %v730
          %733 = vbcast.lane.b32.xlu0 %v731, 256
          %v734 = vpop.permute.xlu0 %733
          %v735 = vlaneseq
          %v736 = vshrl.u32 %v735, 7
          %v737 = vsub.s32 4, %v736
          %v738 = vrot.slane %v642, %v737
          %740 = vbcast.lane.b32.xlu0 %v738, 256
          %v741 = vpop.permute.xlu0 %740
          %v742 = vlaneseq
          %v743 = vshrl.u32 %v742, 7
          %v744 = vsub.s32 5, %v743
          %v745 = vrot.slane %v642, %v744
          %747 = vbcast.lane.b32.xlu0 %v745, 256
          %v748 = vpop.permute.xlu0 %747
          %v749 = vlaneseq
          %v750 = vshrl.u32 %v749, 7
          %v751 = vsub.s32 6, %v750
          %v752 = vrot.slane %v642, %v751
          %754 = vbcast.lane.b32.xlu0 %v752, 256
          %v755 = vpop.permute.xlu0 %754
          %v756 = vlaneseq
          %v757 = vshrl.u32 %v756, 7
          %v758 = vsub.s32 7, %v757
          %v759 = vrot.slane %v642, %v758
          %761 = vbcast.lane.b32.xlu0 %v759, 256
          %v762 = vpop.permute.xlu0 %761
          %v763 = vlaneseq
          %v764 = vshrl.u32 %v763, 7
          %v765 = vsub.s32 0, %v764
          %v766 = vrot.slane %v646, %v765
          %768 = vbcast.lane.b32.xlu0 %v766, 256
          %v769 = vpop.permute.xlu0 %768
          %v770 = vlaneseq
          %v771 = vshrl.u32 %v770, 7
          %v772 = vsub.s32 1, %v771
          %v773 = vrot.slane %v646, %v772
          %775 = vbcast.lane.b32.xlu0 %v773, 256
          %v776 = vpop.permute.xlu0 %775
          %v777 = vlaneseq
          %v778 = vshrl.u32 %v777, 7
          %v779 = vsub.s32 2, %v778
          %v780 = vrot.slane %v646, %v779
          %782 = vbcast.lane.b32.xlu0 %v780, 256
          %v783 = vpop.permute.xlu0 %782
          %v784 = vlaneseq
          %v785 = vshrl.u32 %v784, 7
          %v786 = vsub.s32 3, %v785
          %v787 = vrot.slane %v646, %v786
          %789 = vbcast.lane.b32.xlu0 %v787, 256
          %v790 = vpop.permute.xlu0 %789
          %v791 = vlaneseq
          %v792 = vshrl.u32 %v791, 7
          %v793 = vsub.s32 4, %v792
          %v794 = vrot.slane %v646, %v793
          %796 = vbcast.lane.b32.xlu0 %v794, 256
          %v797 = vpop.permute.xlu0 %796
          %v798 = vlaneseq
          %v799 = vshrl.u32 %v798, 7
          %v800 = vsub.s32 5, %v799
          %v801 = vrot.slane %v646, %v800
          %803 = vbcast.lane.b32.xlu0 %v801, 256
          %v804 = vpop.permute.xlu0 %803
          %v805 = vlaneseq
          %v806 = vshrl.u32 %v805, 7
          %v807 = vsub.s32 6, %v806
          %v808 = vrot.slane %v646, %v807
          %810 = vbcast.lane.b32.xlu0 %v808, 256
          %v811 = vpop.permute.xlu0 %810
          %v812 = vlaneseq
          %v813 = vshrl.u32 %v812, 7
          %v814 = vsub.s32 7, %v813
          %v815 = vrot.slane %v646, %v814
          %817 = vbcast.lane.b32.xlu0 %v815, 256
          %v818 = vpop.permute.xlu0 %817
          %v819 = vlaneseq
          %v820 = vshrl.u32 %v819, 7
          %v821 = vsub.s32 0, %v820
          %v822 = vrot.slane %v650, %v821
          %824 = vbcast.lane.b32.xlu0 %v822, 256
          %v825 = vpop.permute.xlu0 %824
          %v826 = vlaneseq
          %v827 = vshrl.u32 %v826, 7
          %v828 = vsub.s32 1, %v827
          %v829 = vrot.slane %v650, %v828
          %831 = vbcast.lane.b32.xlu0 %v829, 256
          %v832 = vpop.permute.xlu0 %831
          %v833 = vlaneseq
          %v834 = vshrl.u32 %v833, 7
          %v835 = vsub.s32 2, %v834
          %v836 = vrot.slane %v650, %v835
          %838 = vbcast.lane.b32.xlu0 %v836, 256
          %v839 = vpop.permute.xlu0 %838
          %v840 = vlaneseq
          %v841 = vshrl.u32 %v840, 7
          %v842 = vsub.s32 3, %v841
          %v843 = vrot.slane %v650, %v842
          %845 = vbcast.lane.b32.xlu0 %v843, 256
          %v846 = vpop.permute.xlu0 %845
          %v847 = vlaneseq
          %v848 = vshrl.u32 %v847, 7
          %v849 = vsub.s32 4, %v848
          %v850 = vrot.slane %v650, %v849
          %852 = vbcast.lane.b32.xlu0 %v850, 256
          %v853 = vpop.permute.xlu0 %852
          %v854 = vlaneseq
          %v855 = vshrl.u32 %v854, 7
          %v856 = vsub.s32 5, %v855
          %v857 = vrot.slane %v650, %v856
          %859 = vbcast.lane.b32.xlu0 %v857, 256
          %v860 = vpop.permute.xlu0 %859
          %v861 = vlaneseq
          %v862 = vshrl.u32 %v861, 7
          %v863 = vsub.s32 6, %v862
          %v864 = vrot.slane %v650, %v863
          %866 = vbcast.lane.b32.xlu0 %v864, 256
          %v867 = vpop.permute.xlu0 %866
          %v868 = vlaneseq
          %v869 = vshrl.u32 %v868, 7
          %v870 = vsub.s32 7, %v869
          %v871 = vrot.slane %v650, %v870
          %873 = vbcast.lane.b32.xlu0 %v871, 256
          %v874 = vpop.permute.xlu0 %873
          %v907 = vmul.f32 %v552, %v657
          %v908 = vmul.f32 %v552, %v664
          %v909 = vmul.f32 %v552, %v671
          %v910 = vmul.f32 %v552, %v678
          %v911 = vmul.f32 %v552, %v685
          %v912 = vmul.f32 %v552, %v692
          %v913 = vmul.f32 %v552, %v699
          %v914 = vmul.f32 %v552, %v706
          %v915 = vmul.f32 %v552, %v713
          %v916 = vmul.f32 %v552, %v720
          %v917 = vmul.f32 %v552, %v727
          %v918 = vmul.f32 %v552, %v734
          %v919 = vmul.f32 %v552, %v741
          %v920 = vmul.f32 %v552, %v748
          %v921 = vmul.f32 %v552, %v755
          %v922 = vmul.f32 %v552, %v762
          %v923 = vmul.f32 %v552, %v769
          %v924 = vmul.f32 %v552, %v776
          %v925 = vmul.f32 %v552, %v783
          %v926 = vmul.f32 %v552, %v790
          %v927 = vmul.f32 %v552, %v797
          %v928 = vmul.f32 %v552, %v804
          %v929 = vmul.f32 %v552, %v811
          %v930 = vmul.f32 %v552, %v818
          %v931 = vmul.f32 %v552, %v825
          %v932 = vmul.f32 %v552, %v832
          %v933 = vmul.f32 %v552, %v839
          %v934 = vmul.f32 %v552, %v846
          %v935 = vmul.f32 %v552, %v853
          %v936 = vmul.f32 %v552, %v860
          %v937 = vmul.f32 %v552, %v867
          %v938 = vmul.f32 %v552, %v874
          %v939 = vmul.f32 %v588, %v657
          %v940 = vmul.f32 %v588, %v664
          %v941 = vmul.f32 %v588, %v671
          %v942 = vmul.f32 %v588, %v678
          %v943 = vmul.f32 %v588, %v685
          %v944 = vmul.f32 %v588, %v692
          %v945 = vmul.f32 %v588, %v699
          %v946 = vmul.f32 %v588, %v706
          %v947 = vmul.f32 %v588, %v713
          %v948 = vmul.f32 %v588, %v720
          %v949 = vmul.f32 %v588, %v727
          %v950 = vmul.f32 %v588, %v734
          %v951 = vmul.f32 %v588, %v741
          %v952 = vmul.f32 %v588, %v748
          %v953 = vmul.f32 %v588, %v755
          %v954 = vmul.f32 %v588, %v762
          %v955 = vmul.f32 %v588, %v769
          %v956 = vmul.f32 %v588, %v776
          %v957 = vmul.f32 %v588, %v783
          %v958 = vmul.f32 %v588, %v790
          %v959 = vmul.f32 %v588, %v797
          %v960 = vmul.f32 %v588, %v804
          %v961 = vmul.f32 %v588, %v811
          %v962 = vmul.f32 %v588, %v818
          %v963 = vmul.f32 %v588, %v825
          %v964 = vmul.f32 %v588, %v832
          %v965 = vmul.f32 %v588, %v839
          %v966 = vmul.f32 %v588, %v846
          %v967 = vmul.f32 %v588, %v853
          %v968 = vmul.f32 %v588, %v860
          %v969 = vmul.f32 %v588, %v867
          %v970 = vmul.f32 %v588, %v874
          %v1035 = vrot.slane %v908, 7
          %vm1036 = vcmask 1041409
          %v1037 = vsel %vm1036, %v1035, %v907
          %v1038 = vrot.slane %v909, 6
          %vm1039 = vcmask 1042434
          %v1040 = vsel %vm1039, %v1038, %v1037
          %v1041 = vrot.slane %v910, 5
          %vm1042 = vcmask 1043459
          %v1043 = vsel %vm1042, %v1041, %v1040
          %v1044 = vrot.slane %v911, 4
          %vm1045 = vcmask 1044484
          %v1046 = vsel %vm1045, %v1044, %v1043
          %v1047 = vrot.slane %v912, 3
          %vm1048 = vcmask 1045509
          %v1049 = vsel %vm1048, %v1047, %v1046
          %v1050 = vrot.slane %v913, 2
          %vm1051 = vcmask 1046534
          %v1052 = vsel %vm1051, %v1050, %v1049
          %v1053 = vrot.slane %v914, 1
          %vm1054 = vcmask 1047559
          %v1055 = vsel %vm1054, %v1053, %v1052
          %v1056 = vrot.slane %v916, 7
          %v1057 = vsel %vm1036, %v1056, %v915
          %v1058 = vrot.slane %v917, 6
          %v1059 = vsel %vm1039, %v1058, %v1057
          %v1060 = vrot.slane %v918, 5
          %v1061 = vsel %vm1042, %v1060, %v1059
          %v1062 = vrot.slane %v919, 4
          %v1063 = vsel %vm1045, %v1062, %v1061
          %v1064 = vrot.slane %v920, 3
          %v1065 = vsel %vm1048, %v1064, %v1063
          %v1066 = vrot.slane %v921, 2
          %v1067 = vsel %vm1051, %v1066, %v1065
          %v1068 = vrot.slane %v922, 1
          %v1069 = vsel %vm1054, %v1068, %v1067
          %v1070 = vrot.slane %v924, 7
          %v1071 = vsel %vm1036, %v1070, %v923
          %v1072 = vrot.slane %v925, 6
          %v1073 = vsel %vm1039, %v1072, %v1071
          %v1074 = vrot.slane %v926, 5
          %v1075 = vsel %vm1042, %v1074, %v1073
          %v1076 = vrot.slane %v927, 4
          %v1077 = vsel %vm1045, %v1076, %v1075
          %v1078 = vrot.slane %v928, 3
          %v1079 = vsel %vm1048, %v1078, %v1077
          %v1080 = vrot.slane %v929, 2
          %v1081 = vsel %vm1051, %v1080, %v1079
          %v1082 = vrot.slane %v930, 1
          %v1083 = vsel %vm1054, %v1082, %v1081
          %v1084 = vrot.slane %v932, 7
          %v1085 = vsel %vm1036, %v1084, %v931
          %v1086 = vrot.slane %v933, 6
          %v1087 = vsel %vm1039, %v1086, %v1085
          %v1088 = vrot.slane %v934, 5
          %v1089 = vsel %vm1042, %v1088, %v1087
          %v1090 = vrot.slane %v935, 4
          %v1091 = vsel %vm1045, %v1090, %v1089
          %v1092 = vrot.slane %v936, 3
          %v1093 = vsel %vm1048, %v1092, %v1091
          %v1094 = vrot.slane %v937, 2
          %v1095 = vsel %vm1051, %v1094, %v1093
          %v1096 = vrot.slane %v938, 1
          %v1097 = vsel %vm1054, %v1096, %v1095
          %v1098 = vrot.slane %v940, 7
          %v1099 = vsel %vm1036, %v1098, %v939
          %v1100 = vrot.slane %v941, 6
          %v1101 = vsel %vm1039, %v1100, %v1099
          %v1102 = vrot.slane %v942, 5
          %v1103 = vsel %vm1042, %v1102, %v1101
          %v1104 = vrot.slane %v943, 4
          %v1105 = vsel %vm1045, %v1104, %v1103
          %v1106 = vrot.slane %v944, 3
          %v1107 = vsel %vm1048, %v1106, %v1105
          %v1108 = vrot.slane %v945, 2
          %v1109 = vsel %vm1051, %v1108, %v1107
          %v1110 = vrot.slane %v946, 1
          %v1111 = vsel %vm1054, %v1110, %v1109
          %v1112 = vrot.slane %v948, 7
          %v1113 = vsel %vm1036, %v1112, %v947
          %v1114 = vrot.slane %v949, 6
          %v1115 = vsel %vm1039, %v1114, %v1113
          %v1116 = vrot.slane %v950, 5
          %v1117 = vsel %vm1042, %v1116, %v1115
          %v1118 = vrot.slane %v951, 4
          %v1119 = vsel %vm1045, %v1118, %v1117
          %v1120 = vrot.slane %v952, 3
          %v1121 = vsel %vm1048, %v1120, %v1119
          %v1122 = vrot.slane %v953, 2
          %v1123 = vsel %vm1051, %v1122, %v1121
          %v1124 = vrot.slane %v954, 1
          %v1125 = vsel %vm1054, %v1124, %v1123
          %v1126 = vrot.slane %v956, 7
          %v1127 = vsel %vm1036, %v1126, %v955
          %v1128 = vrot.slane %v957, 6
          %v1129 = vsel %vm1039, %v1128, %v1127
          %v1130 = vrot.slane %v958, 5
          %v1131 = vsel %vm1042, %v1130, %v1129
          %v1132 = vrot.slane %v959, 4
          %v1133 = vsel %vm1045, %v1132, %v1131
          %v1134 = vrot.slane %v960, 3
          %v1135 = vsel %vm1048, %v1134, %v1133
          %v1136 = vrot.slane %v961, 2
          %v1137 = vsel %vm1051, %v1136, %v1135
          %v1138 = vrot.slane %v962, 1
          %v1139 = vsel %vm1054, %v1138, %v1137
          %v1140 = vrot.slane %v964, 7
          %v1141 = vsel %vm1036, %v1140, %v963
          %v1142 = vrot.slane %v965, 6
          %v1143 = vsel %vm1039, %v1142, %v1141
          %v1144 = vrot.slane %v966, 5
          %v1145 = vsel %vm1042, %v1144, %v1143
          %v1146 = vrot.slane %v967, 4
          %v1147 = vsel %vm1045, %v1146, %v1145
          %v1148 = vrot.slane %v968, 3
          %v1149 = vsel %vm1048, %v1148, %v1147
          %v1150 = vrot.slane %v969, 2
          %v1151 = vsel %vm1051, %v1150, %v1149
          %v1152 = vrot.slane %v970, 1
          %v1153 = vsel %vm1054, %v1152, %v1151
          %1154 = vset.pattern.permute.xlu0 0
          %1155 = vperm.xlu0 %1154, %v1055
          %v1156 = vpop.permute.xlu0 %1155
          %1157 = vset.pattern.permute.xlu0 0
          %1158 = vperm.xlu0 %1157, %v1069
          %v1159 = vpop.permute.xlu0 %1158
          %1160 = vset.pattern.permute.xlu0 0
          %1161 = vperm.xlu0 %1160, %v1083
          %v1162 = vpop.permute.xlu0 %1161
          %1163 = vset.pattern.permute.xlu0 0
          %1164 = vperm.xlu0 %1163, %v1097
          %v1165 = vpop.permute.xlu0 %1164
          %1166 = vset.pattern.permute.xlu0 0
          %1167 = vperm.xlu0 %1166, %v1111
          %v1168 = vpop.permute.xlu0 %1167
          %1169 = vset.pattern.permute.xlu0 0
          %1170 = vperm.xlu0 %1169, %v1125
          %v1171 = vpop.permute.xlu0 %1170
          %1172 = vset.pattern.permute.xlu0 0
          %1173 = vperm.xlu0 %1172, %v1139
          %v1174 = vpop.permute.xlu0 %1173
          %1175 = vset.pattern.permute.xlu0 0
          %1176 = vperm.xlu0 %1175, %v1153
          %v1177 = vpop.permute.xlu0 %1176
          %v1178 = vlaneseq
          %v1179 = vand.u32 %v1178, 127
          %v1180 = vlaneseq
          %v1181 = vshrl.u32 %v1180, 7
          %v1182 = vsub.s32 %v1179, %v1181
          %v1183 = vrot.slane %v1156, %v1182
          %v1184 = vadd.s32 %v1179, 4294967288
          %v1185 = vlaneseq
          %v1186 = vshrl.u32 %v1185, 7
          %v1187 = vsub.s32 %v1184, %v1186
          %v1188 = vrot.slane %v1159, %v1187
          %vm1189 = vcmask 130112
          %v1190 = vsel %vm1189, %v1188, %v1183
          %v1191 = vadd.s32 %v1179, 4294967280
          %v1192 = vlaneseq
          %v1193 = vshrl.u32 %v1192, 7
          %v1194 = vsub.s32 %v1191, %v1193
          %v1195 = vrot.slane %v1162, %v1194
          %vm1196 = vcmask 195712
          %v1197 = vsel %vm1196, %v1195, %v1190
          %v1198 = vadd.s32 %v1179, 4294967272
          %v1199 = vlaneseq
          %v1200 = vshrl.u32 %v1199, 7
          %v1201 = vsub.s32 %v1198, %v1200
          %v1202 = vrot.slane %v1165, %v1201
          %vm1203 = vcmask 261312
          %v1204 = vsel %vm1203, %v1202, %v1197
          %v1205 = vlaneseq
          %v1206 = vshrl.u32 %v1205, 7
          %v1207 = vsub.s32 %v1179, %v1206
          %v1208 = vrot.slane %v1168, %v1207
          %v1209 = vlaneseq
          %v1210 = vshrl.u32 %v1209, 7
          %v1211 = vsub.s32 %v1184, %v1210
          %v1212 = vrot.slane %v1171, %v1211
          %v1213 = vsel %vm1189, %v1212, %v1208
          %v1214 = vlaneseq
          %v1215 = vshrl.u32 %v1214, 7
          %v1216 = vsub.s32 %v1191, %v1215
          %v1217 = vrot.slane %v1174, %v1216
          %v1218 = vsel %vm1196, %v1217, %v1213
          %v1219 = vlaneseq
          %v1220 = vshrl.u32 %v1219, 7
          %v1221 = vsub.s32 %v1198, %v1220
          %v1222 = vrot.slane %v1177, %v1221
          %v1223 = vsel %vm1203, %v1222, %v1218
          %v1224 = vsel %vm1036, %v1223, %v1204
          %v1226 = vadd.f32 %v629, %v1224
          %v1227 = vld [vmem:[#allocation6 + $0x1] sm:$0x1]
          %v1228 = vlaneseq
          %v1229 = vshrl.u32 %v1228, 7
          %v1230 = vsub.s32 0, %v1229
          %v1231 = vrot.slane %v1227, %v1230
          %1234 = vbcast.lane.b32.xlu0 %v1231, 256
          %v1235 = vpop.permute.xlu0 %1234
          %s1237 = sor.u32 256, 8
          %1238 = vbcast.lane.b32.xlu0 %v1231, %s1237
          %v1239 = vpop.permute.xlu0 %1238
          %s1241 = sor.u32 256, 16
          %1242 = vbcast.lane.b32.xlu0 %v1231, %s1241
          %v1243 = vpop.permute.xlu0 %1242
          %s1245 = sor.u32 256, 24
          %1246 = vbcast.lane.b32.xlu0 %v1231, %s1245
          %v1247 = vpop.permute.xlu0 %1246
          %v1248 = vlaneseq
          %v1249 = vshrl.u32 %v1248, 7
          %v1250 = vsub.s32 0, %v1249
          %v1251 = vrot.slane %v1235, %v1250
          %1253 = vbcast.lane.b32.xlu0 %v1251, 256
          %v1254 = vpop.permute.xlu0 %1253
          %v1255 = vlaneseq
          %v1256 = vshrl.u32 %v1255, 7
          %v1257 = vsub.s32 1, %v1256
          %v1258 = vrot.slane %v1235, %v1257
          %1260 = vbcast.lane.b32.xlu0 %v1258, 256
          %v1261 = vpop.permute.xlu0 %1260
          %v1262 = vlaneseq
          %v1263 = vshrl.u32 %v1262, 7
          %v1264 = vsub.s32 2, %v1263
          %v1265 = vrot.slane %v1235, %v1264
          %1267 = vbcast.lane.b32.xlu0 %v1265, 256
          %v1268 = vpop.permute.xlu0 %1267
          %v1269 = vlaneseq
          %v1270 = vshrl.u32 %v1269, 7
          %v1271 = vsub.s32 3, %v1270
          %v1272 = vrot.slane %v1235, %v1271
          %1274 = vbcast.lane.b32.xlu0 %v1272, 256
          %v1275 = vpop.permute.xlu0 %1274
          %v1276 = vlaneseq
          %v1277 = vshrl.u32 %v1276, 7
          %v1278 = vsub.s32 4, %v1277
          %v1279 = vrot.slane %v1235, %v1278
          %1281 = vbcast.lane.b32.xlu0 %v1279, 256
          %v1282 = vpop.permute.xlu0 %1281
          %v1283 = vlaneseq
          %v1284 = vshrl.u32 %v1283, 7
          %v1285 = vsub.s32 5, %v1284
          %v1286 = vrot.slane %v1235, %v1285
          %1288 = vbcast.lane.b32.xlu0 %v1286, 256
          %v1289 = vpop.permute.xlu0 %1288
          %v1290 = vlaneseq
          %v1291 = vshrl.u32 %v1290, 7
          %v1292 = vsub.s32 6, %v1291
          %v1293 = vrot.slane %v1235, %v1292
          %1295 = vbcast.lane.b32.xlu0 %v1293, 256
          %v1296 = vpop.permute.xlu0 %1295
          %v1297 = vlaneseq
          %v1298 = vshrl.u32 %v1297, 7
          %v1299 = vsub.s32 7, %v1298
          %v1300 = vrot.slane %v1235, %v1299
          %1302 = vbcast.lane.b32.xlu0 %v1300, 256
          %v1303 = vpop.permute.xlu0 %1302
          %v1304 = vlaneseq
          %v1305 = vshrl.u32 %v1304, 7
          %v1306 = vsub.s32 0, %v1305
          %v1307 = vrot.slane %v1239, %v1306
          %1309 = vbcast.lane.b32.xlu0 %v1307, 256
          %v1310 = vpop.permute.xlu0 %1309
          %v1311 = vlaneseq
          %v1312 = vshrl.u32 %v1311, 7
          %v1313 = vsub.s32 1, %v1312
          %v1314 = vrot.slane %v1239, %v1313
          %1316 = vbcast.lane.b32.xlu0 %v1314, 256
          %v1317 = vpop.permute.xlu0 %1316
          %v1318 = vlaneseq
          %v1319 = vshrl.u32 %v1318, 7
          %v1320 = vsub.s32 2, %v1319
          %v1321 = vrot.slane %v1239, %v1320
          %1323 = vbcast.lane.b32.xlu0 %v1321, 256
          %v1324 = vpop.permute.xlu0 %1323
          %v1325 = vlaneseq
          %v1326 = vshrl.u32 %v1325, 7
          %v1327 = vsub.s32 3, %v1326
          %v1328 = vrot.slane %v1239, %v1327
          %1330 = vbcast.lane.b32.xlu0 %v1328, 256
          %v1331 = vpop.permute.xlu0 %1330
          %v1332 = vlaneseq
          %v1333 = vshrl.u32 %v1332, 7
          %v1334 = vsub.s32 4, %v1333
          %v1335 = vrot.slane %v1239, %v1334
          %1337 = vbcast.lane.b32.xlu0 %v1335, 256
          %v1338 = vpop.permute.xlu0 %1337
          %v1339 = vlaneseq
          %v1340 = vshrl.u32 %v1339, 7
          %v1341 = vsub.s32 5, %v1340
          %v1342 = vrot.slane %v1239, %v1341
          %1344 = vbcast.lane.b32.xlu0 %v1342, 256
          %v1345 = vpop.permute.xlu0 %1344
          %v1346 = vlaneseq
          %v1347 = vshrl.u32 %v1346, 7
          %v1348 = vsub.s32 6, %v1347
          %v1349 = vrot.slane %v1239, %v1348
          %1351 = vbcast.lane.b32.xlu0 %v1349, 256
          %v1352 = vpop.permute.xlu0 %1351
          %v1353 = vlaneseq
          %v1354 = vshrl.u32 %v1353, 7
          %v1355 = vsub.s32 7, %v1354
          %v1356 = vrot.slane %v1239, %v1355
          %1358 = vbcast.lane.b32.xlu0 %v1356, 256
          %v1359 = vpop.permute.xlu0 %1358
          %v1360 = vlaneseq
          %v1361 = vshrl.u32 %v1360, 7
          %v1362 = vsub.s32 0, %v1361
          %v1363 = vrot.slane %v1243, %v1362
          %1365 = vbcast.lane.b32.xlu0 %v1363, 256
          %v1366 = vpop.permute.xlu0 %1365
          %v1367 = vlaneseq
          %v1368 = vshrl.u32 %v1367, 7
          %v1369 = vsub.s32 1, %v1368
          %v1370 = vrot.slane %v1243, %v1369
          %1372 = vbcast.lane.b32.xlu0 %v1370, 256
          %v1373 = vpop.permute.xlu0 %1372
          %v1374 = vlaneseq
          %v1375 = vshrl.u32 %v1374, 7
          %v1376 = vsub.s32 2, %v1375
          %v1377 = vrot.slane %v1243, %v1376
          %1379 = vbcast.lane.b32.xlu0 %v1377, 256
          %v1380 = vpop.permute.xlu0 %1379
          %v1381 = vlaneseq
          %v1382 = vshrl.u32 %v1381, 7
          %v1383 = vsub.s32 3, %v1382
          %v1384 = vrot.slane %v1243, %v1383
          %1386 = vbcast.lane.b32.xlu0 %v1384, 256
          %v1387 = vpop.permute.xlu0 %1386
          %v1388 = vlaneseq
          %v1389 = vshrl.u32 %v1388, 7
          %v1390 = vsub.s32 4, %v1389
          %v1391 = vrot.slane %v1243, %v1390
          %1393 = vbcast.lane.b32.xlu0 %v1391, 256
          %v1394 = vpop.permute.xlu0 %1393
          %v1395 = vlaneseq
          %v1396 = vshrl.u32 %v1395, 7
          %v1397 = vsub.s32 5, %v1396
          %v1398 = vrot.slane %v1243, %v1397
          %1400 = vbcast.lane.b32.xlu0 %v1398, 256
          %v1401 = vpop.permute.xlu0 %1400
          %v1402 = vlaneseq
          %v1403 = vshrl.u32 %v1402, 7
          %v1404 = vsub.s32 6, %v1403
          %v1405 = vrot.slane %v1243, %v1404
          %1407 = vbcast.lane.b32.xlu0 %v1405, 256
          %v1408 = vpop.permute.xlu0 %1407
          %v1409 = vlaneseq
          %v1410 = vshrl.u32 %v1409, 7
          %v1411 = vsub.s32 7, %v1410
          %v1412 = vrot.slane %v1243, %v1411
          %1414 = vbcast.lane.b32.xlu0 %v1412, 256
          %v1415 = vpop.permute.xlu0 %1414
          %v1416 = vlaneseq
          %v1417 = vshrl.u32 %v1416, 7
          %v1418 = vsub.s32 0, %v1417
          %v1419 = vrot.slane %v1247, %v1418
          %1421 = vbcast.lane.b32.xlu0 %v1419, 256
          %v1422 = vpop.permute.xlu0 %1421
          %v1423 = vlaneseq
          %v1424 = vshrl.u32 %v1423, 7
          %v1425 = vsub.s32 1, %v1424
          %v1426 = vrot.slane %v1247, %v1425
          %1428 = vbcast.lane.b32.xlu0 %v1426, 256
          %v1429 = vpop.permute.xlu0 %1428
          %v1430 = vlaneseq
          %v1431 = vshrl.u32 %v1430, 7
          %v1432 = vsub.s32 2, %v1431
          %v1433 = vrot.slane %v1247, %v1432
          %1435 = vbcast.lane.b32.xlu0 %v1433, 256
          %v1436 = vpop.permute.xlu0 %1435
          %v1437 = vlaneseq
          %v1438 = vshrl.u32 %v1437, 7
          %v1439 = vsub.s32 3, %v1438
          %v1440 = vrot.slane %v1247, %v1439
          %1442 = vbcast.lane.b32.xlu0 %v1440, 256
          %v1443 = vpop.permute.xlu0 %1442
          %v1444 = vlaneseq
          %v1445 = vshrl.u32 %v1444, 7
          %v1446 = vsub.s32 4, %v1445
          %v1447 = vrot.slane %v1247, %v1446
          %1449 = vbcast.lane.b32.xlu0 %v1447, 256
          %v1450 = vpop.permute.xlu0 %1449
          %v1451 = vlaneseq
          %v1452 = vshrl.u32 %v1451, 7
          %v1453 = vsub.s32 5, %v1452
          %v1454 = vrot.slane %v1247, %v1453
          %1456 = vbcast.lane.b32.xlu0 %v1454, 256
          %v1457 = vpop.permute.xlu0 %1456
          %v1458 = vlaneseq
          %v1459 = vshrl.u32 %v1458, 7
          %v1460 = vsub.s32 6, %v1459
          %v1461 = vrot.slane %v1247, %v1460
          %1463 = vbcast.lane.b32.xlu0 %v1461, 256
          %v1464 = vpop.permute.xlu0 %1463
          %v1465 = vlaneseq
          %v1466 = vshrl.u32 %v1465, 7
          %v1467 = vsub.s32 7, %v1466
          %v1468 = vrot.slane %v1247, %v1467
          %1470 = vbcast.lane.b32.xlu0 %v1468, 256
          %v1471 = vpop.permute.xlu0 %1470
          %v1504 = vmul.f32 %v555, %v1254
          %v1505 = vmul.f32 %v555, %v1261
          %v1506 = vmul.f32 %v555, %v1268
          %v1507 = vmul.f32 %v555, %v1275
          %v1508 = vmul.f32 %v555, %v1282
          %v1509 = vmul.f32 %v555, %v1289
          %v1510 = vmul.f32 %v555, %v1296
          %v1511 = vmul.f32 %v555, %v1303
          %v1512 = vmul.f32 %v555, %v1310
          %v1513 = vmul.f32 %v555, %v1317
          %v1514 = vmul.f32 %v555, %v1324
          %v1515 = vmul.f32 %v555, %v1331
          %v1516 = vmul.f32 %v555, %v1338
          %v1517 = vmul.f32 %v555, %v1345
          %v1518 = vmul.f32 %v555, %v1352
          %v1519 = vmul.f32 %v555, %v1359
          %v1520 = vmul.f32 %v555, %v1366
          %v1521 = vmul.f32 %v555, %v1373
          %v1522 = vmul.f32 %v555, %v1380
          %v1523 = vmul.f32 %v555, %v1387
          %v1524 = vmul.f32 %v555, %v1394
          %v1525 = vmul.f32 %v555, %v1401
          %v1526 = vmul.f32 %v555, %v1408
          %v1527 = vmul.f32 %v555, %v1415
          %v1528 = vmul.f32 %v555, %v1422
          %v1529 = vmul.f32 %v555, %v1429
          %v1530 = vmul.f32 %v555, %v1436
          %v1531 = vmul.f32 %v555, %v1443
          %v1532 = vmul.f32 %v555, %v1450
          %v1533 = vmul.f32 %v555, %v1457
          %v1534 = vmul.f32 %v555, %v1464
          %v1535 = vmul.f32 %v555, %v1471
          %v1536 = vmul.f32 %v591, %v1254
          %v1537 = vmul.f32 %v591, %v1261
          %v1538 = vmul.f32 %v591, %v1268
          %v1539 = vmul.f32 %v591, %v1275
          %v1540 = vmul.f32 %v591, %v1282
          %v1541 = vmul.f32 %v591, %v1289
          %v1542 = vmul.f32 %v591, %v1296
          %v1543 = vmul.f32 %v591, %v1303
          %v1544 = vmul.f32 %v591, %v1310
          %v1545 = vmul.f32 %v591, %v1317
          %v1546 = vmul.f32 %v591, %v1324
          %v1547 = vmul.f32 %v591, %v1331
          %v1548 = vmul.f32 %v591, %v1338
          %v1549 = vmul.f32 %v591, %v1345
          %v1550 = vmul.f32 %v591, %v1352
          %v1551 = vmul.f32 %v591, %v1359
          %v1552 = vmul.f32 %v591, %v1366
          %v1553 = vmul.f32 %v591, %v1373
          %v1554 = vmul.f32 %v591, %v1380
          %v1555 = vmul.f32 %v591, %v1387
          %v1556 = vmul.f32 %v591, %v1394
          %v1557 = vmul.f32 %v591, %v1401
          %v1558 = vmul.f32 %v591, %v1408
          %v1559 = vmul.f32 %v591, %v1415
          %v1560 = vmul.f32 %v591, %v1422
          %v1561 = vmul.f32 %v591, %v1429
          %v1562 = vmul.f32 %v591, %v1436
          %v1563 = vmul.f32 %v591, %v1443
          %v1564 = vmul.f32 %v591, %v1450
          %v1565 = vmul.f32 %v591, %v1457
          %v1566 = vmul.f32 %v591, %v1464
          %v1567 = vmul.f32 %v591, %v1471
          %v1632 = vrot.slane %v1505, 7
          %v1633 = vsel %vm1036, %v1632, %v1504
          %v1634 = vrot.slane %v1506, 6
          %v1635 = vsel %vm1039, %v1634, %v1633
          %v1636 = vrot.slane %v1507, 5
          %v1637 = vsel %vm1042, %v1636, %v1635
          %v1638 = vrot.slane %v1508, 4
          %v1639 = vsel %vm1045, %v1638, %v1637
          %v1640 = vrot.slane %v1509, 3
          %v1641 = vsel %vm1048, %v1640, %v1639
          %v1642 = vrot.slane %v1510, 2
          %v1643 = vsel %vm1051, %v1642, %v1641
          %v1644 = vrot.slane %v1511, 1
          %v1645 = vsel %vm1054, %v1644, %v1643
          %v1646 = vrot.slane %v1513, 7
          %v1647 = vsel %vm1036, %v1646, %v1512
          %v1648 = vrot.slane %v1514, 6
          %v1649 = vsel %vm1039, %v1648, %v1647
          %v1650 = vrot.slane %v1515, 5
          %v1651 = vsel %vm1042, %v1650, %v1649
          %v1652 = vrot.slane %v1516, 4
          %v1653 = vsel %vm1045, %v1652, %v1651
          %v1654 = vrot.slane %v1517, 3
          %v1655 = vsel %vm1048, %v1654, %v1653
          %v1656 = vrot.slane %v1518, 2
          %v1657 = vsel %vm1051, %v1656, %v1655
          %v1658 = vrot.slane %v1519, 1
          %v1659 = vsel %vm1054, %v1658, %v1657
          %v1660 = vrot.slane %v1521, 7
          %v1661 = vsel %vm1036, %v1660, %v1520
          %v1662 = vrot.slane %v1522, 6
          %v1663 = vsel %vm1039, %v1662, %v1661
          %v1664 = vrot.slane %v1523, 5
          %v1665 = vsel %vm1042, %v1664, %v1663
          %v1666 = vrot.slane %v1524, 4
          %v1667 = vsel %vm1045, %v1666, %v1665
          %v1668 = vrot.slane %v1525, 3
          %v1669 = vsel %vm1048, %v1668, %v1667
          %v1670 = vrot.slane %v1526, 2
          %v1671 = vsel %vm1051, %v1670, %v1669
          %v1672 = vrot.slane %v1527, 1
          %v1673 = vsel %vm1054, %v1672, %v1671
          %v1674 = vrot.slane %v1529, 7
          %v1675 = vsel %vm1036, %v1674, %v1528
          %v1676 = vrot.slane %v1530, 6
          %v1677 = vsel %vm1039, %v1676, %v1675
          %v1678 = vrot.slane %v1531, 5
          %v1679 = vsel %vm1042, %v1678, %v1677
          %v1680 = vrot.slane %v1532, 4
          %v1681 = vsel %vm1045, %v1680, %v1679
          %v1682 = vrot.slane %v1533, 3
          %v1683 = vsel %vm1048, %v1682, %v1681
          %v1684 = vrot.slane %v1534, 2
          %v1685 = vsel %vm1051, %v1684, %v1683
          %v1686 = vrot.slane %v1535, 1
          %v1687 = vsel %vm1054, %v1686, %v1685
          %v1688 = vrot.slane %v1537, 7
          %v1689 = vsel %vm1036, %v1688, %v1536
          %v1690 = vrot.slane %v1538, 6
          %v1691 = vsel %vm1039, %v1690, %v1689
          %v1692 = vrot.slane %v1539, 5
          %v1693 = vsel %vm1042, %v1692, %v1691
          %v1694 = vrot.slane %v1540, 4
          %v1695 = vsel %vm1045, %v1694, %v1693
          %v1696 = vrot.slane %v1541, 3
          %v1697 = vsel %vm1048, %v1696, %v1695
          %v1698 = vrot.slane %v1542, 2
          %v1699 = vsel %vm1051, %v1698, %v1697
          %v1700 = vrot.slane %v1543, 1
          %v1701 = vsel %vm1054, %v1700, %v1699
          %v1702 = vrot.slane %v1545, 7
          %v1703 = vsel %vm1036, %v1702, %v1544
          %v1704 = vrot.slane %v1546, 6
          %v1705 = vsel %vm1039, %v1704, %v1703
          %v1706 = vrot.slane %v1547, 5
          %v1707 = vsel %vm1042, %v1706, %v1705
          %v1708 = vrot.slane %v1548, 4
          %v1709 = vsel %vm1045, %v1708, %v1707
          %v1710 = vrot.slane %v1549, 3
          %v1711 = vsel %vm1048, %v1710, %v1709
          %v1712 = vrot.slane %v1550, 2
          %v1713 = vsel %vm1051, %v1712, %v1711
          %v1714 = vrot.slane %v1551, 1
          %v1715 = vsel %vm1054, %v1714, %v1713
          %v1716 = vrot.slane %v1553, 7
          %v1717 = vsel %vm1036, %v1716, %v1552
          %v1718 = vrot.slane %v1554, 6
          %v1719 = vsel %vm1039, %v1718, %v1717
          %v1720 = vrot.slane %v1555, 5
          %v1721 = vsel %vm1042, %v1720, %v1719
          %v1722 = vrot.slane %v1556, 4
          %v1723 = vsel %vm1045, %v1722, %v1721
          %v1724 = vrot.slane %v1557, 3
          %v1725 = vsel %vm1048, %v1724, %v1723
          %v1726 = vrot.slane %v1558, 2
          %v1727 = vsel %vm1051, %v1726, %v1725
          %v1728 = vrot.slane %v1559, 1
          %v1729 = vsel %vm1054, %v1728, %v1727
          %v1730 = vrot.slane %v1561, 7
          %v1731 = vsel %vm1036, %v1730, %v1560
          %v1732 = vrot.slane %v1562, 6
          %v1733 = vsel %vm1039, %v1732, %v1731
          %v1734 = vrot.slane %v1563, 5
          %v1735 = vsel %vm1042, %v1734, %v1733
          %v1736 = vrot.slane %v1564, 4
          %v1737 = vsel %vm1045, %v1736, %v1735
          %v1738 = vrot.slane %v1565, 3
          %v1739 = vsel %vm1048, %v1738, %v1737
          %v1740 = vrot.slane %v1566, 2
          %v1741 = vsel %vm1051, %v1740, %v1739
          %v1742 = vrot.slane %v1567, 1
          %v1743 = vsel %vm1054, %v1742, %v1741
          %1744 = vset.pattern.permute.xlu0 0
          %1745 = vperm.xlu0 %1744, %v1645
          %v1746 = vpop.permute.xlu0 %1745
          %1747 = vset.pattern.permute.xlu0 0
          %1748 = vperm.xlu0 %1747, %v1659
          %v1749 = vpop.permute.xlu0 %1748
          %1750 = vset.pattern.permute.xlu0 0
          %1751 = vperm.xlu0 %1750, %v1673
          %v1752 = vpop.permute.xlu0 %1751
          %1753 = vset.pattern.permute.xlu0 0
          %1754 = vperm.xlu0 %1753, %v1687
          %v1755 = vpop.permute.xlu0 %1754
          %1756 = vset.pattern.permute.xlu0 0
          %1757 = vperm.xlu0 %1756, %v1701
          %v1758 = vpop.permute.xlu0 %1757
          %1759 = vset.pattern.permute.xlu0 0
          %1760 = vperm.xlu0 %1759, %v1715
          %v1761 = vpop.permute.xlu0 %1760
          %1762 = vset.pattern.permute.xlu0 0
          %1763 = vperm.xlu0 %1762, %v1729
          %v1764 = vpop.permute.xlu0 %1763
          %1765 = vset.pattern.permute.xlu0 0
          %1766 = vperm.xlu0 %1765, %v1743
          %v1767 = vpop.permute.xlu0 %1766
          %v1768 = vlaneseq
          %v1769 = vshrl.u32 %v1768, 7
          %v1770 = vsub.s32 %v1179, %v1769
          %v1771 = vrot.slane %v1746, %v1770
          %v1772 = vlaneseq
          %v1773 = vshrl.u32 %v1772, 7
          %v1774 = vsub.s32 %v1184, %v1773
          %v1775 = vrot.slane %v1749, %v1774
          %v1776 = vsel %vm1189, %v1775, %v1771
          %v1777 = vlaneseq
          %v1778 = vshrl.u32 %v1777, 7
          %v1779 = vsub.s32 %v1191, %v1778
          %v1780 = vrot.slane %v1752, %v1779
          %v1781 = vsel %vm1196, %v1780, %v1776
          %v1782 = vlaneseq
          %v1783 = vshrl.u32 %v1782, 7
          %v1784 = vsub.s32 %v1198, %v1783
          %v1785 = vrot.slane %v1755, %v1784
          %v1786 = vsel %vm1203, %v1785, %v1781
          %v1787 = vlaneseq
          %v1788 = vshrl.u32 %v1787, 7
          %v1789 = vsub.s32 %v1179, %v1788
          %v1790 = vrot.slane %v1758, %v1789
          %v1791 = vlaneseq
          %v1792 = vshrl.u32 %v1791, 7
          %v1793 = vsub.s32 %v1184, %v1792
          %v1794 = vrot.slane %v1761, %v1793
          %v1795 = vsel %vm1189, %v1794, %v1790
          %v1796 = vlaneseq
          %v1797 = vshrl.u32 %v1796, 7
          %v1798 = vsub.s32 %v1191, %v1797
          %v1799 = vrot.slane %v1764, %v1798
          %v1800 = vsel %vm1196, %v1799, %v1795
          %v1801 = vlaneseq
          %v1802 = vshrl.u32 %v1801, 7
          %v1803 = vsub.s32 %v1198, %v1802
          %v1804 = vrot.slane %v1767, %v1803
          %v1805 = vsel %vm1203, %v1804, %v1800
          %v1806 = vsel %vm1036, %v1805, %v1786
          %v1808 = vadd.f32 %v1226, %v1806
          %v1809 = vld [vmem:[#allocation6 + $0x2] sm:$0x1]
          %v1810 = vlaneseq
          %v1811 = vshrl.u32 %v1810, 7
          %v1812 = vsub.s32 0, %v1811
          %v1813 = vrot.slane %v1809, %v1812
          %1816 = vbcast.lane.b32.xlu0 %v1813, 256
          %v1817 = vpop.permute.xlu0 %1816
          %s1819 = sor.u32 256, 8
          %1820 = vbcast.lane.b32.xlu0 %v1813, %s1819
          %v1821 = vpop.permute.xlu0 %1820
          %s1823 = sor.u32 256, 16
          %1824 = vbcast.lane.b32.xlu0 %v1813, %s1823
          %v1825 = vpop.permute.xlu0 %1824
          %s1827 = sor.u32 256, 24
          %1828 = vbcast.lane.b32.xlu0 %v1813, %s1827
          %v1829 = vpop.permute.xlu0 %1828
          %v1830 = vlaneseq
          %v1831 = vshrl.u32 %v1830, 7
          %v1832 = vsub.s32 0, %v1831
          %v1833 = vrot.slane %v1817, %v1832
          %1835 = vbcast.lane.b32.xlu0 %v1833, 256
          %v1836 = vpop.permute.xlu0 %1835
          %v1837 = vlaneseq
          %v1838 = vshrl.u32 %v1837, 7
          %v1839 = vsub.s32 1, %v1838
          %v1840 = vrot.slane %v1817, %v1839
          %1842 = vbcast.lane.b32.xlu0 %v1840, 256
          %v1843 = vpop.permute.xlu0 %1842
          %v1844 = vlaneseq
          %v1845 = vshrl.u32 %v1844, 7
          %v1846 = vsub.s32 2, %v1845
          %v1847 = vrot.slane %v1817, %v1846
          %1849 = vbcast.lane.b32.xlu0 %v1847, 256
          %v1850 = vpop.permute.xlu0 %1849
          %v1851 = vlaneseq
          %v1852 = vshrl.u32 %v1851, 7
          %v1853 = vsub.s32 3, %v1852
          %v1854 = vrot.slane %v1817, %v1853
          %1856 = vbcast.lane.b32.xlu0 %v1854, 256
          %v1857 = vpop.permute.xlu0 %1856
          %v1858 = vlaneseq
          %v1859 = vshrl.u32 %v1858, 7
          %v1860 = vsub.s32 4, %v1859
          %v1861 = vrot.slane %v1817, %v1860
          %1863 = vbcast.lane.b32.xlu0 %v1861, 256
          %v1864 = vpop.permute.xlu0 %1863
          %v1865 = vlaneseq
          %v1866 = vshrl.u32 %v1865, 7
          %v1867 = vsub.s32 5, %v1866
          %v1868 = vrot.slane %v1817, %v1867
          %1870 = vbcast.lane.b32.xlu0 %v1868, 256
          %v1871 = vpop.permute.xlu0 %1870
          %v1872 = vlaneseq
          %v1873 = vshrl.u32 %v1872, 7
          %v1874 = vsub.s32 6, %v1873
          %v1875 = vrot.slane %v1817, %v1874
          %1877 = vbcast.lane.b32.xlu0 %v1875, 256
          %v1878 = vpop.permute.xlu0 %1877
          %v1879 = vlaneseq
          %v1880 = vshrl.u32 %v1879, 7
          %v1881 = vsub.s32 7, %v1880
          %v1882 = vrot.slane %v1817, %v1881
          %1884 = vbcast.lane.b32.xlu0 %v1882, 256
          %v1885 = vpop.permute.xlu0 %1884
          %v1886 = vlaneseq
          %v1887 = vshrl.u32 %v1886, 7
          %v1888 = vsub.s32 0, %v1887
          %v1889 = vrot.slane %v1821, %v1888
          %1891 = vbcast.lane.b32.xlu0 %v1889, 256
          %v1892 = vpop.permute.xlu0 %1891
          %v1893 = vlaneseq
          %v1894 = vshrl.u32 %v1893, 7
          %v1895 = vsub.s32 1, %v1894
          %v1896 = vrot.slane %v1821, %v1895
          %1898 = vbcast.lane.b32.xlu0 %v1896, 256
          %v1899 = vpop.permute.xlu0 %1898
          %v1900 = vlaneseq
          %v1901 = vshrl.u32 %v1900, 7
          %v1902 = vsub.s32 2, %v1901
          %v1903 = vrot.slane %v1821, %v1902
          %1905 = vbcast.lane.b32.xlu0 %v1903, 256
          %v1906 = vpop.permute.xlu0 %1905
          %v1907 = vlaneseq
          %v1908 = vshrl.u32 %v1907, 7
          %v1909 = vsub.s32 3, %v1908
          %v1910 = vrot.slane %v1821, %v1909
          %1912 = vbcast.lane.b32.xlu0 %v1910, 256
          %v1913 = vpop.permute.xlu0 %1912
          %v1914 = vlaneseq
          %v1915 = vshrl.u32 %v1914, 7
          %v1916 = vsub.s32 4, %v1915
          %v1917 = vrot.slane %v1821, %v1916
          %1919 = vbcast.lane.b32.xlu0 %v1917, 256
          %v1920 = vpop.permute.xlu0 %1919
          %v1921 = vlaneseq
          %v1922 = vshrl.u32 %v1921, 7
          %v1923 = vsub.s32 5, %v1922
          %v1924 = vrot.slane %v1821, %v1923
          %1926 = vbcast.lane.b32.xlu0 %v1924, 256
          %v1927 = vpop.permute.xlu0 %1926
          %v1928 = vlaneseq
          %v1929 = vshrl.u32 %v1928, 7
          %v1930 = vsub.s32 6, %v1929
          %v1931 = vrot.slane %v1821, %v1930
          %1933 = vbcast.lane.b32.xlu0 %v1931, 256
          %v1934 = vpop.permute.xlu0 %1933
          %v1935 = vlaneseq
          %v1936 = vshrl.u32 %v1935, 7
          %v1937 = vsub.s32 7, %v1936
          %v1938 = vrot.slane %v1821, %v1937
          %1940 = vbcast.lane.b32.xlu0 %v1938, 256
          %v1941 = vpop.permute.xlu0 %1940
          %v1942 = vlaneseq
          %v1943 = vshrl.u32 %v1942, 7
          %v1944 = vsub.s32 0, %v1943
          %v1945 = vrot.slane %v1825, %v1944
          %1947 = vbcast.lane.b32.xlu0 %v1945, 256
          %v1948 = vpop.permute.xlu0 %1947
          %v1949 = vlaneseq
          %v1950 = vshrl.u32 %v1949, 7
          %v1951 = vsub.s32 1, %v1950
          %v1952 = vrot.slane %v1825, %v1951
          %1954 = vbcast.lane.b32.xlu0 %v1952, 256
          %v1955 = vpop.permute.xlu0 %1954
          %v1956 = vlaneseq
          %v1957 = vshrl.u32 %v1956, 7
          %v1958 = vsub.s32 2, %v1957
          %v1959 = vrot.slane %v1825, %v1958
          %1961 = vbcast.lane.b32.xlu0 %v1959, 256
          %v1962 = vpop.permute.xlu0 %1961
          %v1963 = vlaneseq
          %v1964 = vshrl.u32 %v1963, 7
          %v1965 = vsub.s32 3, %v1964
          %v1966 = vrot.slane %v1825, %v1965
          %1968 = vbcast.lane.b32.xlu0 %v1966, 256
          %v1969 = vpop.permute.xlu0 %1968
          %v1970 = vlaneseq
          %v1971 = vshrl.u32 %v1970, 7
          %v1972 = vsub.s32 4, %v1971
          %v1973 = vrot.slane %v1825, %v1972
          %1975 = vbcast.lane.b32.xlu0 %v1973, 256
          %v1976 = vpop.permute.xlu0 %1975
          %v1977 = vlaneseq
          %v1978 = vshrl.u32 %v1977, 7
          %v1979 = vsub.s32 5, %v1978
          %v1980 = vrot.slane %v1825, %v1979
          %1982 = vbcast.lane.b32.xlu0 %v1980, 256
          %v1983 = vpop.permute.xlu0 %1982
          %v1984 = vlaneseq
          %v1985 = vshrl.u32 %v1984, 7
          %v1986 = vsub.s32 6, %v1985
          %v1987 = vrot.slane %v1825, %v1986
          %1989 = vbcast.lane.b32.xlu0 %v1987, 256
          %v1990 = vpop.permute.xlu0 %1989
          %v1991 = vlaneseq
          %v1992 = vshrl.u32 %v1991, 7
          %v1993 = vsub.s32 7, %v1992
          %v1994 = vrot.slane %v1825, %v1993
          %1996 = vbcast.lane.b32.xlu0 %v1994, 256
          %v1997 = vpop.permute.xlu0 %1996
          %v1998 = vlaneseq
          %v1999 = vshrl.u32 %v1998, 7
          %v2000 = vsub.s32 0, %v1999
          %v2001 = vrot.slane %v1829, %v2000
          %2003 = vbcast.lane.b32.xlu0 %v2001, 256
          %v2004 = vpop.permute.xlu0 %2003
          %v2005 = vlaneseq
          %v2006 = vshrl.u32 %v2005, 7
          %v2007 = vsub.s32 1, %v2006
          %v2008 = vrot.slane %v1829, %v2007
          %2010 = vbcast.lane.b32.xlu0 %v2008, 256
          %v2011 = vpop.permute.xlu0 %2010
          %v2012 = vlaneseq
          %v2013 = vshrl.u32 %v2012, 7
          %v2014 = vsub.s32 2, %v2013
          %v2015 = vrot.slane %v1829, %v2014
          %2017 = vbcast.lane.b32.xlu0 %v2015, 256
          %v2018 = vpop.permute.xlu0 %2017
          %v2019 = vlaneseq
          %v2020 = vshrl.u32 %v2019, 7
          %v2021 = vsub.s32 3, %v2020
          %v2022 = vrot.slane %v1829, %v2021
          %2024 = vbcast.lane.b32.xlu0 %v2022, 256
          %v2025 = vpop.permute.xlu0 %2024
          %v2026 = vlaneseq
          %v2027 = vshrl.u32 %v2026, 7
          %v2028 = vsub.s32 4, %v2027
          %v2029 = vrot.slane %v1829, %v2028
          %2031 = vbcast.lane.b32.xlu0 %v2029, 256
          %v2032 = vpop.permute.xlu0 %2031
          %v2033 = vlaneseq
          %v2034 = vshrl.u32 %v2033, 7
          %v2035 = vsub.s32 5, %v2034
          %v2036 = vrot.slane %v1829, %v2035
          %2038 = vbcast.lane.b32.xlu0 %v2036, 256
          %v2039 = vpop.permute.xlu0 %2038
          %v2040 = vlaneseq
          %v2041 = vshrl.u32 %v2040, 7
          %v2042 = vsub.s32 6, %v2041
          %v2043 = vrot.slane %v1829, %v2042
          %2045 = vbcast.lane.b32.xlu0 %v2043, 256
          %v2046 = vpop.permute.xlu0 %2045
          %v2047 = vlaneseq
          %v2048 = vshrl.u32 %v2047, 7
          %v2049 = vsub.s32 7, %v2048
          %v2050 = vrot.slane %v1829, %v2049
          %2052 = vbcast.lane.b32.xlu0 %v2050, 256
          %v2053 = vpop.permute.xlu0 %2052
          %v2086 = vmul.f32 %v558, %v1836
          %v2087 = vmul.f32 %v558, %v1843
          %v2088 = vmul.f32 %v558, %v1850
          %v2089 = vmul.f32 %v558, %v1857
          %v2090 = vmul.f32 %v558, %v1864
          %v2091 = vmul.f32 %v558, %v1871
          %v2092 = vmul.f32 %v558, %v1878
          %v2093 = vmul.f32 %v558, %v1885
          %v2094 = vmul.f32 %v558, %v1892
          %v2095 = vmul.f32 %v558, %v1899
          %v2096 = vmul.f32 %v558, %v1906
          %v2097 = vmul.f32 %v558, %v1913
          %v2098 = vmul.f32 %v558, %v1920
          %v2099 = vmul.f32 %v558, %v1927
          %v2100 = vmul.f32 %v558, %v1934
          %v2101 = vmul.f32 %v558, %v1941
          %v2102 = vmul.f32 %v558, %v1948
          %v2103 = vmul.f32 %v558, %v1955
          %v2104 = vmul.f32 %v558, %v1962
          %v2105 = vmul.f32 %v558, %v1969
          %v2106 = vmul.f32 %v558, %v1976
          %v2107 = vmul.f32 %v558, %v1983
          %v2108 = vmul.f32 %v558, %v1990
          %v2109 = vmul.f32 %v558, %v1997
          %v2110 = vmul.f32 %v558, %v2004
          %v2111 = vmul.f32 %v558, %v2011
          %v2112 = vmul.f32 %v558, %v2018
          %v2113 = vmul.f32 %v558, %v2025
          %v2114 = vmul.f32 %v558, %v2032
          %v2115 = vmul.f32 %v558, %v2039
          %v2116 = vmul.f32 %v558, %v2046
          %v2117 = vmul.f32 %v558, %v2053
          %v2118 = vmul.f32 %v594, %v1836
          %v2119 = vmul.f32 %v594, %v1843
          %v2120 = vmul.f32 %v594, %v1850
          %v2121 = vmul.f32 %v594, %v1857
          %v2122 = vmul.f32 %v594, %v1864
          %v2123 = vmul.f32 %v594, %v1871
          %v2124 = vmul.f32 %v594, %v1878
          %v2125 = vmul.f32 %v594, %v1885
          %v2126 = vmul.f32 %v594, %v1892
          %v2127 = vmul.f32 %v594, %v1899
          %v2128 = vmul.f32 %v594, %v1906
          %v2129 = vmul.f32 %v594, %v1913
          %v2130 = vmul.f32 %v594, %v1920
          %v2131 = vmul.f32 %v594, %v1927
          %v2132 = vmul.f32 %v594, %v1934
          %v2133 = vmul.f32 %v594, %v1941
          %v2134 = vmul.f32 %v594, %v1948
          %v2135 = vmul.f32 %v594, %v1955
          %v2136 = vmul.f32 %v594, %v1962
          %v2137 = vmul.f32 %v594, %v1969
          %v2138 = vmul.f32 %v594, %v1976
          %v2139 = vmul.f32 %v594, %v1983
          %v2140 = vmul.f32 %v594, %v1990
          %v2141 = vmul.f32 %v594, %v1997
          %v2142 = vmul.f32 %v594, %v2004
          %v2143 = vmul.f32 %v594, %v2011
          %v2144 = vmul.f32 %v594, %v2018
          %v2145 = vmul.f32 %v594, %v2025
          %v2146 = vmul.f32 %v594, %v2032
          %v2147 = vmul.f32 %v594, %v2039
          %v2148 = vmul.f32 %v594, %v2046
          %v2149 = vmul.f32 %v594, %v2053
          %v2214 = vrot.slane %v2087, 7
          %v2215 = vsel %vm1036, %v2214, %v2086
          %v2216 = vrot.slane %v2088, 6
          %v2217 = vsel %vm1039, %v2216, %v2215
          %v2218 = vrot.slane %v2089, 5
          %v2219 = vsel %vm1042, %v2218, %v2217
          %v2220 = vrot.slane %v2090, 4
          %v2221 = vsel %vm1045, %v2220, %v2219
          %v2222 = vrot.slane %v2091, 3
          %v2223 = vsel %vm1048, %v2222, %v2221
          %v2224 = vrot.slane %v2092, 2
          %v2225 = vsel %vm1051, %v2224, %v2223
          %v2226 = vrot.slane %v2093, 1
          %v2227 = vsel %vm1054, %v2226, %v2225
          %v2228 = vrot.slane %v2095, 7
          %v2229 = vsel %vm1036, %v2228, %v2094
          %v2230 = vrot.slane %v2096, 6
          %v2231 = vsel %vm1039, %v2230, %v2229
          %v2232 = vrot.slane %v2097, 5
          %v2233 = vsel %vm1042, %v2232, %v2231
          %v2234 = vrot.slane %v2098, 4
          %v2235 = vsel %vm1045, %v2234, %v2233
          %v2236 = vrot.slane %v2099, 3
          %v2237 = vsel %vm1048, %v2236, %v2235
          %v2238 = vrot.slane %v2100, 2
          %v2239 = vsel %vm1051, %v2238, %v2237
          %v2240 = vrot.slane %v2101, 1
          %v2241 = vsel %vm1054, %v2240, %v2239
          %v2242 = vrot.slane %v2103, 7
          %v2243 = vsel %vm1036, %v2242, %v2102
          %v2244 = vrot.slane %v2104, 6
          %v2245 = vsel %vm1039, %v2244, %v2243
          %v2246 = vrot.slane %v2105, 5
          %v2247 = vsel %vm1042, %v2246, %v2245
          %v2248 = vrot.slane %v2106, 4
          %v2249 = vsel %vm1045, %v2248, %v2247
          %v2250 = vrot.slane %v2107, 3
          %v2251 = vsel %vm1048, %v2250, %v2249
          %v2252 = vrot.slane %v2108, 2
          %v2253 = vsel %vm1051, %v2252, %v2251
          %v2254 = vrot.slane %v2109, 1
          %v2255 = vsel %vm1054, %v2254, %v2253
          %v2256 = vrot.slane %v2111, 7
          %v2257 = vsel %vm1036, %v2256, %v2110
          %v2258 = vrot.slane %v2112, 6
          %v2259 = vsel %vm1039, %v2258, %v2257
          %v2260 = vrot.slane %v2113, 5
          %v2261 = vsel %vm1042, %v2260, %v2259
          %v2262 = vrot.slane %v2114, 4
          %v2263 = vsel %vm1045, %v2262, %v2261
          %v2264 = vrot.slane %v2115, 3
          %v2265 = vsel %vm1048, %v2264, %v2263
          %v2266 = vrot.slane %v2116, 2
          %v2267 = vsel %vm1051, %v2266, %v2265
          %v2268 = vrot.slane %v2117, 1
          %v2269 = vsel %vm1054, %v2268, %v2267
          %v2270 = vrot.slane %v2119, 7
          %v2271 = vsel %vm1036, %v2270, %v2118
          %v2272 = vrot.slane %v2120, 6
          %v2273 = vsel %vm1039, %v2272, %v2271
          %v2274 = vrot.slane %v2121, 5
          %v2275 = vsel %vm1042, %v2274, %v2273
          %v2276 = vrot.slane %v2122, 4
          %v2277 = vsel %vm1045, %v2276, %v2275
          %v2278 = vrot.slane %v2123, 3
          %v2279 = vsel %vm1048, %v2278, %v2277
          %v2280 = vrot.slane %v2124, 2
          %v2281 = vsel %vm1051, %v2280, %v2279
          %v2282 = vrot.slane %v2125, 1
          %v2283 = vsel %vm1054, %v2282, %v2281
          %v2284 = vrot.slane %v2127, 7
          %v2285 = vsel %vm1036, %v2284, %v2126
          %v2286 = vrot.slane %v2128, 6
          %v2287 = vsel %vm1039, %v2286, %v2285
          %v2288 = vrot.slane %v2129, 5
          %v2289 = vsel %vm1042, %v2288, %v2287
          %v2290 = vrot.slane %v2130, 4
          %v2291 = vsel %vm1045, %v2290, %v2289
          %v2292 = vrot.slane %v2131, 3
          %v2293 = vsel %vm1048, %v2292, %v2291
          %v2294 = vrot.slane %v2132, 2
          %v2295 = vsel %vm1051, %v2294, %v2293
          %v2296 = vrot.slane %v2133, 1
          %v2297 = vsel %vm1054, %v2296, %v2295
          %v2298 = vrot.slane %v2135, 7
          %v2299 = vsel %vm1036, %v2298, %v2134
          %v2300 = vrot.slane %v2136, 6
          %v2301 = vsel %vm1039, %v2300, %v2299
          %v2302 = vrot.slane %v2137, 5
          %v2303 = vsel %vm1042, %v2302, %v2301
          %v2304 = vrot.slane %v2138, 4
          %v2305 = vsel %vm1045, %v2304, %v2303
          %v2306 = vrot.slane %v2139, 3
          %v2307 = vsel %vm1048, %v2306, %v2305
          %v2308 = vrot.slane %v2140, 2
          %v2309 = vsel %vm1051, %v2308, %v2307
          %v2310 = vrot.slane %v2141, 1
          %v2311 = vsel %vm1054, %v2310, %v2309
          %v2312 = vrot.slane %v2143, 7
          %v2313 = vsel %vm1036, %v2312, %v2142
          %v2314 = vrot.slane %v2144, 6
          %v2315 = vsel %vm1039, %v2314, %v2313
          %v2316 = vrot.slane %v2145, 5
          %v2317 = vsel %vm1042, %v2316, %v2315
          %v2318 = vrot.slane %v2146, 4
          %v2319 = vsel %vm1045, %v2318, %v2317
          %v2320 = vrot.slane %v2147, 3
          %v2321 = vsel %vm1048, %v2320, %v2319
          %v2322 = vrot.slane %v2148, 2
          %v2323 = vsel %vm1051, %v2322, %v2321
          %v2324 = vrot.slane %v2149, 1
          %v2325 = vsel %vm1054, %v2324, %v2323
          %2326 = vset.pattern.permute.xlu0 0
          %2327 = vperm.xlu0 %2326, %v2227
          %v2328 = vpop.permute.xlu0 %2327
          %2329 = vset.pattern.permute.xlu0 0
          %2330 = vperm.xlu0 %2329, %v2241
          %v2331 = vpop.permute.xlu0 %2330
          %2332 = vset.pattern.permute.xlu0 0
          %2333 = vperm.xlu0 %2332, %v2255
          %v2334 = vpop.permute.xlu0 %2333
          %2335 = vset.pattern.permute.xlu0 0
          %2336 = vperm.xlu0 %2335, %v2269
          %v2337 = vpop.permute.xlu0 %2336
          %2338 = vset.pattern.permute.xlu0 0
          %2339 = vperm.xlu0 %2338, %v2283
          %v2340 = vpop.permute.xlu0 %2339
          %2341 = vset.pattern.permute.xlu0 0
          %2342 = vperm.xlu0 %2341, %v2297
          %v2343 = vpop.permute.xlu0 %2342
          %2344 = vset.pattern.permute.xlu0 0
          %2345 = vperm.xlu0 %2344, %v2311
          %v2346 = vpop.permute.xlu0 %2345
          %2347 = vset.pattern.permute.xlu0 0
          %2348 = vperm.xlu0 %2347, %v2325
          %v2349 = vpop.permute.xlu0 %2348
          %v2350 = vlaneseq
          %v2351 = vshrl.u32 %v2350, 7
          %v2352 = vsub.s32 %v1179, %v2351
          %v2353 = vrot.slane %v2328, %v2352
          %v2354 = vlaneseq
          %v2355 = vshrl.u32 %v2354, 7
          %v2356 = vsub.s32 %v1184, %v2355
          %v2357 = vrot.slane %v2331, %v2356
          %v2358 = vsel %vm1189, %v2357, %v2353
          %v2359 = vlaneseq
          %v2360 = vshrl.u32 %v2359, 7
          %v2361 = vsub.s32 %v1191, %v2360
          %v2362 = vrot.slane %v2334, %v2361
          %v2363 = vsel %vm1196, %v2362, %v2358
          %v2364 = vlaneseq
          %v2365 = vshrl.u32 %v2364, 7
          %v2366 = vsub.s32 %v1198, %v2365
          %v2367 = vrot.slane %v2337, %v2366
          %v2368 = vsel %vm1203, %v2367, %v2363
          %v2369 = vlaneseq
          %v2370 = vshrl.u32 %v2369, 7
          %v2371 = vsub.s32 %v1179, %v2370
          %v2372 = vrot.slane %v2340, %v2371
          %v2373 = vlaneseq
          %v2374 = vshrl.u32 %v2373, 7
          %v2375 = vsub.s32 %v1184, %v2374
          %v2376 = vrot.slane %v2343, %v2375
          %v2377 = vsel %vm1189, %v2376, %v2372
          %v2378 = vlaneseq
          %v2379 = vshrl.u32 %v2378, 7
          %v2380 = vsub.s32 %v1191, %v2379
          %v2381 = vrot.slane %v2346, %v2380
          %v2382 = vsel %vm1196, %v2381, %v2377
          %v2383 = vlaneseq
          %v2384 = vshrl.u32 %v2383, 7
          %v2385 = vsub.s32 %v1198, %v2384
          %v2386 = vrot.slane %v2349, %v2385
          %v2387 = vsel %vm1203, %v2386, %v2382
          %v2388 = vsel %vm1036, %v2387, %v2368
          %v2390 = vadd.f32 %v1808, %v2388
          %v2391 = vld [vmem:[#allocation6 + $0x3] sm:$0x1]
          %v2392 = vlaneseq
          %v2393 = vshrl.u32 %v2392, 7
          %v2394 = vsub.s32 0, %v2393
          %v2395 = vrot.slane %v2391, %v2394
          %2398 = vbcast.lane.b32.xlu0 %v2395, 256
          %v2399 = vpop.permute.xlu0 %2398
          %s2401 = sor.u32 256, 8
          %2402 = vbcast.lane.b32.xlu0 %v2395, %s2401
          %v2403 = vpop.permute.xlu0 %2402
          %s2405 = sor.u32 256, 16
          %2406 = vbcast.lane.b32.xlu0 %v2395, %s2405
          %v2407 = vpop.permute.xlu0 %2406
          %s2409 = sor.u32 256, 24
          %2410 = vbcast.lane.b32.xlu0 %v2395, %s2409
          %v2411 = vpop.permute.xlu0 %2410
          %v2412 = vlaneseq
          %v2413 = vshrl.u32 %v2412, 7
          %v2414 = vsub.s32 0, %v2413
          %v2415 = vrot.slane %v2399, %v2414
          %2417 = vbcast.lane.b32.xlu0 %v2415, 256
          %v2418 = vpop.permute.xlu0 %2417
          %v2419 = vlaneseq
          %v2420 = vshrl.u32 %v2419, 7
          %v2421 = vsub.s32 1, %v2420
          %v2422 = vrot.slane %v2399, %v2421
          %2424 = vbcast.lane.b32.xlu0 %v2422, 256
          %v2425 = vpop.permute.xlu0 %2424
          %v2426 = vlaneseq
          %v2427 = vshrl.u32 %v2426, 7
          %v2428 = vsub.s32 2, %v2427
          %v2429 = vrot.slane %v2399, %v2428
          %2431 = vbcast.lane.b32.xlu0 %v2429, 256
          %v2432 = vpop.permute.xlu0 %2431
          %v2433 = vlaneseq
          %v2434 = vshrl.u32 %v2433, 7
          %v2435 = vsub.s32 3, %v2434
          %v2436 = vrot.slane %v2399, %v2435
          %2438 = vbcast.lane.b32.xlu0 %v2436, 256
          %v2439 = vpop.permute.xlu0 %2438
          %v2440 = vlaneseq
          %v2441 = vshrl.u32 %v2440, 7
          %v2442 = vsub.s32 4, %v2441
          %v2443 = vrot.slane %v2399, %v2442
          %2445 = vbcast.lane.b32.xlu0 %v2443, 256
          %v2446 = vpop.permute.xlu0 %2445
          %v2447 = vlaneseq
          %v2448 = vshrl.u32 %v2447, 7
          %v2449 = vsub.s32 5, %v2448
          %v2450 = vrot.slane %v2399, %v2449
          %2452 = vbcast.lane.b32.xlu0 %v2450, 256
          %v2453 = vpop.permute.xlu0 %2452
          %v2454 = vlaneseq
          %v2455 = vshrl.u32 %v2454, 7
          %v2456 = vsub.s32 6, %v2455
          %v2457 = vrot.slane %v2399, %v2456
          %2459 = vbcast.lane.b32.xlu0 %v2457, 256
          %v2460 = vpop.permute.xlu0 %2459
          %v2461 = vlaneseq
          %v2462 = vshrl.u32 %v2461, 7
          %v2463 = vsub.s32 7, %v2462
          %v2464 = vrot.slane %v2399, %v2463
          %2466 = vbcast.lane.b32.xlu0 %v2464, 256
          %v2467 = vpop.permute.xlu0 %2466
          %v2468 = vlaneseq
          %v2469 = vshrl.u32 %v2468, 7
          %v2470 = vsub.s32 0, %v2469
          %v2471 = vrot.slane %v2403, %v2470
          %2473 = vbcast.lane.b32.xlu0 %v2471, 256
          %v2474 = vpop.permute.xlu0 %2473
          %v2475 = vlaneseq
          %v2476 = vshrl.u32 %v2475, 7
          %v2477 = vsub.s32 1, %v2476
          %v2478 = vrot.slane %v2403, %v2477
          %2480 = vbcast.lane.b32.xlu0 %v2478, 256
          %v2481 = vpop.permute.xlu0 %2480
          %v2482 = vlaneseq
          %v2483 = vshrl.u32 %v2482, 7
          %v2484 = vsub.s32 2, %v2483
          %v2485 = vrot.slane %v2403, %v2484
          %2487 = vbcast.lane.b32.xlu0 %v2485, 256
          %v2488 = vpop.permute.xlu0 %2487
          %v2489 = vlaneseq
          %v2490 = vshrl.u32 %v2489, 7
          %v2491 = vsub.s32 3, %v2490
          %v2492 = vrot.slane %v2403, %v2491
          %2494 = vbcast.lane.b32.xlu0 %v2492, 256
          %v2495 = vpop.permute.xlu0 %2494
          %v2496 = vlaneseq
          %v2497 = vshrl.u32 %v2496, 7
          %v2498 = vsub.s32 4, %v2497
          %v2499 = vrot.slane %v2403, %v2498
          %2501 = vbcast.lane.b32.xlu0 %v2499, 256
          %v2502 = vpop.permute.xlu0 %2501
          %v2503 = vlaneseq
          %v2504 = vshrl.u32 %v2503, 7
          %v2505 = vsub.s32 5, %v2504
          %v2506 = vrot.slane %v2403, %v2505
          %2508 = vbcast.lane.b32.xlu0 %v2506, 256
          %v2509 = vpop.permute.xlu0 %2508
          %v2510 = vlaneseq
          %v2511 = vshrl.u32 %v2510, 7
          %v2512 = vsub.s32 6, %v2511
          %v2513 = vrot.slane %v2403, %v2512
          %2515 = vbcast.lane.b32.xlu0 %v2513, 256
          %v2516 = vpop.permute.xlu0 %2515
          %v2517 = vlaneseq
          %v2518 = vshrl.u32 %v2517, 7
          %v2519 = vsub.s32 7, %v2518
          %v2520 = vrot.slane %v2403, %v2519
          %2522 = vbcast.lane.b32.xlu0 %v2520, 256
          %v2523 = vpop.permute.xlu0 %2522
          %v2524 = vlaneseq
          %v2525 = vshrl.u32 %v2524, 7
          %v2526 = vsub.s32 0, %v2525
          %v2527 = vrot.slane %v2407, %v2526
          %2529 = vbcast.lane.b32.xlu0 %v2527, 256
          %v2530 = vpop.permute.xlu0 %2529
          %v2531 = vlaneseq
          %v2532 = vshrl.u32 %v2531, 7
          %v2533 = vsub.s32 1, %v2532
          %v2534 = vrot.slane %v2407, %v2533
          %2536 = vbcast.lane.b32.xlu0 %v2534, 256
          %v2537 = vpop.permute.xlu0 %2536
          %v2538 = vlaneseq
          %v2539 = vshrl.u32 %v2538, 7
          %v2540 = vsub.s32 2, %v2539
          %v2541 = vrot.slane %v2407, %v2540
          %2543 = vbcast.lane.b32.xlu0 %v2541, 256
          %v2544 = vpop.permute.xlu0 %2543
          %v2545 = vlaneseq
          %v2546 = vshrl.u32 %v2545, 7
          %v2547 = vsub.s32 3, %v2546
          %v2548 = vrot.slane %v2407, %v2547
          %2550 = vbcast.lane.b32.xlu0 %v2548, 256
          %v2551 = vpop.permute.xlu0 %2550
          %v2552 = vlaneseq
          %v2553 = vshrl.u32 %v2552, 7
          %v2554 = vsub.s32 4, %v2553
          %v2555 = vrot.slane %v2407, %v2554
          %2557 = vbcast.lane.b32.xlu0 %v2555, 256
          %v2558 = vpop.permute.xlu0 %2557
          %v2559 = vlaneseq
          %v2560 = vshrl.u32 %v2559, 7
          %v2561 = vsub.s32 5, %v2560
          %v2562 = vrot.slane %v2407, %v2561
          %2564 = vbcast.lane.b32.xlu0 %v2562, 256
          %v2565 = vpop.permute.xlu0 %2564
          %v2566 = vlaneseq
          %v2567 = vshrl.u32 %v2566, 7
          %v2568 = vsub.s32 6, %v2567
          %v2569 = vrot.slane %v2407, %v2568
          %2571 = vbcast.lane.b32.xlu0 %v2569, 256
          %v2572 = vpop.permute.xlu0 %2571
          %v2573 = vlaneseq
          %v2574 = vshrl.u32 %v2573, 7
          %v2575 = vsub.s32 7, %v2574
          %v2576 = vrot.slane %v2407, %v2575
          %2578 = vbcast.lane.b32.xlu0 %v2576, 256
          %v2579 = vpop.permute.xlu0 %2578
          %v2580 = vlaneseq
          %v2581 = vshrl.u32 %v2580, 7
          %v2582 = vsub.s32 0, %v2581
          %v2583 = vrot.slane %v2411, %v2582
          %2585 = vbcast.lane.b32.xlu0 %v2583, 256
          %v2586 = vpop.permute.xlu0 %2585
          %v2587 = vlaneseq
          %v2588 = vshrl.u32 %v2587, 7
          %v2589 = vsub.s32 1, %v2588
          %v2590 = vrot.slane %v2411, %v2589
          %2592 = vbcast.lane.b32.xlu0 %v2590, 256
          %v2593 = vpop.permute.xlu0 %2592
          %v2594 = vlaneseq
          %v2595 = vshrl.u32 %v2594, 7
          %v2596 = vsub.s32 2, %v2595
          %v2597 = vrot.slane %v2411, %v2596
          %2599 = vbcast.lane.b32.xlu0 %v2597, 256
          %v2600 = vpop.permute.xlu0 %2599
          %v2601 = vlaneseq
          %v2602 = vshrl.u32 %v2601, 7
          %v2603 = vsub.s32 3, %v2602
          %v2604 = vrot.slane %v2411, %v2603
          %2606 = vbcast.lane.b32.xlu0 %v2604, 256
          %v2607 = vpop.permute.xlu0 %2606
          %v2608 = vlaneseq
          %v2609 = vshrl.u32 %v2608, 7
          %v2610 = vsub.s32 4, %v2609
          %v2611 = vrot.slane %v2411, %v2610
          %2613 = vbcast.lane.b32.xlu0 %v2611, 256
          %v2614 = vpop.permute.xlu0 %2613
          %v2615 = vlaneseq
          %v2616 = vshrl.u32 %v2615, 7
          %v2617 = vsub.s32 5, %v2616
          %v2618 = vrot.slane %v2411, %v2617
          %2620 = vbcast.lane.b32.xlu0 %v2618, 256
          %v2621 = vpop.permute.xlu0 %2620
          %v2622 = vlaneseq
          %v2623 = vshrl.u32 %v2622, 7
          %v2624 = vsub.s32 6, %v2623
          %v2625 = vrot.slane %v2411, %v2624
          %2627 = vbcast.lane.b32.xlu0 %v2625, 256
          %v2628 = vpop.permute.xlu0 %2627
          %v2629 = vlaneseq
          %v2630 = vshrl.u32 %v2629, 7
          %v2631 = vsub.s32 7, %v2630
          %v2632 = vrot.slane %v2411, %v2631
          %2634 = vbcast.lane.b32.xlu0 %v2632, 256
          %v2635 = vpop.permute.xlu0 %2634
          %v2668 = vmul.f32 %v561, %v2418
          %v2669 = vmul.f32 %v561, %v2425
          %v2670 = vmul.f32 %v561, %v2432
          %v2671 = vmul.f32 %v561, %v2439
          %v2672 = vmul.f32 %v561, %v2446
          %v2673 = vmul.f32 %v561, %v2453
          %v2674 = vmul.f32 %v561, %v2460
          %v2675 = vmul.f32 %v561, %v2467
          %v2676 = vmul.f32 %v561, %v2474
          %v2677 = vmul.f32 %v561, %v2481
          %v2678 = vmul.f32 %v561, %v2488
          %v2679 = vmul.f32 %v561, %v2495
          %v2680 = vmul.f32 %v561, %v2502
          %v2681 = vmul.f32 %v561, %v2509
          %v2682 = vmul.f32 %v561, %v2516
          %v2683 = vmul.f32 %v561, %v2523
          %v2684 = vmul.f32 %v561, %v2530
          %v2685 = vmul.f32 %v561, %v2537
          %v2686 = vmul.f32 %v561, %v2544
          %v2687 = vmul.f32 %v561, %v2551
          %v2688 = vmul.f32 %v561, %v2558
          %v2689 = vmul.f32 %v561, %v2565
          %v2690 = vmul.f32 %v561, %v2572
          %v2691 = vmul.f32 %v561, %v2579
          %v2692 = vmul.f32 %v561, %v2586
          %v2693 = vmul.f32 %v561, %v2593
          %v2694 = vmul.f32 %v561, %v2600
          %v2695 = vmul.f32 %v561, %v2607
          %v2696 = vmul.f32 %v561, %v2614
          %v2697 = vmul.f32 %v561, %v2621
          %v2698 = vmul.f32 %v561, %v2628
          %v2699 = vmul.f32 %v561, %v2635
          %v2700 = vmul.f32 %v597, %v2418
          %v2701 = vmul.f32 %v597, %v2425
          %v2702 = vmul.f32 %v597, %v2432
          %v2703 = vmul.f32 %v597, %v2439
          %v2704 = vmul.f32 %v597, %v2446
          %v2705 = vmul.f32 %v597, %v2453
          %v2706 = vmul.f32 %v597, %v2460
          %v2707 = vmul.f32 %v597, %v2467
          %v2708 = vmul.f32 %v597, %v2474
          %v2709 = vmul.f32 %v597, %v2481
          %v2710 = vmul.f32 %v597, %v2488
          %v2711 = vmul.f32 %v597, %v2495
          %v2712 = vmul.f32 %v597, %v2502
          %v2713 = vmul.f32 %v597, %v2509
          %v2714 = vmul.f32 %v597, %v2516
          %v2715 = vmul.f32 %v597, %v2523
          %v2716 = vmul.f32 %v597, %v2530
          %v2717 = vmul.f32 %v597, %v2537
          %v2718 = vmul.f32 %v597, %v2544
          %v2719 = vmul.f32 %v597, %v2551
          %v2720 = vmul.f32 %v597, %v2558
          %v2721 = vmul.f32 %v597, %v2565
          %v2722 = vmul.f32 %v597, %v2572
          %v2723 = vmul.f32 %v597, %v2579
          %v2724 = vmul.f32 %v597, %v2586
          %v2725 = vmul.f32 %v597, %v2593
          %v2726 = vmul.f32 %v597, %v2600
          %v2727 = vmul.f32 %v597, %v2607
          %v2728 = vmul.f32 %v597, %v2614
          %v2729 = vmul.f32 %v597, %v2621
          %v2730 = vmul.f32 %v597, %v2628
          %v2731 = vmul.f32 %v597, %v2635
          %v2796 = vrot.slane %v2669, 7
          %v2797 = vsel %vm1036, %v2796, %v2668
          %v2798 = vrot.slane %v2670, 6
          %v2799 = vsel %vm1039, %v2798, %v2797
          %v2800 = vrot.slane %v2671, 5
          %v2801 = vsel %vm1042, %v2800, %v2799
          %v2802 = vrot.slane %v2672, 4
          %v2803 = vsel %vm1045, %v2802, %v2801
          %v2804 = vrot.slane %v2673, 3
          %v2805 = vsel %vm1048, %v2804, %v2803
          %v2806 = vrot.slane %v2674, 2
          %v2807 = vsel %vm1051, %v2806, %v2805
          %v2808 = vrot.slane %v2675, 1
          %v2809 = vsel %vm1054, %v2808, %v2807
          %v2810 = vrot.slane %v2677, 7
          %v2811 = vsel %vm1036, %v2810, %v2676
          %v2812 = vrot.slane %v2678, 6
          %v2813 = vsel %vm1039, %v2812, %v2811
          %v2814 = vrot.slane %v2679, 5
          %v2815 = vsel %vm1042, %v2814, %v2813
          %v2816 = vrot.slane %v2680, 4
          %v2817 = vsel %vm1045, %v2816, %v2815
          %v2818 = vrot.slane %v2681, 3
          %v2819 = vsel %vm1048, %v2818, %v2817
          %v2820 = vrot.slane %v2682, 2
          %v2821 = vsel %vm1051, %v2820, %v2819
          %v2822 = vrot.slane %v2683, 1
          %v2823 = vsel %vm1054, %v2822, %v2821
          %v2824 = vrot.slane %v2685, 7
          %v2825 = vsel %vm1036, %v2824, %v2684
          %v2826 = vrot.slane %v2686, 6
          %v2827 = vsel %vm1039, %v2826, %v2825
          %v2828 = vrot.slane %v2687, 5
          %v2829 = vsel %vm1042, %v2828, %v2827
          %v2830 = vrot.slane %v2688, 4
          %v2831 = vsel %vm1045, %v2830, %v2829
          %v2832 = vrot.slane %v2689, 3
          %v2833 = vsel %vm1048, %v2832, %v2831
          %v2834 = vrot.slane %v2690, 2
          %v2835 = vsel %vm1051, %v2834, %v2833
          %v2836 = vrot.slane %v2691, 1
          %v2837 = vsel %vm1054, %v2836, %v2835
          %v2838 = vrot.slane %v2693, 7
          %v2839 = vsel %vm1036, %v2838, %v2692
          %v2840 = vrot.slane %v2694, 6
          %v2841 = vsel %vm1039, %v2840, %v2839
          %v2842 = vrot.slane %v2695, 5
          %v2843 = vsel %vm1042, %v2842, %v2841
          %v2844 = vrot.slane %v2696, 4
          %v2845 = vsel %vm1045, %v2844, %v2843
          %v2846 = vrot.slane %v2697, 3
          %v2847 = vsel %vm1048, %v2846, %v2845
          %v2848 = vrot.slane %v2698, 2
          %v2849 = vsel %vm1051, %v2848, %v2847
          %v2850 = vrot.slane %v2699, 1
          %v2851 = vsel %vm1054, %v2850, %v2849
          %v2852 = vrot.slane %v2701, 7
          %v2853 = vsel %vm1036, %v2852, %v2700
          %v2854 = vrot.slane %v2702, 6
          %v2855 = vsel %vm1039, %v2854, %v2853
          %v2856 = vrot.slane %v2703, 5
          %v2857 = vsel %vm1042, %v2856, %v2855
          %v2858 = vrot.slane %v2704, 4
          %v2859 = vsel %vm1045, %v2858, %v2857
          %v2860 = vrot.slane %v2705, 3
          %v2861 = vsel %vm1048, %v2860, %v2859
          %v2862 = vrot.slane %v2706, 2
          %v2863 = vsel %vm1051, %v2862, %v2861
          %v2864 = vrot.slane %v2707, 1
          %v2865 = vsel %vm1054, %v2864, %v2863
          %v2866 = vrot.slane %v2709, 7
          %v2867 = vsel %vm1036, %v2866, %v2708
          %v2868 = vrot.slane %v2710, 6
          %v2869 = vsel %vm1039, %v2868, %v2867
          %v2870 = vrot.slane %v2711, 5
          %v2871 = vsel %vm1042, %v2870, %v2869
          %v2872 = vrot.slane %v2712, 4
          %v2873 = vsel %vm1045, %v2872, %v2871
          %v2874 = vrot.slane %v2713, 3
          %v2875 = vsel %vm1048, %v2874, %v2873
          %v2876 = vrot.slane %v2714, 2
          %v2877 = vsel %vm1051, %v2876, %v2875
          %v2878 = vrot.slane %v2715, 1
          %v2879 = vsel %vm1054, %v2878, %v2877
          %v2880 = vrot.slane %v2717, 7
          %v2881 = vsel %vm1036, %v2880, %v2716
          %v2882 = vrot.slane %v2718, 6
          %v2883 = vsel %vm1039, %v2882, %v2881
          %v2884 = vrot.slane %v2719, 5
          %v2885 = vsel %vm1042, %v2884, %v2883
          %v2886 = vrot.slane %v2720, 4
          %v2887 = vsel %vm1045, %v2886, %v2885
          %v2888 = vrot.slane %v2721, 3
          %v2889 = vsel %vm1048, %v2888, %v2887
          %v2890 = vrot.slane %v2722, 2
          %v2891 = vsel %vm1051, %v2890, %v2889
          %v2892 = vrot.slane %v2723, 1
          %v2893 = vsel %vm1054, %v2892, %v2891
          %v2894 = vrot.slane %v2725, 7
          %v2895 = vsel %vm1036, %v2894, %v2724
          %v2896 = vrot.slane %v2726, 6
          %v2897 = vsel %vm1039, %v2896, %v2895
          %v2898 = vrot.slane %v2727, 5
          %v2899 = vsel %vm1042, %v2898, %v2897
          %v2900 = vrot.slane %v2728, 4
          %v2901 = vsel %vm1045, %v2900, %v2899
          %v2902 = vrot.slane %v2729, 3
          %v2903 = vsel %vm1048, %v2902, %v2901
          %v2904 = vrot.slane %v2730, 2
          %v2905 = vsel %vm1051, %v2904, %v2903
          %v2906 = vrot.slane %v2731, 1
          %v2907 = vsel %vm1054, %v2906, %v2905
          %2908 = vset.pattern.permute.xlu0 0
          %2909 = vperm.xlu0 %2908, %v2809
          %v2910 = vpop.permute.xlu0 %2909
          %2911 = vset.pattern.permute.xlu0 0
          %2912 = vperm.xlu0 %2911, %v2823
          %v2913 = vpop.permute.xlu0 %2912
          %2914 = vset.pattern.permute.xlu0 0
          %2915 = vperm.xlu0 %2914, %v2837
          %v2916 = vpop.permute.xlu0 %2915
          %2917 = vset.pattern.permute.xlu0 0
          %2918 = vperm.xlu0 %2917, %v2851
          %v2919 = vpop.permute.xlu0 %2918
          %2920 = vset.pattern.permute.xlu0 0
          %2921 = vperm.xlu0 %2920, %v2865
          %v2922 = vpop.permute.xlu0 %2921
          %2923 = vset.pattern.permute.xlu0 0
          %2924 = vperm.xlu0 %2923, %v2879
          %v2925 = vpop.permute.xlu0 %2924
          %2926 = vset.pattern.permute.xlu0 0
          %2927 = vperm.xlu0 %2926, %v2893
          %v2928 = vpop.permute.xlu0 %2927
          %2929 = vset.pattern.permute.xlu0 0
          %2930 = vperm.xlu0 %2929, %v2907
          %v2931 = vpop.permute.xlu0 %2930
          %v2932 = vlaneseq
          %v2933 = vshrl.u32 %v2932, 7
          %v2934 = vsub.s32 %v1179, %v2933
          %v2935 = vrot.slane %v2910, %v2934
          %v2936 = vlaneseq
          %v2937 = vshrl.u32 %v2936, 7
          %v2938 = vsub.s32 %v1184, %v2937
          %v2939 = vrot.slane %v2913, %v2938
          %v2940 = vsel %vm1189, %v2939, %v2935
          %v2941 = vlaneseq
          %v2942 = vshrl.u32 %v2941, 7
          %v2943 = vsub.s32 %v1191, %v2942
          %v2944 = vrot.slane %v2916, %v2943
          %v2945 = vsel %vm1196, %v2944, %v2940
          %v2946 = vlaneseq
          %v2947 = vshrl.u32 %v2946, 7
          %v2948 = vsub.s32 %v1198, %v2947
          %v2949 = vrot.slane %v2919, %v2948
          %v2950 = vsel %vm1203, %v2949, %v2945
          %v2951 = vlaneseq
          %v2952 = vshrl.u32 %v2951, 7
          %v2953 = vsub.s32 %v1179, %v2952
          %v2954 = vrot.slane %v2922, %v2953
          %v2955 = vlaneseq
          %v2956 = vshrl.u32 %v2955, 7
          %v2957 = vsub.s32 %v1184, %v2956
          %v2958 = vrot.slane %v2925, %v2957
          %v2959 = vsel %vm1189, %v2958, %v2954
          %v2960 = vlaneseq
          %v2961 = vshrl.u32 %v2960, 7
          %v2962 = vsub.s32 %v1191, %v2961
          %v2963 = vrot.slane %v2928, %v2962
          %v2964 = vsel %vm1196, %v2963, %v2959
          %v2965 = vlaneseq
          %v2966 = vshrl.u32 %v2965, 7
          %v2967 = vsub.s32 %v1198, %v2966
          %v2968 = vrot.slane %v2931, %v2967
          %v2969 = vsel %vm1203, %v2968, %v2964
          %v2970 = vsel %vm1036, %v2969, %v2950
          %v2972 = vadd.f32 %v2390, %v2970
          %v2975 = vunpack.c.l.s4 1966171168
          %v2976 = vunpack.c.0.s8 %v2975
          %v2977 = vlaneseq
          %v2978 = vshrl.u32 %v2977, 7
          %v2979 = vsub.s32 %v2976, %v2978
          %v2980 = vrot.slane %v2972, %v2979
          %v2981 = vcombine.high %v2980, %v2980
          %v2983 = vunpack.c.l.s4 1966171168
          %v2984 = vunpack.c.0.s8 %v2983
          %v2985 = vlaneseq
          %v2986 = vshrl.u32 %v2985, 7
          %v2987 = vsub.s32 %v2984, %v2986
          %v2988 = vrot.slane %v2980, %v2987
          %v2990 = vunpack.c.l.s4 1966171168
          %v2991 = vunpack.c.0.s8 %v2990
          %v2992 = vlaneseq
          %v2993 = vshrl.u32 %v2992, 7
          %v2994 = vsub.s32 %v2991, %v2993
          %v2995 = vrot.slane %v2981, %v2994
          %v2998 = vmul.f32 %v564, %v657
          %v2999 = vmul.f32 %v564, %v664
          %v3000 = vmul.f32 %v564, %v671
          %v3001 = vmul.f32 %v564, %v678
          %v3002 = vmul.f32 %v564, %v685
          %v3003 = vmul.f32 %v564, %v692
          %v3004 = vmul.f32 %v564, %v699
          %v3005 = vmul.f32 %v564, %v706
          %v3006 = vmul.f32 %v564, %v713
          %v3007 = vmul.f32 %v564, %v720
          %v3008 = vmul.f32 %v564, %v727
          %v3009 = vmul.f32 %v564, %v734
          %v3010 = vmul.f32 %v564, %v741
          %v3011 = vmul.f32 %v564, %v748
          %v3012 = vmul.f32 %v564, %v755
          %v3013 = vmul.f32 %v564, %v762
          %v3014 = vmul.f32 %v564, %v769
          %v3015 = vmul.f32 %v564, %v776
          %v3016 = vmul.f32 %v564, %v783
          %v3017 = vmul.f32 %v564, %v790
          %v3018 = vmul.f32 %v564, %v797
          %v3019 = vmul.f32 %v564, %v804
          %v3020 = vmul.f32 %v564, %v811
          %v3021 = vmul.f32 %v564, %v818
          %v3022 = vmul.f32 %v564, %v825
          %v3023 = vmul.f32 %v564, %v832
          %v3024 = vmul.f32 %v564, %v839
          %v3025 = vmul.f32 %v564, %v846
          %v3026 = vmul.f32 %v564, %v853
          %v3027 = vmul.f32 %v564, %v860
          %v3028 = vmul.f32 %v564, %v867
          %v3029 = vmul.f32 %v564, %v874
          %v3030 = vmul.f32 %v600, %v657
          %v3031 = vmul.f32 %v600, %v664
          %v3032 = vmul.f32 %v600, %v671
          %v3033 = vmul.f32 %v600, %v678
          %v3034 = vmul.f32 %v600, %v685
          %v3035 = vmul.f32 %v600, %v692
          %v3036 = vmul.f32 %v600, %v699
          %v3037 = vmul.f32 %v600, %v706
          %v3038 = vmul.f32 %v600, %v713
          %v3039 = vmul.f32 %v600, %v720
          %v3040 = vmul.f32 %v600, %v727
          %v3041 = vmul.f32 %v600, %v734
          %v3042 = vmul.f32 %v600, %v741
          %v3043 = vmul.f32 %v600, %v748
          %v3044 = vmul.f32 %v600, %v755
          %v3045 = vmul.f32 %v600, %v762
          %v3046 = vmul.f32 %v600, %v769
          %v3047 = vmul.f32 %v600, %v776
          %v3048 = vmul.f32 %v600, %v783
          %v3049 = vmul.f32 %v600, %v790
          %v3050 = vmul.f32 %v600, %v797
          %v3051 = vmul.f32 %v600, %v804
          %v3052 = vmul.f32 %v600, %v811
          %v3053 = vmul.f32 %v600, %v818
          %v3054 = vmul.f32 %v600, %v825
          %v3055 = vmul.f32 %v600, %v832
          %v3056 = vmul.f32 %v600, %v839
          %v3057 = vmul.f32 %v600, %v846
          %v3058 = vmul.f32 %v600, %v853
          %v3059 = vmul.f32 %v600, %v860
          %v3060 = vmul.f32 %v600, %v867
          %v3061 = vmul.f32 %v600, %v874
          %v3126 = vrot.slane %v2999, 7
          %v3127 = vsel %vm1036, %v3126, %v2998
          %v3128 = vrot.slane %v3000, 6
          %v3129 = vsel %vm1039, %v3128, %v3127
          %v3130 = vrot.slane %v3001, 5
          %v3131 = vsel %vm1042, %v3130, %v3129
          %v3132 = vrot.slane %v3002, 4
          %v3133 = vsel %vm1045, %v3132, %v3131
          %v3134 = vrot.slane %v3003, 3
          %v3135 = vsel %vm1048, %v3134, %v3133
          %v3136 = vrot.slane %v3004, 2
          %v3137 = vsel %vm1051, %v3136, %v3135
          %v3138 = vrot.slane %v3005, 1
          %v3139 = vsel %vm1054, %v3138, %v3137
          %v3140 = vrot.slane %v3007, 7
          %v3141 = vsel %vm1036, %v3140, %v3006
          %v3142 = vrot.slane %v3008, 6
          %v3143 = vsel %vm1039, %v3142, %v3141
          %v3144 = vrot.slane %v3009, 5
          %v3145 = vsel %vm1042, %v3144, %v3143
          %v3146 = vrot.slane %v3010, 4
          %v3147 = vsel %vm1045, %v3146, %v3145
          %v3148 = vrot.slane %v3011, 3
          %v3149 = vsel %vm1048, %v3148, %v3147
          %v3150 = vrot.slane %v3012, 2
          %v3151 = vsel %vm1051, %v3150, %v3149
          %v3152 = vrot.slane %v3013, 1
          %v3153 = vsel %vm1054, %v3152, %v3151
          %v3154 = vrot.slane %v3015, 7
          %v3155 = vsel %vm1036, %v3154, %v3014
          %v3156 = vrot.slane %v3016, 6
          %v3157 = vsel %vm1039, %v3156, %v3155
          %v3158 = vrot.slane %v3017, 5
          %v3159 = vsel %vm1042, %v3158, %v3157
          %v3160 = vrot.slane %v3018, 4
          %v3161 = vsel %vm1045, %v3160, %v3159
          %v3162 = vrot.slane %v3019, 3
          %v3163 = vsel %vm1048, %v3162, %v3161
          %v3164 = vrot.slane %v3020, 2
          %v3165 = vsel %vm1051, %v3164, %v3163
          %v3166 = vrot.slane %v3021, 1
          %v3167 = vsel %vm1054, %v3166, %v3165
          %v3168 = vrot.slane %v3023, 7
          %v3169 = vsel %vm1036, %v3168, %v3022
          %v3170 = vrot.slane %v3024, 6
          %v3171 = vsel %vm1039, %v3170, %v3169
          %v3172 = vrot.slane %v3025, 5
          %v3173 = vsel %vm1042, %v3172, %v3171
          %v3174 = vrot.slane %v3026, 4
          %v3175 = vsel %vm1045, %v3174, %v3173
          %v3176 = vrot.slane %v3027, 3
          %v3177 = vsel %vm1048, %v3176, %v3175
          %v3178 = vrot.slane %v3028, 2
          %v3179 = vsel %vm1051, %v3178, %v3177
          %v3180 = vrot.slane %v3029, 1
          %v3181 = vsel %vm1054, %v3180, %v3179
          %v3182 = vrot.slane %v3031, 7
          %v3183 = vsel %vm1036, %v3182, %v3030
          %v3184 = vrot.slane %v3032, 6
          %v3185 = vsel %vm1039, %v3184, %v3183
          %v3186 = vrot.slane %v3033, 5
          %v3187 = vsel %vm1042, %v3186, %v3185
          %v3188 = vrot.slane %v3034, 4
          %v3189 = vsel %vm1045, %v3188, %v3187
          %v3190 = vrot.slane %v3035, 3
          %v3191 = vsel %vm1048, %v3190, %v3189
          %v3192 = vrot.slane %v3036, 2
          %v3193 = vsel %vm1051, %v3192, %v3191
          %v3194 = vrot.slane %v3037, 1
          %v3195 = vsel %vm1054, %v3194, %v3193
          %v3196 = vrot.slane %v3039, 7
          %v3197 = vsel %vm1036, %v3196, %v3038
          %v3198 = vrot.slane %v3040, 6
          %v3199 = vsel %vm1039, %v3198, %v3197
          %v3200 = vrot.slane %v3041, 5
          %v3201 = vsel %vm1042, %v3200, %v3199
          %v3202 = vrot.slane %v3042, 4
          %v3203 = vsel %vm1045, %v3202, %v3201
          %v3204 = vrot.slane %v3043, 3
          %v3205 = vsel %vm1048, %v3204, %v3203
          %v3206 = vrot.slane %v3044, 2
          %v3207 = vsel %vm1051, %v3206, %v3205
          %v3208 = vrot.slane %v3045, 1
          %v3209 = vsel %vm1054, %v3208, %v3207
          %v3210 = vrot.slane %v3047, 7
          %v3211 = vsel %vm1036, %v3210, %v3046
          %v3212 = vrot.slane %v3048, 6
          %v3213 = vsel %vm1039, %v3212, %v3211
          %v3214 = vrot.slane %v3049, 5
          %v3215 = vsel %vm1042, %v3214, %v3213
          %v3216 = vrot.slane %v3050, 4
          %v3217 = vsel %vm1045, %v3216, %v3215
          %v3218 = vrot.slane %v3051, 3
          %v3219 = vsel %vm1048, %v3218, %v3217
          %v3220 = vrot.slane %v3052, 2
          %v3221 = vsel %vm1051, %v3220, %v3219
          %v3222 = vrot.slane %v3053, 1
          %v3223 = vsel %vm1054, %v3222, %v3221
          %v3224 = vrot.slane %v3055, 7
          %v3225 = vsel %vm1036, %v3224, %v3054
          %v3226 = vrot.slane %v3056, 6
          %v3227 = vsel %vm1039, %v3226, %v3225
          %v3228 = vrot.slane %v3057, 5
          %v3229 = vsel %vm1042, %v3228, %v3227
          %v3230 = vrot.slane %v3058, 4
          %v3231 = vsel %vm1045, %v3230, %v3229
          %v3232 = vrot.slane %v3059, 3
          %v3233 = vsel %vm1048, %v3232, %v3231
          %v3234 = vrot.slane %v3060, 2
          %v3235 = vsel %vm1051, %v3234, %v3233
          %v3236 = vrot.slane %v3061, 1
          %v3237 = vsel %vm1054, %v3236, %v3235
          %3238 = vset.pattern.permute.xlu0 0
          %3239 = vperm.xlu0 %3238, %v3139
          %v3240 = vpop.permute.xlu0 %3239
          %3241 = vset.pattern.permute.xlu0 0
          %3242 = vperm.xlu0 %3241, %v3153
          %v3243 = vpop.permute.xlu0 %3242
          %3244 = vset.pattern.permute.xlu0 0
          %3245 = vperm.xlu0 %3244, %v3167
          %v3246 = vpop.permute.xlu0 %3245
          %3247 = vset.pattern.permute.xlu0 0
          %3248 = vperm.xlu0 %3247, %v3181
          %v3249 = vpop.permute.xlu0 %3248
          %3250 = vset.pattern.permute.xlu0 0
          %3251 = vperm.xlu0 %3250, %v3195
          %v3252 = vpop.permute.xlu0 %3251
          %3253 = vset.pattern.permute.xlu0 0
          %3254 = vperm.xlu0 %3253, %v3209
          %v3255 = vpop.permute.xlu0 %3254
          %3256 = vset.pattern.permute.xlu0 0
          %3257 = vperm.xlu0 %3256, %v3223
          %v3258 = vpop.permute.xlu0 %3257
          %3259 = vset.pattern.permute.xlu0 0
          %3260 = vperm.xlu0 %3259, %v3237
          %v3261 = vpop.permute.xlu0 %3260
          %v3262 = vlaneseq
          %v3263 = vshrl.u32 %v3262, 7
          %v3264 = vsub.s32 %v1179, %v3263
          %v3265 = vrot.slane %v3240, %v3264
          %v3266 = vlaneseq
          %v3267 = vshrl.u32 %v3266, 7
          %v3268 = vsub.s32 %v1184, %v3267
          %v3269 = vrot.slane %v3243, %v3268
          %v3270 = vsel %vm1189, %v3269, %v3265
          %v3271 = vlaneseq
          %v3272 = vshrl.u32 %v3271, 7
          %v3273 = vsub.s32 %v1191, %v3272
          %v3274 = vrot.slane %v3246, %v3273
          %v3275 = vsel %vm1196, %v3274, %v3270
          %v3276 = vlaneseq
          %v3277 = vshrl.u32 %v3276, 7
          %v3278 = vsub.s32 %v1198, %v3277
          %v3279 = vrot.slane %v3249, %v3278
          %v3280 = vsel %vm1203, %v3279, %v3275
          %v3281 = vlaneseq
          %v3282 = vshrl.u32 %v3281, 7
          %v3283 = vsub.s32 %v1179, %v3282
          %v3284 = vrot.slane %v3252, %v3283
          %v3285 = vlaneseq
          %v3286 = vshrl.u32 %v3285, 7
          %v3287 = vsub.s32 %v1184, %v3286
          %v3288 = vrot.slane %v3255, %v3287
          %v3289 = vsel %vm1189, %v3288, %v3284
          %v3290 = vlaneseq
          %v3291 = vshrl.u32 %v3290, 7
          %v3292 = vsub.s32 %v1191, %v3291
          %v3293 = vrot.slane %v3258, %v3292
          %v3294 = vsel %vm1196, %v3293, %v3289
          %v3295 = vlaneseq
          %v3296 = vshrl.u32 %v3295, 7
          %v3297 = vsub.s32 %v1198, %v3296
          %v3298 = vrot.slane %v3261, %v3297
          %v3299 = vsel %vm1203, %v3298, %v3294
          %v3300 = vsel %vm1036, %v3299, %v3280
          %v3302 = vadd.f32 %v629, %v3300
          %v3303 = vmul.f32 %v567, %v1254
          %v3304 = vmul.f32 %v567, %v1261
          %v3305 = vmul.f32 %v567, %v1268
          %v3306 = vmul.f32 %v567, %v1275
          %v3307 = vmul.f32 %v567, %v1282
          %v3308 = vmul.f32 %v567, %v1289
          %v3309 = vmul.f32 %v567, %v1296
          %v3310 = vmul.f32 %v567, %v1303
          %v3311 = vmul.f32 %v567, %v1310
          %v3312 = vmul.f32 %v567, %v1317
          %v3313 = vmul.f32 %v567, %v1324
          %v3314 = vmul.f32 %v567, %v1331
          %v3315 = vmul.f32 %v567, %v1338
          %v3316 = vmul.f32 %v567, %v1345
          %v3317 = vmul.f32 %v567, %v1352
          %v3318 = vmul.f32 %v567, %v1359
          %v3319 = vmul.f32 %v567, %v1366
          %v3320 = vmul.f32 %v567, %v1373
          %v3321 = vmul.f32 %v567, %v1380
          %v3322 = vmul.f32 %v567, %v1387
          %v3323 = vmul.f32 %v567, %v1394
          %v3324 = vmul.f32 %v567, %v1401
          %v3325 = vmul.f32 %v567, %v1408
          %v3326 = vmul.f32 %v567, %v1415
          %v3327 = vmul.f32 %v567, %v1422
          %v3328 = vmul.f32 %v567, %v1429
          %v3329 = vmul.f32 %v567, %v1436
          %v3330 = vmul.f32 %v567, %v1443
          %v3331 = vmul.f32 %v567, %v1450
          %v3332 = vmul.f32 %v567, %v1457
          %v3333 = vmul.f32 %v567, %v1464
          %v3334 = vmul.f32 %v567, %v1471
          %v3335 = vmul.f32 %v603, %v1254
          %v3336 = vmul.f32 %v603, %v1261
          %v3337 = vmul.f32 %v603, %v1268
          %v3338 = vmul.f32 %v603, %v1275
          %v3339 = vmul.f32 %v603, %v1282
          %v3340 = vmul.f32 %v603, %v1289
          %v3341 = vmul.f32 %v603, %v1296
          %v3342 = vmul.f32 %v603, %v1303
          %v3343 = vmul.f32 %v603, %v1310
          %v3344 = vmul.f32 %v603, %v1317
          %v3345 = vmul.f32 %v603, %v1324
          %v3346 = vmul.f32 %v603, %v1331
          %v3347 = vmul.f32 %v603, %v1338
          %v3348 = vmul.f32 %v603, %v1345
          %v3349 = vmul.f32 %v603, %v1352
          %v3350 = vmul.f32 %v603, %v1359
          %v3351 = vmul.f32 %v603, %v1366
          %v3352 = vmul.f32 %v603, %v1373
          %v3353 = vmul.f32 %v603, %v1380
          %v3354 = vmul.f32 %v603, %v1387
          %v3355 = vmul.f32 %v603, %v1394
          %v3356 = vmul.f32 %v603, %v1401
          %v3357 = vmul.f32 %v603, %v1408
          %v3358 = vmul.f32 %v603, %v1415
          %v3359 = vmul.f32 %v603, %v1422
          %v3360 = vmul.f32 %v603, %v1429
          %v3361 = vmul.f32 %v603, %v1436
          %v3362 = vmul.f32 %v603, %v1443
          %v3363 = vmul.f32 %v603, %v1450
          %v3364 = vmul.f32 %v603, %v1457
          %v3365 = vmul.f32 %v603, %v1464
          %v3366 = vmul.f32 %v603, %v1471
          %v3431 = vrot.slane %v3304, 7
          %v3432 = vsel %vm1036, %v3431, %v3303
          %v3433 = vrot.slane %v3305, 6
          %v3434 = vsel %vm1039, %v3433, %v3432
          %v3435 = vrot.slane %v3306, 5
          %v3436 = vsel %vm1042, %v3435, %v3434
          %v3437 = vrot.slane %v3307, 4
          %v3438 = vsel %vm1045, %v3437, %v3436
          %v3439 = vrot.slane %v3308, 3
          %v3440 = vsel %vm1048, %v3439, %v3438
          %v3441 = vrot.slane %v3309, 2
          %v3442 = vsel %vm1051, %v3441, %v3440
          %v3443 = vrot.slane %v3310, 1
          %v3444 = vsel %vm1054, %v3443, %v3442
          %v3445 = vrot.slane %v3312, 7
          %v3446 = vsel %vm1036, %v3445, %v3311
          %v3447 = vrot.slane %v3313, 6
          %v3448 = vsel %vm1039, %v3447, %v3446
          %v3449 = vrot.slane %v3314, 5
          %v3450 = vsel %vm1042, %v3449, %v3448
          %v3451 = vrot.slane %v3315, 4
          %v3452 = vsel %vm1045, %v3451, %v3450
          %v3453 = vrot.slane %v3316, 3
          %v3454 = vsel %vm1048, %v3453, %v3452
          %v3455 = vrot.slane %v3317, 2
          %v3456 = vsel %vm1051, %v3455, %v3454
          %v3457 = vrot.slane %v3318, 1
          %v3458 = vsel %vm1054, %v3457, %v3456
          %v3459 = vrot.slane %v3320, 7
          %v3460 = vsel %vm1036, %v3459, %v3319
          %v3461 = vrot.slane %v3321, 6
          %v3462 = vsel %vm1039, %v3461, %v3460
          %v3463 = vrot.slane %v3322, 5
          %v3464 = vsel %vm1042, %v3463, %v3462
          %v3465 = vrot.slane %v3323, 4
          %v3466 = vsel %vm1045, %v3465, %v3464
          %v3467 = vrot.slane %v3324, 3
          %v3468 = vsel %vm1048, %v3467, %v3466
          %v3469 = vrot.slane %v3325, 2
          %v3470 = vsel %vm1051, %v3469, %v3468
          %v3471 = vrot.slane %v3326, 1
          %v3472 = vsel %vm1054, %v3471, %v3470
          %v3473 = vrot.slane %v3328, 7
          %v3474 = vsel %vm1036, %v3473, %v3327
          %v3475 = vrot.slane %v3329, 6
          %v3476 = vsel %vm1039, %v3475, %v3474
          %v3477 = vrot.slane %v3330, 5
          %v3478 = vsel %vm1042, %v3477, %v3476
          %v3479 = vrot.slane %v3331, 4
          %v3480 = vsel %vm1045, %v3479, %v3478
          %v3481 = vrot.slane %v3332, 3
          %v3482 = vsel %vm1048, %v3481, %v3480
          %v3483 = vrot.slane %v3333, 2
          %v3484 = vsel %vm1051, %v3483, %v3482
          %v3485 = vrot.slane %v3334, 1
          %v3486 = vsel %vm1054, %v3485, %v3484
          %v3487 = vrot.slane %v3336, 7
          %v3488 = vsel %vm1036, %v3487, %v3335
          %v3489 = vrot.slane %v3337, 6
          %v3490 = vsel %vm1039, %v3489, %v3488
          %v3491 = vrot.slane %v3338, 5
          %v3492 = vsel %vm1042, %v3491, %v3490
          %v3493 = vrot.slane %v3339, 4
          %v3494 = vsel %vm1045, %v3493, %v3492
          %v3495 = vrot.slane %v3340, 3
          %v3496 = vsel %vm1048, %v3495, %v3494
          %v3497 = vrot.slane %v3341, 2
          %v3498 = vsel %vm1051, %v3497, %v3496
          %v3499 = vrot.slane %v3342, 1
          %v3500 = vsel %vm1054, %v3499, %v3498
          %v3501 = vrot.slane %v3344, 7
          %v3502 = vsel %vm1036, %v3501, %v3343
          %v3503 = vrot.slane %v3345, 6
          %v3504 = vsel %vm1039, %v3503, %v3502
          %v3505 = vrot.slane %v3346, 5
          %v3506 = vsel %vm1042, %v3505, %v3504
          %v3507 = vrot.slane %v3347, 4
          %v3508 = vsel %vm1045, %v3507, %v3506
          %v3509 = vrot.slane %v3348, 3
          %v3510 = vsel %vm1048, %v3509, %v3508
          %v3511 = vrot.slane %v3349, 2
          %v3512 = vsel %vm1051, %v3511, %v3510
          %v3513 = vrot.slane %v3350, 1
          %v3514 = vsel %vm1054, %v3513, %v3512
          %v3515 = vrot.slane %v3352, 7
          %v3516 = vsel %vm1036, %v3515, %v3351
          %v3517 = vrot.slane %v3353, 6
          %v3518 = vsel %vm1039, %v3517, %v3516
          %v3519 = vrot.slane %v3354, 5
          %v3520 = vsel %vm1042, %v3519, %v3518
          %v3521 = vrot.slane %v3355, 4
          %v3522 = vsel %vm1045, %v3521, %v3520
          %v3523 = vrot.slane %v3356, 3
          %v3524 = vsel %vm1048, %v3523, %v3522
          %v3525 = vrot.slane %v3357, 2
          %v3526 = vsel %vm1051, %v3525, %v3524
          %v3527 = vrot.slane %v3358, 1
          %v3528 = vsel %vm1054, %v3527, %v3526
          %v3529 = vrot.slane %v3360, 7
          %v3530 = vsel %vm1036, %v3529, %v3359
          %v3531 = vrot.slane %v3361, 6
          %v3532 = vsel %vm1039, %v3531, %v3530
          %v3533 = vrot.slane %v3362, 5
          %v3534 = vsel %vm1042, %v3533, %v3532
          %v3535 = vrot.slane %v3363, 4
          %v3536 = vsel %vm1045, %v3535, %v3534
          %v3537 = vrot.slane %v3364, 3
          %v3538 = vsel %vm1048, %v3537, %v3536
          %v3539 = vrot.slane %v3365, 2
          %v3540 = vsel %vm1051, %v3539, %v3538
          %v3541 = vrot.slane %v3366, 1
          %v3542 = vsel %vm1054, %v3541, %v3540
          %3543 = vset.pattern.permute.xlu0 0
          %3544 = vperm.xlu0 %3543, %v3444
          %v3545 = vpop.permute.xlu0 %3544
          %3546 = vset.pattern.permute.xlu0 0
          %3547 = vperm.xlu0 %3546, %v3458
          %v3548 = vpop.permute.xlu0 %3547
          %3549 = vset.pattern.permute.xlu0 0
          %3550 = vperm.xlu0 %3549, %v3472
          %v3551 = vpop.permute.xlu0 %3550
          %3552 = vset.pattern.permute.xlu0 0
          %3553 = vperm.xlu0 %3552, %v3486
          %v3554 = vpop.permute.xlu0 %3553
          %3555 = vset.pattern.permute.xlu0 0
          %3556 = vperm.xlu0 %3555, %v3500
          %v3557 = vpop.permute.xlu0 %3556
          %3558 = vset.pattern.permute.xlu0 0
          %3559 = vperm.xlu0 %3558, %v3514
          %v3560 = vpop.permute.xlu0 %3559
          %3561 = vset.pattern.permute.xlu0 0
          %3562 = vperm.xlu0 %3561, %v3528
          %v3563 = vpop.permute.xlu0 %3562
          %3564 = vset.pattern.permute.xlu0 0
          %3565 = vperm.xlu0 %3564, %v3542
          %v3566 = vpop.permute.xlu0 %3565
          %v3567 = vlaneseq
          %v3568 = vshrl.u32 %v3567, 7
          %v3569 = vsub.s32 %v1179, %v3568
          %v3570 = vrot.slane %v3545, %v3569
          %v3571 = vlaneseq
          %v3572 = vshrl.u32 %v3571, 7
          %v3573 = vsub.s32 %v1184, %v3572
          %v3574 = vrot.slane %v3548, %v3573
          %v3575 = vsel %vm1189, %v3574, %v3570
          %v3576 = vlaneseq
          %v3577 = vshrl.u32 %v3576, 7
          %v3578 = vsub.s32 %v1191, %v3577
          %v3579 = vrot.slane %v3551, %v3578
          %v3580 = vsel %vm1196, %v3579, %v3575
          %v3581 = vlaneseq
          %v3582 = vshrl.u32 %v3581, 7
          %v3583 = vsub.s32 %v1198, %v3582
          %v3584 = vrot.slane %v3554, %v3583
          %v3585 = vsel %vm1203, %v3584, %v3580
          %v3586 = vlaneseq
          %v3587 = vshrl.u32 %v3586, 7
          %v3588 = vsub.s32 %v1179, %v3587
          %v3589 = vrot.slane %v3557, %v3588
          %v3590 = vlaneseq
          %v3591 = vshrl.u32 %v3590, 7
          %v3592 = vsub.s32 %v1184, %v3591
          %v3593 = vrot.slane %v3560, %v3592
          %v3594 = vsel %vm1189, %v3593, %v3589
          %v3595 = vlaneseq
          %v3596 = vshrl.u32 %v3595, 7
          %v3597 = vsub.s32 %v1191, %v3596
          %v3598 = vrot.slane %v3563, %v3597
          %v3599 = vsel %vm1196, %v3598, %v3594
          %v3600 = vlaneseq
          %v3601 = vshrl.u32 %v3600, 7
          %v3602 = vsub.s32 %v1198, %v3601
          %v3603 = vrot.slane %v3566, %v3602
          %v3604 = vsel %vm1203, %v3603, %v3599
          %v3605 = vsel %vm1036, %v3604, %v3585
          %v3607 = vadd.f32 %v3302, %v3605
          %v3608 = vmul.f32 %v570, %v1836
          %v3609 = vmul.f32 %v570, %v1843
          %v3610 = vmul.f32 %v570, %v1850
          %v3611 = vmul.f32 %v570, %v1857
          %v3612 = vmul.f32 %v570, %v1864
          %v3613 = vmul.f32 %v570, %v1871
          %v3614 = vmul.f32 %v570, %v1878
          %v3615 = vmul.f32 %v570, %v1885
          %v3616 = vmul.f32 %v570, %v1892
          %v3617 = vmul.f32 %v570, %v1899
          %v3618 = vmul.f32 %v570, %v1906
          %v3619 = vmul.f32 %v570, %v1913
          %v3620 = vmul.f32 %v570, %v1920
          %v3621 = vmul.f32 %v570, %v1927
          %v3622 = vmul.f32 %v570, %v1934
          %v3623 = vmul.f32 %v570, %v1941
          %v3624 = vmul.f32 %v570, %v1948
          %v3625 = vmul.f32 %v570, %v1955
          %v3626 = vmul.f32 %v570, %v1962
          %v3627 = vmul.f32 %v570, %v1969
          %v3628 = vmul.f32 %v570, %v1976
          %v3629 = vmul.f32 %v570, %v1983
          %v3630 = vmul.f32 %v570, %v1990
          %v3631 = vmul.f32 %v570, %v1997
          %v3632 = vmul.f32 %v570, %v2004
          %v3633 = vmul.f32 %v570, %v2011
          %v3634 = vmul.f32 %v570, %v2018
          %v3635 = vmul.f32 %v570, %v2025
          %v3636 = vmul.f32 %v570, %v2032
          %v3637 = vmul.f32 %v570, %v2039
          %v3638 = vmul.f32 %v570, %v2046
          %v3639 = vmul.f32 %v570, %v2053
          %v3640 = vmul.f32 %v606, %v1836
          %v3641 = vmul.f32 %v606, %v1843
          %v3642 = vmul.f32 %v606, %v1850
          %v3643 = vmul.f32 %v606, %v1857
          %v3644 = vmul.f32 %v606, %v1864
          %v3645 = vmul.f32 %v606, %v1871
          %v3646 = vmul.f32 %v606, %v1878
          %v3647 = vmul.f32 %v606, %v1885
          %v3648 = vmul.f32 %v606, %v1892
          %v3649 = vmul.f32 %v606, %v1899
          %v3650 = vmul.f32 %v606, %v1906
          %v3651 = vmul.f32 %v606, %v1913
          %v3652 = vmul.f32 %v606, %v1920
          %v3653 = vmul.f32 %v606, %v1927
          %v3654 = vmul.f32 %v606, %v1934
          %v3655 = vmul.f32 %v606, %v1941
          %v3656 = vmul.f32 %v606, %v1948
          %v3657 = vmul.f32 %v606, %v1955
          %v3658 = vmul.f32 %v606, %v1962
          %v3659 = vmul.f32 %v606, %v1969
          %v3660 = vmul.f32 %v606, %v1976
          %v3661 = vmul.f32 %v606, %v1983
          %v3662 = vmul.f32 %v606, %v1990
          %v3663 = vmul.f32 %v606, %v1997
          %v3664 = vmul.f32 %v606, %v2004
          %v3665 = vmul.f32 %v606, %v2011
          %v3666 = vmul.f32 %v606, %v2018
          %v3667 = vmul.f32 %v606, %v2025
          %v3668 = vmul.f32 %v606, %v2032
          %v3669 = vmul.f32 %v606, %v2039
          %v3670 = vmul.f32 %v606, %v2046
          %v3671 = vmul.f32 %v606, %v2053
          %v3736 = vrot.slane %v3609, 7
          %v3737 = vsel %vm1036, %v3736, %v3608
          %v3738 = vrot.slane %v3610, 6
          %v3739 = vsel %vm1039, %v3738, %v3737
          %v3740 = vrot.slane %v3611, 5
          %v3741 = vsel %vm1042, %v3740, %v3739
          %v3742 = vrot.slane %v3612, 4
          %v3743 = vsel %vm1045, %v3742, %v3741
          %v3744 = vrot.slane %v3613, 3
          %v3745 = vsel %vm1048, %v3744, %v3743
          %v3746 = vrot.slane %v3614, 2
          %v3747 = vsel %vm1051, %v3746, %v3745
          %v3748 = vrot.slane %v3615, 1
          %v3749 = vsel %vm1054, %v3748, %v3747
          %v3750 = vrot.slane %v3617, 7
          %v3751 = vsel %vm1036, %v3750, %v3616
          %v3752 = vrot.slane %v3618, 6
          %v3753 = vsel %vm1039, %v3752, %v3751
          %v3754 = vrot.slane %v3619, 5
          %v3755 = vsel %vm1042, %v3754, %v3753
          %v3756 = vrot.slane %v3620, 4
          %v3757 = vsel %vm1045, %v3756, %v3755
          %v3758 = vrot.slane %v3621, 3
          %v3759 = vsel %vm1048, %v3758, %v3757
          %v3760 = vrot.slane %v3622, 2
          %v3761 = vsel %vm1051, %v3760, %v3759
          %v3762 = vrot.slane %v3623, 1
          %v3763 = vsel %vm1054, %v3762, %v3761
          %v3764 = vrot.slane %v3625, 7
          %v3765 = vsel %vm1036, %v3764, %v3624
          %v3766 = vrot.slane %v3626, 6
          %v3767 = vsel %vm1039, %v3766, %v3765
          %v3768 = vrot.slane %v3627, 5
          %v3769 = vsel %vm1042, %v3768, %v3767
          %v3770 = vrot.slane %v3628, 4
          %v3771 = vsel %vm1045, %v3770, %v3769
          %v3772 = vrot.slane %v3629, 3
          %v3773 = vsel %vm1048, %v3772, %v3771
          %v3774 = vrot.slane %v3630, 2
          %v3775 = vsel %vm1051, %v3774, %v3773
          %v3776 = vrot.slane %v3631, 1
          %v3777 = vsel %vm1054, %v3776, %v3775
          %v3778 = vrot.slane %v3633, 7
          %v3779 = vsel %vm1036, %v3778, %v3632
          %v3780 = vrot.slane %v3634, 6
          %v3781 = vsel %vm1039, %v3780, %v3779
          %v3782 = vrot.slane %v3635, 5
          %v3783 = vsel %vm1042, %v3782, %v3781
          %v3784 = vrot.slane %v3636, 4
          %v3785 = vsel %vm1045, %v3784, %v3783
          %v3786 = vrot.slane %v3637, 3
          %v3787 = vsel %vm1048, %v3786, %v3785
          %v3788 = vrot.slane %v3638, 2
          %v3789 = vsel %vm1051, %v3788, %v3787
          %v3790 = vrot.slane %v3639, 1
          %v3791 = vsel %vm1054, %v3790, %v3789
          %v3792 = vrot.slane %v3641, 7
          %v3793 = vsel %vm1036, %v3792, %v3640
          %v3794 = vrot.slane %v3642, 6
          %v3795 = vsel %vm1039, %v3794, %v3793
          %v3796 = vrot.slane %v3643, 5
          %v3797 = vsel %vm1042, %v3796, %v3795
          %v3798 = vrot.slane %v3644, 4
          %v3799 = vsel %vm1045, %v3798, %v3797
          %v3800 = vrot.slane %v3645, 3
          %v3801 = vsel %vm1048, %v3800, %v3799
          %v3802 = vrot.slane %v3646, 2
          %v3803 = vsel %vm1051, %v3802, %v3801
          %v3804 = vrot.slane %v3647, 1
          %v3805 = vsel %vm1054, %v3804, %v3803
          %v3806 = vrot.slane %v3649, 7
          %v3807 = vsel %vm1036, %v3806, %v3648
          %v3808 = vrot.slane %v3650, 6
          %v3809 = vsel %vm1039, %v3808, %v3807
          %v3810 = vrot.slane %v3651, 5
          %v3811 = vsel %vm1042, %v3810, %v3809
          %v3812 = vrot.slane %v3652, 4
          %v3813 = vsel %vm1045, %v3812, %v3811
          %v3814 = vrot.slane %v3653, 3
          %v3815 = vsel %vm1048, %v3814, %v3813
          %v3816 = vrot.slane %v3654, 2
          %v3817 = vsel %vm1051, %v3816, %v3815
          %v3818 = vrot.slane %v3655, 1
          %v3819 = vsel %vm1054, %v3818, %v3817
          %v3820 = vrot.slane %v3657, 7
          %v3821 = vsel %vm1036, %v3820, %v3656
          %v3822 = vrot.slane %v3658, 6
          %v3823 = vsel %vm1039, %v3822, %v3821
          %v3824 = vrot.slane %v3659, 5
          %v3825 = vsel %vm1042, %v3824, %v3823
          %v3826 = vrot.slane %v3660, 4
          %v3827 = vsel %vm1045, %v3826, %v3825
          %v3828 = vrot.slane %v3661, 3
          %v3829 = vsel %vm1048, %v3828, %v3827
          %v3830 = vrot.slane %v3662, 2
          %v3831 = vsel %vm1051, %v3830, %v3829
          %v3832 = vrot.slane %v3663, 1
          %v3833 = vsel %vm1054, %v3832, %v3831
          %v3834 = vrot.slane %v3665, 7
          %v3835 = vsel %vm1036, %v3834, %v3664
          %v3836 = vrot.slane %v3666, 6
          %v3837 = vsel %vm1039, %v3836, %v3835
          %v3838 = vrot.slane %v3667, 5
          %v3839 = vsel %vm1042, %v3838, %v3837
          %v3840 = vrot.slane %v3668, 4
          %v3841 = vsel %vm1045, %v3840, %v3839
          %v3842 = vrot.slane %v3669, 3
          %v3843 = vsel %vm1048, %v3842, %v3841
          %v3844 = vrot.slane %v3670, 2
          %v3845 = vsel %vm1051, %v3844, %v3843
          %v3846 = vrot.slane %v3671, 1
          %v3847 = vsel %vm1054, %v3846, %v3845
          %3848 = vset.pattern.permute.xlu0 0
          %3849 = vperm.xlu0 %3848, %v3749
          %v3850 = vpop.permute.xlu0 %3849
          %3851 = vset.pattern.permute.xlu0 0
          %3852 = vperm.xlu0 %3851, %v3763
          %v3853 = vpop.permute.xlu0 %3852
          %3854 = vset.pattern.permute.xlu0 0
          %3855 = vperm.xlu0 %3854, %v3777
          %v3856 = vpop.permute.xlu0 %3855
          %3857 = vset.pattern.permute.xlu0 0
          %3858 = vperm.xlu0 %3857, %v3791
          %v3859 = vpop.permute.xlu0 %3858
          %3860 = vset.pattern.permute.xlu0 0
          %3861 = vperm.xlu0 %3860, %v3805
          %v3862 = vpop.permute.xlu0 %3861
          %3863 = vset.pattern.permute.xlu0 0
          %3864 = vperm.xlu0 %3863, %v3819
          %v3865 = vpop.permute.xlu0 %3864
          %3866 = vset.pattern.permute.xlu0 0
          %3867 = vperm.xlu0 %3866, %v3833
          %v3868 = vpop.permute.xlu0 %3867
          %3869 = vset.pattern.permute.xlu0 0
          %3870 = vperm.xlu0 %3869, %v3847
          %v3871 = vpop.permute.xlu0 %3870
          %v3872 = vlaneseq
          %v3873 = vshrl.u32 %v3872, 7
          %v3874 = vsub.s32 %v1179, %v3873
          %v3875 = vrot.slane %v3850, %v3874
          %v3876 = vlaneseq
          %v3877 = vshrl.u32 %v3876, 7
          %v3878 = vsub.s32 %v1184, %v3877
          %v3879 = vrot.slane %v3853, %v3878
          %v3880 = vsel %vm1189, %v3879, %v3875
          %v3881 = vlaneseq
          %v3882 = vshrl.u32 %v3881, 7
          %v3883 = vsub.s32 %v1191, %v3882
          %v3884 = vrot.slane %v3856, %v3883
          %v3885 = vsel %vm1196, %v3884, %v3880
          %v3886 = vlaneseq
          %v3887 = vshrl.u32 %v3886, 7
          %v3888 = vsub.s32 %v1198, %v3887
          %v3889 = vrot.slane %v3859, %v3888
          %v3890 = vsel %vm1203, %v3889, %v3885
          %v3891 = vlaneseq
          %v3892 = vshrl.u32 %v3891, 7
          %v3893 = vsub.s32 %v1179, %v3892
          %v3894 = vrot.slane %v3862, %v3893
          %v3895 = vlaneseq
          %v3896 = vshrl.u32 %v3895, 7
          %v3897 = vsub.s32 %v1184, %v3896
          %v3898 = vrot.slane %v3865, %v3897
          %v3899 = vsel %vm1189, %v3898, %v3894
          %v3900 = vlaneseq
          %v3901 = vshrl.u32 %v3900, 7
          %v3902 = vsub.s32 %v1191, %v3901
          %v3903 = vrot.slane %v3868, %v3902
          %v3904 = vsel %vm1196, %v3903, %v3899
          %v3905 = vlaneseq
          %v3906 = vshrl.u32 %v3905, 7
          %v3907 = vsub.s32 %v1198, %v3906
          %v3908 = vrot.slane %v3871, %v3907
          %v3909 = vsel %vm1203, %v3908, %v3904
          %v3910 = vsel %vm1036, %v3909, %v3890
          %v3912 = vadd.f32 %v3607, %v3910
          %v3913 = vmul.f32 %v573, %v2418
          %v3914 = vmul.f32 %v573, %v2425
          %v3915 = vmul.f32 %v573, %v2432
          %v3916 = vmul.f32 %v573, %v2439
          %v3917 = vmul.f32 %v573, %v2446
          %v3918 = vmul.f32 %v573, %v2453
          %v3919 = vmul.f32 %v573, %v2460
          %v3920 = vmul.f32 %v573, %v2467
          %v3921 = vmul.f32 %v573, %v2474
          %v3922 = vmul.f32 %v573, %v2481
          %v3923 = vmul.f32 %v573, %v2488
          %v3924 = vmul.f32 %v573, %v2495
          %v3925 = vmul.f32 %v573, %v2502
          %v3926 = vmul.f32 %v573, %v2509
          %v3927 = vmul.f32 %v573, %v2516
          %v3928 = vmul.f32 %v573, %v2523
          %v3929 = vmul.f32 %v573, %v2530
          %v3930 = vmul.f32 %v573, %v2537
          %v3931 = vmul.f32 %v573, %v2544
          %v3932 = vmul.f32 %v573, %v2551
          %v3933 = vmul.f32 %v573, %v2558
          %v3934 = vmul.f32 %v573, %v2565
          %v3935 = vmul.f32 %v573, %v2572
          %v3936 = vmul.f32 %v573, %v2579
          %v3937 = vmul.f32 %v573, %v2586
          %v3938 = vmul.f32 %v573, %v2593
          %v3939 = vmul.f32 %v573, %v2600
          %v3940 = vmul.f32 %v573, %v2607
          %v3941 = vmul.f32 %v573, %v2614
          %v3942 = vmul.f32 %v573, %v2621
          %v3943 = vmul.f32 %v573, %v2628
          %v3944 = vmul.f32 %v573, %v2635
          %v3945 = vmul.f32 %v609, %v2418
          %v3946 = vmul.f32 %v609, %v2425
          %v3947 = vmul.f32 %v609, %v2432
          %v3948 = vmul.f32 %v609, %v2439
          %v3949 = vmul.f32 %v609, %v2446
          %v3950 = vmul.f32 %v609, %v2453
          %v3951 = vmul.f32 %v609, %v2460
          %v3952 = vmul.f32 %v609, %v2467
          %v3953 = vmul.f32 %v609, %v2474
          %v3954 = vmul.f32 %v609, %v2481
          %v3955 = vmul.f32 %v609, %v2488
          %v3956 = vmul.f32 %v609, %v2495
          %v3957 = vmul.f32 %v609, %v2502
          %v3958 = vmul.f32 %v609, %v2509
          %v3959 = vmul.f32 %v609, %v2516
          %v3960 = vmul.f32 %v609, %v2523
          %v3961 = vmul.f32 %v609, %v2530
          %v3962 = vmul.f32 %v609, %v2537
          %v3963 = vmul.f32 %v609, %v2544
          %v3964 = vmul.f32 %v609, %v2551
          %v3965 = vmul.f32 %v609, %v2558
          %v3966 = vmul.f32 %v609, %v2565
          %v3967 = vmul.f32 %v609, %v2572
          %v3968 = vmul.f32 %v609, %v2579
          %v3969 = vmul.f32 %v609, %v2586
          %v3970 = vmul.f32 %v609, %v2593
          %v3971 = vmul.f32 %v609, %v2600
          %v3972 = vmul.f32 %v609, %v2607
          %v3973 = vmul.f32 %v609, %v2614
          %v3974 = vmul.f32 %v609, %v2621
          %v3975 = vmul.f32 %v609, %v2628
          %v3976 = vmul.f32 %v609, %v2635
          %v4041 = vrot.slane %v3914, 7
          %v4042 = vsel %vm1036, %v4041, %v3913
          %v4043 = vrot.slane %v3915, 6
          %v4044 = vsel %vm1039, %v4043, %v4042
          %v4045 = vrot.slane %v3916, 5
          %v4046 = vsel %vm1042, %v4045, %v4044
          %v4047 = vrot.slane %v3917, 4
          %v4048 = vsel %vm1045, %v4047, %v4046
          %v4049 = vrot.slane %v3918, 3
          %v4050 = vsel %vm1048, %v4049, %v4048
          %v4051 = vrot.slane %v3919, 2
          %v4052 = vsel %vm1051, %v4051, %v4050
          %v4053 = vrot.slane %v3920, 1
          %v4054 = vsel %vm1054, %v4053, %v4052
          %v4055 = vrot.slane %v3922, 7
          %v4056 = vsel %vm1036, %v4055, %v3921
          %v4057 = vrot.slane %v3923, 6
          %v4058 = vsel %vm1039, %v4057, %v4056
          %v4059 = vrot.slane %v3924, 5
          %v4060 = vsel %vm1042, %v4059, %v4058
          %v4061 = vrot.slane %v3925, 4
          %v4062 = vsel %vm1045, %v4061, %v4060
          %v4063 = vrot.slane %v3926, 3
          %v4064 = vsel %vm1048, %v4063, %v4062
          %v4065 = vrot.slane %v3927, 2
          %v4066 = vsel %vm1051, %v4065, %v4064
          %v4067 = vrot.slane %v3928, 1
          %v4068 = vsel %vm1054, %v4067, %v4066
          %v4069 = vrot.slane %v3930, 7
          %v4070 = vsel %vm1036, %v4069, %v3929
          %v4071 = vrot.slane %v3931, 6
          %v4072 = vsel %vm1039, %v4071, %v4070
          %v4073 = vrot.slane %v3932, 5
          %v4074 = vsel %vm1042, %v4073, %v4072
          %v4075 = vrot.slane %v3933, 4
          %v4076 = vsel %vm1045, %v4075, %v4074
          %v4077 = vrot.slane %v3934, 3
          %v4078 = vsel %vm1048, %v4077, %v4076
          %v4079 = vrot.slane %v3935, 2
          %v4080 = vsel %vm1051, %v4079, %v4078
          %v4081 = vrot.slane %v3936, 1
          %v4082 = vsel %vm1054, %v4081, %v4080
          %v4083 = vrot.slane %v3938, 7
          %v4084 = vsel %vm1036, %v4083, %v3937
          %v4085 = vrot.slane %v3939, 6
          %v4086 = vsel %vm1039, %v4085, %v4084
          %v4087 = vrot.slane %v3940, 5
          %v4088 = vsel %vm1042, %v4087, %v4086
          %v4089 = vrot.slane %v3941, 4
          %v4090 = vsel %vm1045, %v4089, %v4088
          %v4091 = vrot.slane %v3942, 3
          %v4092 = vsel %vm1048, %v4091, %v4090
          %v4093 = vrot.slane %v3943, 2
          %v4094 = vsel %vm1051, %v4093, %v4092
          %v4095 = vrot.slane %v3944, 1
          %v4096 = vsel %vm1054, %v4095, %v4094
          %v4097 = vrot.slane %v3946, 7
          %v4098 = vsel %vm1036, %v4097, %v3945
          %v4099 = vrot.slane %v3947, 6
          %v4100 = vsel %vm1039, %v4099, %v4098
          %v4101 = vrot.slane %v3948, 5
          %v4102 = vsel %vm1042, %v4101, %v4100
          %v4103 = vrot.slane %v3949, 4
          %v4104 = vsel %vm1045, %v4103, %v4102
          %v4105 = vrot.slane %v3950, 3
          %v4106 = vsel %vm1048, %v4105, %v4104
          %v4107 = vrot.slane %v3951, 2
          %v4108 = vsel %vm1051, %v4107, %v4106
          %v4109 = vrot.slane %v3952, 1
          %v4110 = vsel %vm1054, %v4109, %v4108
          %v4111 = vrot.slane %v3954, 7
          %v4112 = vsel %vm1036, %v4111, %v3953
          %v4113 = vrot.slane %v3955, 6
          %v4114 = vsel %vm1039, %v4113, %v4112
          %v4115 = vrot.slane %v3956, 5
          %v4116 = vsel %vm1042, %v4115, %v4114
          %v4117 = vrot.slane %v3957, 4
          %v4118 = vsel %vm1045, %v4117, %v4116
          %v4119 = vrot.slane %v3958, 3
          %v4120 = vsel %vm1048, %v4119, %v4118
          %v4121 = vrot.slane %v3959, 2
          %v4122 = vsel %vm1051, %v4121, %v4120
          %v4123 = vrot.slane %v3960, 1
          %v4124 = vsel %vm1054, %v4123, %v4122
          %v4125 = vrot.slane %v3962, 7
          %v4126 = vsel %vm1036, %v4125, %v3961
          %v4127 = vrot.slane %v3963, 6
          %v4128 = vsel %vm1039, %v4127, %v4126
          %v4129 = vrot.slane %v3964, 5
          %v4130 = vsel %vm1042, %v4129, %v4128
          %v4131 = vrot.slane %v3965, 4
          %v4132 = vsel %vm1045, %v4131, %v4130
          %v4133 = vrot.slane %v3966, 3
          %v4134 = vsel %vm1048, %v4133, %v4132
          %v4135 = vrot.slane %v3967, 2
          %v4136 = vsel %vm1051, %v4135, %v4134
          %v4137 = vrot.slane %v3968, 1
          %v4138 = vsel %vm1054, %v4137, %v4136
          %v4139 = vrot.slane %v3970, 7
          %v4140 = vsel %vm1036, %v4139, %v3969
          %v4141 = vrot.slane %v3971, 6
          %v4142 = vsel %vm1039, %v4141, %v4140
          %v4143 = vrot.slane %v3972, 5
          %v4144 = vsel %vm1042, %v4143, %v4142
          %v4145 = vrot.slane %v3973, 4
          %v4146 = vsel %vm1045, %v4145, %v4144
          %v4147 = vrot.slane %v3974, 3
          %v4148 = vsel %vm1048, %v4147, %v4146
          %v4149 = vrot.slane %v3975, 2
          %v4150 = vsel %vm1051, %v4149, %v4148
          %v4151 = vrot.slane %v3976, 1
          %v4152 = vsel %vm1054, %v4151, %v4150
          %4153 = vset.pattern.permute.xlu0 0
          %4154 = vperm.xlu0 %4153, %v4054
          %v4155 = vpop.permute.xlu0 %4154
          %4156 = vset.pattern.permute.xlu0 0
          %4157 = vperm.xlu0 %4156, %v4068
          %v4158 = vpop.permute.xlu0 %4157
          %4159 = vset.pattern.permute.xlu0 0
          %4160 = vperm.xlu0 %4159, %v4082
          %v4161 = vpop.permute.xlu0 %4160
          %4162 = vset.pattern.permute.xlu0 0
          %4163 = vperm.xlu0 %4162, %v4096
          %v4164 = vpop.permute.xlu0 %4163
          %4165 = vset.pattern.permute.xlu0 0
          %4166 = vperm.xlu0 %4165, %v4110
          %v4167 = vpop.permute.xlu0 %4166
          %4168 = vset.pattern.permute.xlu0 0
          %4169 = vperm.xlu0 %4168, %v4124
          %v4170 = vpop.permute.xlu0 %4169
          %4171 = vset.pattern.permute.xlu0 0
          %4172 = vperm.xlu0 %4171, %v4138
          %v4173 = vpop.permute.xlu0 %4172
          %4174 = vset.pattern.permute.xlu0 0
          %4175 = vperm.xlu0 %4174, %v4152
          %v4176 = vpop.permute.xlu0 %4175
          %v4177 = vlaneseq
          %v4178 = vshrl.u32 %v4177, 7
          %v4179 = vsub.s32 %v1179, %v4178
          %v4180 = vrot.slane %v4155, %v4179
          %v4181 = vlaneseq
          %v4182 = vshrl.u32 %v4181, 7
          %v4183 = vsub.s32 %v1184, %v4182
          %v4184 = vrot.slane %v4158, %v4183
          %v4185 = vsel %vm1189, %v4184, %v4180
          %v4186 = vlaneseq
          %v4187 = vshrl.u32 %v4186, 7
          %v4188 = vsub.s32 %v1191, %v4187
          %v4189 = vrot.slane %v4161, %v4188
          %v4190 = vsel %vm1196, %v4189, %v4185
          %v4191 = vlaneseq
          %v4192 = vshrl.u32 %v4191, 7
          %v4193 = vsub.s32 %v1198, %v4192
          %v4194 = vrot.slane %v4164, %v4193
          %v4195 = vsel %vm1203, %v4194, %v4190
          %v4196 = vlaneseq
          %v4197 = vshrl.u32 %v4196, 7
          %v4198 = vsub.s32 %v1179, %v4197
          %v4199 = vrot.slane %v4167, %v4198
          %v4200 = vlaneseq
          %v4201 = vshrl.u32 %v4200, 7
          %v4202 = vsub.s32 %v1184, %v4201
          %v4203 = vrot.slane %v4170, %v4202
          %v4204 = vsel %vm1189, %v4203, %v4199
          %v4205 = vlaneseq
          %v4206 = vshrl.u32 %v4205, 7
          %v4207 = vsub.s32 %v1191, %v4206
          %v4208 = vrot.slane %v4173, %v4207
          %v4209 = vsel %vm1196, %v4208, %v4204
          %v4210 = vlaneseq
          %v4211 = vshrl.u32 %v4210, 7
          %v4212 = vsub.s32 %v1198, %v4211
          %v4213 = vrot.slane %v4176, %v4212
          %v4214 = vsel %vm1203, %v4213, %v4209
          %v4215 = vsel %vm1036, %v4214, %v4195
          %v4217 = vadd.f32 %v3912, %v4215
          %v4220 = vunpack.c.l.s4 1966171168
          %v4221 = vunpack.c.0.s8 %v4220
          %v4222 = vlaneseq
          %v4223 = vshrl.u32 %v4222, 7
          %v4224 = vsub.s32 %v4221, %v4223
          %v4225 = vrot.slane %v4217, %v4224
          %v4226 = vcombine.high %v4225, %v4225
          %v4228 = vunpack.c.l.s4 1966171168
          %v4229 = vunpack.c.0.s8 %v4228
          %v4230 = vlaneseq
          %v4231 = vshrl.u32 %v4230, 7
          %v4232 = vsub.s32 %v4229, %v4231
          %v4233 = vrot.slane %v4225, %v4232
          %v4235 = vunpack.c.l.s4 1966171168
          %v4236 = vunpack.c.0.s8 %v4235
          %v4237 = vlaneseq
          %v4238 = vshrl.u32 %v4237, 7
          %v4239 = vsub.s32 %v4236, %v4238
          %v4240 = vrot.slane %v4226, %v4239
          %v4241 = vmax.f32 %v2972, %v4217
          %v4242 = vmul.f32 %v576, %v657
          %v4243 = vmul.f32 %v576, %v664
          %v4244 = vmul.f32 %v576, %v671
          %v4245 = vmul.f32 %v576, %v678
          %v4246 = vmul.f32 %v576, %v685
          %v4247 = vmul.f32 %v576, %v692
          %v4248 = vmul.f32 %v576, %v699
          %v4249 = vmul.f32 %v576, %v706
          %v4250 = vmul.f32 %v576, %v713
          %v4251 = vmul.f32 %v576, %v720
          %v4252 = vmul.f32 %v576, %v727
          %v4253 = vmul.f32 %v576, %v734
          %v4254 = vmul.f32 %v576, %v741
          %v4255 = vmul.f32 %v576, %v748
          %v4256 = vmul.f32 %v576, %v755
          %v4257 = vmul.f32 %v576, %v762
          %v4258 = vmul.f32 %v576, %v769
          %v4259 = vmul.f32 %v576, %v776
          %v4260 = vmul.f32 %v576, %v783
          %v4261 = vmul.f32 %v576, %v790
          %v4262 = vmul.f32 %v576, %v797
          %v4263 = vmul.f32 %v576, %v804
          %v4264 = vmul.f32 %v576, %v811
          %v4265 = vmul.f32 %v576, %v818
          %v4266 = vmul.f32 %v576, %v825
          %v4267 = vmul.f32 %v576, %v832
          %v4268 = vmul.f32 %v576, %v839
          %v4269 = vmul.f32 %v576, %v846
          %v4270 = vmul.f32 %v576, %v853
          %v4271 = vmul.f32 %v576, %v860
          %v4272 = vmul.f32 %v576, %v867
          %v4273 = vmul.f32 %v576, %v874
          %v4274 = vmul.f32 %v612, %v657
          %v4275 = vmul.f32 %v612, %v664
          %v4276 = vmul.f32 %v612, %v671
          %v4277 = vmul.f32 %v612, %v678
          %v4278 = vmul.f32 %v612, %v685
          %v4279 = vmul.f32 %v612, %v692
          %v4280 = vmul.f32 %v612, %v699
          %v4281 = vmul.f32 %v612, %v706
          %v4282 = vmul.f32 %v612, %v713
          %v4283 = vmul.f32 %v612, %v720
          %v4284 = vmul.f32 %v612, %v727
          %v4285 = vmul.f32 %v612, %v734
          %v4286 = vmul.f32 %v612, %v741
          %v4287 = vmul.f32 %v612, %v748
          %v4288 = vmul.f32 %v612, %v755
          %v4289 = vmul.f32 %v612, %v762
          %v4290 = vmul.f32 %v612, %v769
          %v4291 = vmul.f32 %v612, %v776
          %v4292 = vmul.f32 %v612, %v783
          %v4293 = vmul.f32 %v612, %v790
          %v4294 = vmul.f32 %v612, %v797
          %v4295 = vmul.f32 %v612, %v804
          %v4296 = vmul.f32 %v612, %v811
          %v4297 = vmul.f32 %v612, %v818
          %v4298 = vmul.f32 %v612, %v825
          %v4299 = vmul.f32 %v612, %v832
          %v4300 = vmul.f32 %v612, %v839
          %v4301 = vmul.f32 %v612, %v846
          %v4302 = vmul.f32 %v612, %v853
          %v4303 = vmul.f32 %v612, %v860
          %v4304 = vmul.f32 %v612, %v867
          %v4305 = vmul.f32 %v612, %v874
          %v4370 = vrot.slane %v4243, 7
          %v4371 = vsel %vm1036, %v4370, %v4242
          %v4372 = vrot.slane %v4244, 6
          %v4373 = vsel %vm1039, %v4372, %v4371
          %v4374 = vrot.slane %v4245, 5
          %v4375 = vsel %vm1042, %v4374, %v4373
          %v4376 = vrot.slane %v4246, 4
          %v4377 = vsel %vm1045, %v4376, %v4375
          %v4378 = vrot.slane %v4247, 3
          %v4379 = vsel %vm1048, %v4378, %v4377
          %v4380 = vrot.slane %v4248, 2
          %v4381 = vsel %vm1051, %v4380, %v4379
          %v4382 = vrot.slane %v4249, 1
          %v4383 = vsel %vm1054, %v4382, %v4381
          %v4384 = vrot.slane %v4251, 7
          %v4385 = vsel %vm1036, %v4384, %v4250
          %v4386 = vrot.slane %v4252, 6
          %v4387 = vsel %vm1039, %v4386, %v4385
          %v4388 = vrot.slane %v4253, 5
          %v4389 = vsel %vm1042, %v4388, %v4387
          %v4390 = vrot.slane %v4254, 4
          %v4391 = vsel %vm1045, %v4390, %v4389
          %v4392 = vrot.slane %v4255, 3
          %v4393 = vsel %vm1048, %v4392, %v4391
          %v4394 = vrot.slane %v4256, 2
          %v4395 = vsel %vm1051, %v4394, %v4393
          %v4396 = vrot.slane %v4257, 1
          %v4397 = vsel %vm1054, %v4396, %v4395
          %v4398 = vrot.slane %v4259, 7
          %v4399 = vsel %vm1036, %v4398, %v4258
          %v4400 = vrot.slane %v4260, 6
          %v4401 = vsel %vm1039, %v4400, %v4399
          %v4402 = vrot.slane %v4261, 5
          %v4403 = vsel %vm1042, %v4402, %v4401
          %v4404 = vrot.slane %v4262, 4
          %v4405 = vsel %vm1045, %v4404, %v4403
          %v4406 = vrot.slane %v4263, 3
          %v4407 = vsel %vm1048, %v4406, %v4405
          %v4408 = vrot.slane %v4264, 2
          %v4409 = vsel %vm1051, %v4408, %v4407
          %v4410 = vrot.slane %v4265, 1
          %v4411 = vsel %vm1054, %v4410, %v4409
          %v4412 = vrot.slane %v4267, 7
          %v4413 = vsel %vm1036, %v4412, %v4266
          %v4414 = vrot.slane %v4268, 6
          %v4415 = vsel %vm1039, %v4414, %v4413
          %v4416 = vrot.slane %v4269, 5
          %v4417 = vsel %vm1042, %v4416, %v4415
          %v4418 = vrot.slane %v4270, 4
          %v4419 = vsel %vm1045, %v4418, %v4417
          %v4420 = vrot.slane %v4271, 3
          %v4421 = vsel %vm1048, %v4420, %v4419
          %v4422 = vrot.slane %v4272, 2
          %v4423 = vsel %vm1051, %v4422, %v4421
          %v4424 = vrot.slane %v4273, 1
          %v4425 = vsel %vm1054, %v4424, %v4423
          %v4426 = vrot.slane %v4275, 7
          %v4427 = vsel %vm1036, %v4426, %v4274
          %v4428 = vrot.slane %v4276, 6
          %v4429 = vsel %vm1039, %v4428, %v4427
          %v4430 = vrot.slane %v4277, 5
          %v4431 = vsel %vm1042, %v4430, %v4429
          %v4432 = vrot.slane %v4278, 4
          %v4433 = vsel %vm1045, %v4432, %v4431
          %v4434 = vrot.slane %v4279, 3
          %v4435 = vsel %vm1048, %v4434, %v4433
          %v4436 = vrot.slane %v4280, 2
          %v4437 = vsel %vm1051, %v4436, %v4435
          %v4438 = vrot.slane %v4281, 1
          %v4439 = vsel %vm1054, %v4438, %v4437
          %v4440 = vrot.slane %v4283, 7
          %v4441 = vsel %vm1036, %v4440, %v4282
          %v4442 = vrot.slane %v4284, 6
          %v4443 = vsel %vm1039, %v4442, %v4441
          %v4444 = vrot.slane %v4285, 5
          %v4445 = vsel %vm1042, %v4444, %v4443
          %v4446 = vrot.slane %v4286, 4
          %v4447 = vsel %vm1045, %v4446, %v4445
          %v4448 = vrot.slane %v4287, 3
          %v4449 = vsel %vm1048, %v4448, %v4447
          %v4450 = vrot.slane %v4288, 2
          %v4451 = vsel %vm1051, %v4450, %v4449
          %v4452 = vrot.slane %v4289, 1
          %v4453 = vsel %vm1054, %v4452, %v4451
          %v4454 = vrot.slane %v4291, 7
          %v4455 = vsel %vm1036, %v4454, %v4290
          %v4456 = vrot.slane %v4292, 6
          %v4457 = vsel %vm1039, %v4456, %v4455
          %v4458 = vrot.slane %v4293, 5
          %v4459 = vsel %vm1042, %v4458, %v4457
          %v4460 = vrot.slane %v4294, 4
          %v4461 = vsel %vm1045, %v4460, %v4459
          %v4462 = vrot.slane %v4295, 3
          %v4463 = vsel %vm1048, %v4462, %v4461
          %v4464 = vrot.slane %v4296, 2
          %v4465 = vsel %vm1051, %v4464, %v4463
          %v4466 = vrot.slane %v4297, 1
          %v4467 = vsel %vm1054, %v4466, %v4465
          %v4468 = vrot.slane %v4299, 7
          %v4469 = vsel %vm1036, %v4468, %v4298
          %v4470 = vrot.slane %v4300, 6
          %v4471 = vsel %vm1039, %v4470, %v4469
          %v4472 = vrot.slane %v4301, 5
          %v4473 = vsel %vm1042, %v4472, %v4471
          %v4474 = vrot.slane %v4302, 4
          %v4475 = vsel %vm1045, %v4474, %v4473
          %v4476 = vrot.slane %v4303, 3
          %v4477 = vsel %vm1048, %v4476, %v4475
          %v4478 = vrot.slane %v4304, 2
          %v4479 = vsel %vm1051, %v4478, %v4477
          %v4480 = vrot.slane %v4305, 1
          %v4481 = vsel %vm1054, %v4480, %v4479
          %4482 = vset.pattern.permute.xlu0 0
          %4483 = vperm.xlu0 %4482, %v4383
          %v4484 = vpop.permute.xlu0 %4483
          %4485 = vset.pattern.permute.xlu0 0
          %4486 = vperm.xlu0 %4485, %v4397
          %v4487 = vpop.permute.xlu0 %4486
          %4488 = vset.pattern.permute.xlu0 0
          %4489 = vperm.xlu0 %4488, %v4411
          %v4490 = vpop.permute.xlu0 %4489
          %4491 = vset.pattern.permute.xlu0 0
          %4492 = vperm.xlu0 %4491, %v4425
          %v4493 = vpop.permute.xlu0 %4492
          %4494 = vset.pattern.permute.xlu0 0
          %4495 = vperm.xlu0 %4494, %v4439
          %v4496 = vpop.permute.xlu0 %4495
          %4497 = vset.pattern.permute.xlu0 0
          %4498 = vperm.xlu0 %4497, %v4453
          %v4499 = vpop.permute.xlu0 %4498
          %4500 = vset.pattern.permute.xlu0 0
          %4501 = vperm.xlu0 %4500, %v4467
          %v4502 = vpop.permute.xlu0 %4501
          %4503 = vset.pattern.permute.xlu0 0
          %4504 = vperm.xlu0 %4503, %v4481
          %v4505 = vpop.permute.xlu0 %4504
          %v4506 = vlaneseq
          %v4507 = vshrl.u32 %v4506, 7
          %v4508 = vsub.s32 %v1179, %v4507
          %v4509 = vrot.slane %v4484, %v4508
          %v4510 = vlaneseq
          %v4511 = vshrl.u32 %v4510, 7
          %v4512 = vsub.s32 %v1184, %v4511
          %v4513 = vrot.slane %v4487, %v4512
          %v4514 = vsel %vm1189, %v4513, %v4509
          %v4515 = vlaneseq
          %v4516 = vshrl.u32 %v4515, 7
          %v4517 = vsub.s32 %v1191, %v4516
          %v4518 = vrot.slane %v4490, %v4517
          %v4519 = vsel %vm1196, %v4518, %v4514
          %v4520 = vlaneseq
          %v4521 = vshrl.u32 %v4520, 7
          %v4522 = vsub.s32 %v1198, %v4521
          %v4523 = vrot.slane %v4493, %v4522
          %v4524 = vsel %vm1203, %v4523, %v4519
          %v4525 = vlaneseq
          %v4526 = vshrl.u32 %v4525, 7
          %v4527 = vsub.s32 %v1179, %v4526
          %v4528 = vrot.slane %v4496, %v4527
          %v4529 = vlaneseq
          %v4530 = vshrl.u32 %v4529, 7
          %v4531 = vsub.s32 %v1184, %v4530
          %v4532 = vrot.slane %v4499, %v4531
          %v4533 = vsel %vm1189, %v4532, %v4528
          %v4534 = vlaneseq
          %v4535 = vshrl.u32 %v4534, 7
          %v4536 = vsub.s32 %v1191, %v4535
          %v4537 = vrot.slane %v4502, %v4536
          %v4538 = vsel %vm1196, %v4537, %v4533
          %v4539 = vlaneseq
          %v4540 = vshrl.u32 %v4539, 7
          %v4541 = vsub.s32 %v1198, %v4540
          %v4542 = vrot.slane %v4505, %v4541
          %v4543 = vsel %vm1203, %v4542, %v4538
          %v4544 = vsel %vm1036, %v4543, %v4524
          %v4546 = vadd.f32 %v629, %v4544
          %v4547 = vmul.f32 %v579, %v1254
          %v4548 = vmul.f32 %v579, %v1261
          %v4549 = vmul.f32 %v579, %v1268
          %v4550 = vmul.f32 %v579, %v1275
          %v4551 = vmul.f32 %v579, %v1282
          %v4552 = vmul.f32 %v579, %v1289
          %v4553 = vmul.f32 %v579, %v1296
          %v4554 = vmul.f32 %v579, %v1303
          %v4555 = vmul.f32 %v579, %v1310
          %v4556 = vmul.f32 %v579, %v1317
          %v4557 = vmul.f32 %v579, %v1324
          %v4558 = vmul.f32 %v579, %v1331
          %v4559 = vmul.f32 %v579, %v1338
          %v4560 = vmul.f32 %v579, %v1345
          %v4561 = vmul.f32 %v579, %v1352
          %v4562 = vmul.f32 %v579, %v1359
          %v4563 = vmul.f32 %v579, %v1366
          %v4564 = vmul.f32 %v579, %v1373
          %v4565 = vmul.f32 %v579, %v1380
          %v4566 = vmul.f32 %v579, %v1387
          %v4567 = vmul.f32 %v579, %v1394
          %v4568 = vmul.f32 %v579, %v1401
          %v4569 = vmul.f32 %v579, %v1408
          %v4570 = vmul.f32 %v579, %v1415
          %v4571 = vmul.f32 %v579, %v1422
          %v4572 = vmul.f32 %v579, %v1429
          %v4573 = vmul.f32 %v579, %v1436
          %v4574 = vmul.f32 %v579, %v1443
          %v4575 = vmul.f32 %v579, %v1450
          %v4576 = vmul.f32 %v579, %v1457
          %v4577 = vmul.f32 %v579, %v1464
          %v4578 = vmul.f32 %v579, %v1471
          %v4579 = vmul.f32 %v615, %v1254
          %v4580 = vmul.f32 %v615, %v1261
          %v4581 = vmul.f32 %v615, %v1268
          %v4582 = vmul.f32 %v615, %v1275
          %v4583 = vmul.f32 %v615, %v1282
          %v4584 = vmul.f32 %v615, %v1289
          %v4585 = vmul.f32 %v615, %v1296
          %v4586 = vmul.f32 %v615, %v1303
          %v4587 = vmul.f32 %v615, %v1310
          %v4588 = vmul.f32 %v615, %v1317
          %v4589 = vmul.f32 %v615, %v1324
          %v4590 = vmul.f32 %v615, %v1331
          %v4591 = vmul.f32 %v615, %v1338
          %v4592 = vmul.f32 %v615, %v1345
          %v4593 = vmul.f32 %v615, %v1352
          %v4594 = vmul.f32 %v615, %v1359
          %v4595 = vmul.f32 %v615, %v1366
          %v4596 = vmul.f32 %v615, %v1373
          %v4597 = vmul.f32 %v615, %v1380
          %v4598 = vmul.f32 %v615, %v1387
          %v4599 = vmul.f32 %v615, %v1394
          %v4600 = vmul.f32 %v615, %v1401
          %v4601 = vmul.f32 %v615, %v1408
          %v4602 = vmul.f32 %v615, %v1415
          %v4603 = vmul.f32 %v615, %v1422
          %v4604 = vmul.f32 %v615, %v1429
          %v4605 = vmul.f32 %v615, %v1436
          %v4606 = vmul.f32 %v615, %v1443
          %v4607 = vmul.f32 %v615, %v1450
          %v4608 = vmul.f32 %v615, %v1457
          %v4609 = vmul.f32 %v615, %v1464
          %v4610 = vmul.f32 %v615, %v1471
          %v4675 = vrot.slane %v4548, 7
          %v4676 = vsel %vm1036, %v4675, %v4547
          %v4677 = vrot.slane %v4549, 6
          %v4678 = vsel %vm1039, %v4677, %v4676
          %v4679 = vrot.slane %v4550, 5
          %v4680 = vsel %vm1042, %v4679, %v4678
          %v4681 = vrot.slane %v4551, 4
          %v4682 = vsel %vm1045, %v4681, %v4680
          %v4683 = vrot.slane %v4552, 3
          %v4684 = vsel %vm1048, %v4683, %v4682
          %v4685 = vrot.slane %v4553, 2
          %v4686 = vsel %vm1051, %v4685, %v4684
          %v4687 = vrot.slane %v4554, 1
          %v4688 = vsel %vm1054, %v4687, %v4686
          %v4689 = vrot.slane %v4556, 7
          %v4690 = vsel %vm1036, %v4689, %v4555
          %v4691 = vrot.slane %v4557, 6
          %v4692 = vsel %vm1039, %v4691, %v4690
          %v4693 = vrot.slane %v4558, 5
          %v4694 = vsel %vm1042, %v4693, %v4692
          %v4695 = vrot.slane %v4559, 4
          %v4696 = vsel %vm1045, %v4695, %v4694
          %v4697 = vrot.slane %v4560, 3
          %v4698 = vsel %vm1048, %v4697, %v4696
          %v4699 = vrot.slane %v4561, 2
          %v4700 = vsel %vm1051, %v4699, %v4698
          %v4701 = vrot.slane %v4562, 1
          %v4702 = vsel %vm1054, %v4701, %v4700
          %v4703 = vrot.slane %v4564, 7
          %v4704 = vsel %vm1036, %v4703, %v4563
          %v4705 = vrot.slane %v4565, 6
          %v4706 = vsel %vm1039, %v4705, %v4704
          %v4707 = vrot.slane %v4566, 5
          %v4708 = vsel %vm1042, %v4707, %v4706
          %v4709 = vrot.slane %v4567, 4
          %v4710 = vsel %vm1045, %v4709, %v4708
          %v4711 = vrot.slane %v4568, 3
          %v4712 = vsel %vm1048, %v4711, %v4710
          %v4713 = vrot.slane %v4569, 2
          %v4714 = vsel %vm1051, %v4713, %v4712
          %v4715 = vrot.slane %v4570, 1
          %v4716 = vsel %vm1054, %v4715, %v4714
          %v4717 = vrot.slane %v4572, 7
          %v4718 = vsel %vm1036, %v4717, %v4571
          %v4719 = vrot.slane %v4573, 6
          %v4720 = vsel %vm1039, %v4719, %v4718
          %v4721 = vrot.slane %v4574, 5
          %v4722 = vsel %vm1042, %v4721, %v4720
          %v4723 = vrot.slane %v4575, 4
          %v4724 = vsel %vm1045, %v4723, %v4722
          %v4725 = vrot.slane %v4576, 3
          %v4726 = vsel %vm1048, %v4725, %v4724
          %v4727 = vrot.slane %v4577, 2
          %v4728 = vsel %vm1051, %v4727, %v4726
          %v4729 = vrot.slane %v4578, 1
          %v4730 = vsel %vm1054, %v4729, %v4728
          %v4731 = vrot.slane %v4580, 7
          %v4732 = vsel %vm1036, %v4731, %v4579
          %v4733 = vrot.slane %v4581, 6
          %v4734 = vsel %vm1039, %v4733, %v4732
          %v4735 = vrot.slane %v4582, 5
          %v4736 = vsel %vm1042, %v4735, %v4734
          %v4737 = vrot.slane %v4583, 4
          %v4738 = vsel %vm1045, %v4737, %v4736
          %v4739 = vrot.slane %v4584, 3
          %v4740 = vsel %vm1048, %v4739, %v4738
          %v4741 = vrot.slane %v4585, 2
          %v4742 = vsel %vm1051, %v4741, %v4740
          %v4743 = vrot.slane %v4586, 1
          %v4744 = vsel %vm1054, %v4743, %v4742
          %v4745 = vrot.slane %v4588, 7
          %v4746 = vsel %vm1036, %v4745, %v4587
          %v4747 = vrot.slane %v4589, 6
          %v4748 = vsel %vm1039, %v4747, %v4746
          %v4749 = vrot.slane %v4590, 5
          %v4750 = vsel %vm1042, %v4749, %v4748
          %v4751 = vrot.slane %v4591, 4
          %v4752 = vsel %vm1045, %v4751, %v4750
          %v4753 = vrot.slane %v4592, 3
          %v4754 = vsel %vm1048, %v4753, %v4752
          %v4755 = vrot.slane %v4593, 2
          %v4756 = vsel %vm1051, %v4755, %v4754
          %v4757 = vrot.slane %v4594, 1
          %v4758 = vsel %vm1054, %v4757, %v4756
          %v4759 = vrot.slane %v4596, 7
          %v4760 = vsel %vm1036, %v4759, %v4595
          %v4761 = vrot.slane %v4597, 6
          %v4762 = vsel %vm1039, %v4761, %v4760
          %v4763 = vrot.slane %v4598, 5
          %v4764 = vsel %vm1042, %v4763, %v4762
          %v4765 = vrot.slane %v4599, 4
          %v4766 = vsel %vm1045, %v4765, %v4764
          %v4767 = vrot.slane %v4600, 3
          %v4768 = vsel %vm1048, %v4767, %v4766
          %v4769 = vrot.slane %v4601, 2
          %v4770 = vsel %vm1051, %v4769, %v4768
          %v4771 = vrot.slane %v4602, 1
          %v4772 = vsel %vm1054, %v4771, %v4770
          %v4773 = vrot.slane %v4604, 7
          %v4774 = vsel %vm1036, %v4773, %v4603
          %v4775 = vrot.slane %v4605, 6
          %v4776 = vsel %vm1039, %v4775, %v4774
          %v4777 = vrot.slane %v4606, 5
          %v4778 = vsel %vm1042, %v4777, %v4776
          %v4779 = vrot.slane %v4607, 4
          %v4780 = vsel %vm1045, %v4779, %v4778
          %v4781 = vrot.slane %v4608, 3
          %v4782 = vsel %vm1048, %v4781, %v4780
          %v4783 = vrot.slane %v4609, 2
          %v4784 = vsel %vm1051, %v4783, %v4782
          %v4785 = vrot.slane %v4610, 1
          %v4786 = vsel %vm1054, %v4785, %v4784
          %4787 = vset.pattern.permute.xlu0 0
          %4788 = vperm.xlu0 %4787, %v4688
          %v4789 = vpop.permute.xlu0 %4788
          %4790 = vset.pattern.permute.xlu0 0
          %4791 = vperm.xlu0 %4790, %v4702
          %v4792 = vpop.permute.xlu0 %4791
          %4793 = vset.pattern.permute.xlu0 0
          %4794 = vperm.xlu0 %4793, %v4716
          %v4795 = vpop.permute.xlu0 %4794
          %4796 = vset.pattern.permute.xlu0 0
          %4797 = vperm.xlu0 %4796, %v4730
          %v4798 = vpop.permute.xlu0 %4797
          %4799 = vset.pattern.permute.xlu0 0
          %4800 = vperm.xlu0 %4799, %v4744
          %v4801 = vpop.permute.xlu0 %4800
          %4802 = vset.pattern.permute.xlu0 0
          %4803 = vperm.xlu0 %4802, %v4758
          %v4804 = vpop.permute.xlu0 %4803
          %4805 = vset.pattern.permute.xlu0 0
          %4806 = vperm.xlu0 %4805, %v4772
          %v4807 = vpop.permute.xlu0 %4806
          %4808 = vset.pattern.permute.xlu0 0
          %4809 = vperm.xlu0 %4808, %v4786
          %v4810 = vpop.permute.xlu0 %4809
          %v4811 = vlaneseq
          %v4812 = vshrl.u32 %v4811, 7
          %v4813 = vsub.s32 %v1179, %v4812
          %v4814 = vrot.slane %v4789, %v4813
          %v4815 = vlaneseq
          %v4816 = vshrl.u32 %v4815, 7
          %v4817 = vsub.s32 %v1184, %v4816
          %v4818 = vrot.slane %v4792, %v4817
          %v4819 = vsel %vm1189, %v4818, %v4814
          %v4820 = vlaneseq
          %v4821 = vshrl.u32 %v4820, 7
          %v4822 = vsub.s32 %v1191, %v4821
          %v4823 = vrot.slane %v4795, %v4822
          %v4824 = vsel %vm1196, %v4823, %v4819
          %v4825 = vlaneseq
          %v4826 = vshrl.u32 %v4825, 7
          %v4827 = vsub.s32 %v1198, %v4826
          %v4828 = vrot.slane %v4798, %v4827
          %v4829 = vsel %vm1203, %v4828, %v4824
          %v4830 = vlaneseq
          %v4831 = vshrl.u32 %v4830, 7
          %v4832 = vsub.s32 %v1179, %v4831
          %v4833 = vrot.slane %v4801, %v4832
          %v4834 = vlaneseq
          %v4835 = vshrl.u32 %v4834, 7
          %v4836 = vsub.s32 %v1184, %v4835
          %v4837 = vrot.slane %v4804, %v4836
          %v4838 = vsel %vm1189, %v4837, %v4833
          %v4839 = vlaneseq
          %v4840 = vshrl.u32 %v4839, 7
          %v4841 = vsub.s32 %v1191, %v4840
          %v4842 = vrot.slane %v4807, %v4841
          %v4843 = vsel %vm1196, %v4842, %v4838
          %v4844 = vlaneseq
          %v4845 = vshrl.u32 %v4844, 7
          %v4846 = vsub.s32 %v1198, %v4845
          %v4847 = vrot.slane %v4810, %v4846
          %v4848 = vsel %vm1203, %v4847, %v4843
          %v4849 = vsel %vm1036, %v4848, %v4829
          %v4851 = vadd.f32 %v4546, %v4849
          %v4852 = vmul.f32 %v582, %v1836
          %v4853 = vmul.f32 %v582, %v1843
          %v4854 = vmul.f32 %v582, %v1850
          %v4855 = vmul.f32 %v582, %v1857
          %v4856 = vmul.f32 %v582, %v1864
          %v4857 = vmul.f32 %v582, %v1871
          %v4858 = vmul.f32 %v582, %v1878
          %v4859 = vmul.f32 %v582, %v1885
          %v4860 = vmul.f32 %v582, %v1892
          %v4861 = vmul.f32 %v582, %v1899
          %v4862 = vmul.f32 %v582, %v1906
          %v4863 = vmul.f32 %v582, %v1913
          %v4864 = vmul.f32 %v582, %v1920
          %v4865 = vmul.f32 %v582, %v1927
          %v4866 = vmul.f32 %v582, %v1934
          %v4867 = vmul.f32 %v582, %v1941
          %v4868 = vmul.f32 %v582, %v1948
          %v4869 = vmul.f32 %v582, %v1955
          %v4870 = vmul.f32 %v582, %v1962
          %v4871 = vmul.f32 %v582, %v1969
          %v4872 = vmul.f32 %v582, %v1976
          %v4873 = vmul.f32 %v582, %v1983
          %v4874 = vmul.f32 %v582, %v1990
          %v4875 = vmul.f32 %v582, %v1997
          %v4876 = vmul.f32 %v582, %v2004
          %v4877 = vmul.f32 %v582, %v2011
          %v4878 = vmul.f32 %v582, %v2018
          %v4879 = vmul.f32 %v582, %v2025
          %v4880 = vmul.f32 %v582, %v2032
          %v4881 = vmul.f32 %v582, %v2039
          %v4882 = vmul.f32 %v582, %v2046
          %v4883 = vmul.f32 %v582, %v2053
          %v4884 = vmul.f32 %v618, %v1836
          %v4885 = vmul.f32 %v618, %v1843
          %v4886 = vmul.f32 %v618, %v1850
          %v4887 = vmul.f32 %v618, %v1857
          %v4888 = vmul.f32 %v618, %v1864
          %v4889 = vmul.f32 %v618, %v1871
          %v4890 = vmul.f32 %v618, %v1878
          %v4891 = vmul.f32 %v618, %v1885
          %v4892 = vmul.f32 %v618, %v1892
          %v4893 = vmul.f32 %v618, %v1899
          %v4894 = vmul.f32 %v618, %v1906
          %v4895 = vmul.f32 %v618, %v1913
          %v4896 = vmul.f32 %v618, %v1920
          %v4897 = vmul.f32 %v618, %v1927
          %v4898 = vmul.f32 %v618, %v1934
          %v4899 = vmul.f32 %v618, %v1941
          %v4900 = vmul.f32 %v618, %v1948
          %v4901 = vmul.f32 %v618, %v1955
          %v4902 = vmul.f32 %v618, %v1962
          %v4903 = vmul.f32 %v618, %v1969
          %v4904 = vmul.f32 %v618, %v1976
          %v4905 = vmul.f32 %v618, %v1983
          %v4906 = vmul.f32 %v618, %v1990
          %v4907 = vmul.f32 %v618, %v1997
          %v4908 = vmul.f32 %v618, %v2004
          %v4909 = vmul.f32 %v618, %v2011
          %v4910 = vmul.f32 %v618, %v2018
          %v4911 = vmul.f32 %v618, %v2025
          %v4912 = vmul.f32 %v618, %v2032
          %v4913 = vmul.f32 %v618, %v2039
          %v4914 = vmul.f32 %v618, %v2046
          %v4915 = vmul.f32 %v618, %v2053
          %v4980 = vrot.slane %v4853, 7
          %v4981 = vsel %vm1036, %v4980, %v4852
          %v4982 = vrot.slane %v4854, 6
          %v4983 = vsel %vm1039, %v4982, %v4981
          %v4984 = vrot.slane %v4855, 5
          %v4985 = vsel %vm1042, %v4984, %v4983
          %v4986 = vrot.slane %v4856, 4
          %v4987 = vsel %vm1045, %v4986, %v4985
          %v4988 = vrot.slane %v4857, 3
          %v4989 = vsel %vm1048, %v4988, %v4987
          %v4990 = vrot.slane %v4858, 2
          %v4991 = vsel %vm1051, %v4990, %v4989
          %v4992 = vrot.slane %v4859, 1
          %v4993 = vsel %vm1054, %v4992, %v4991
          %v4994 = vrot.slane %v4861, 7
          %v4995 = vsel %vm1036, %v4994, %v4860
          %v4996 = vrot.slane %v4862, 6
          %v4997 = vsel %vm1039, %v4996, %v4995
          %v4998 = vrot.slane %v4863, 5
          %v4999 = vsel %vm1042, %v4998, %v4997
          %v5000 = vrot.slane %v4864, 4
          %v5001 = vsel %vm1045, %v5000, %v4999
          %v5002 = vrot.slane %v4865, 3
          %v5003 = vsel %vm1048, %v5002, %v5001
          %v5004 = vrot.slane %v4866, 2
          %v5005 = vsel %vm1051, %v5004, %v5003
          %v5006 = vrot.slane %v4867, 1
          %v5007 = vsel %vm1054, %v5006, %v5005
          %v5008 = vrot.slane %v4869, 7
          %v5009 = vsel %vm1036, %v5008, %v4868
          %v5010 = vrot.slane %v4870, 6
          %v5011 = vsel %vm1039, %v5010, %v5009
          %v5012 = vrot.slane %v4871, 5
          %v5013 = vsel %vm1042, %v5012, %v5011
          %v5014 = vrot.slane %v4872, 4
          %v5015 = vsel %vm1045, %v5014, %v5013
          %v5016 = vrot.slane %v4873, 3
          %v5017 = vsel %vm1048, %v5016, %v5015
          %v5018 = vrot.slane %v4874, 2
          %v5019 = vsel %vm1051, %v5018, %v5017
          %v5020 = vrot.slane %v4875, 1
          %v5021 = vsel %vm1054, %v5020, %v5019
          %v5022 = vrot.slane %v4877, 7
          %v5023 = vsel %vm1036, %v5022, %v4876
          %v5024 = vrot.slane %v4878, 6
          %v5025 = vsel %vm1039, %v5024, %v5023
          %v5026 = vrot.slane %v4879, 5
          %v5027 = vsel %vm1042, %v5026, %v5025
          %v5028 = vrot.slane %v4880, 4
          %v5029 = vsel %vm1045, %v5028, %v5027
          %v5030 = vrot.slane %v4881, 3
          %v5031 = vsel %vm1048, %v5030, %v5029
          %v5032 = vrot.slane %v4882, 2
          %v5033 = vsel %vm1051, %v5032, %v5031
          %v5034 = vrot.slane %v4883, 1
          %v5035 = vsel %vm1054, %v5034, %v5033
          %v5036 = vrot.slane %v4885, 7
          %v5037 = vsel %vm1036, %v5036, %v4884
          %v5038 = vrot.slane %v4886, 6
          %v5039 = vsel %vm1039, %v5038, %v5037
          %v5040 = vrot.slane %v4887, 5
          %v5041 = vsel %vm1042, %v5040, %v5039
          %v5042 = vrot.slane %v4888, 4
          %v5043 = vsel %vm1045, %v5042, %v5041
          %v5044 = vrot.slane %v4889, 3
          %v5045 = vsel %vm1048, %v5044, %v5043
          %v5046 = vrot.slane %v4890, 2
          %v5047 = vsel %vm1051, %v5046, %v5045
          %v5048 = vrot.slane %v4891, 1
          %v5049 = vsel %vm1054, %v5048, %v5047
          %v5050 = vrot.slane %v4893, 7
          %v5051 = vsel %vm1036, %v5050, %v4892
          %v5052 = vrot.slane %v4894, 6
          %v5053 = vsel %vm1039, %v5052, %v5051
          %v5054 = vrot.slane %v4895, 5
          %v5055 = vsel %vm1042, %v5054, %v5053
          %v5056 = vrot.slane %v4896, 4
          %v5057 = vsel %vm1045, %v5056, %v5055
          %v5058 = vrot.slane %v4897, 3
          %v5059 = vsel %vm1048, %v5058, %v5057
          %v5060 = vrot.slane %v4898, 2
          %v5061 = vsel %vm1051, %v5060, %v5059
          %v5062 = vrot.slane %v4899, 1
          %v5063 = vsel %vm1054, %v5062, %v5061
          %v5064 = vrot.slane %v4901, 7
          %v5065 = vsel %vm1036, %v5064, %v4900
          %v5066 = vrot.slane %v4902, 6
          %v5067 = vsel %vm1039, %v5066, %v5065
          %v5068 = vrot.slane %v4903, 5
          %v5069 = vsel %vm1042, %v5068, %v5067
          %v5070 = vrot.slane %v4904, 4
          %v5071 = vsel %vm1045, %v5070, %v5069
          %v5072 = vrot.slane %v4905, 3
          %v5073 = vsel %vm1048, %v5072, %v5071
          %v5074 = vrot.slane %v4906, 2
          %v5075 = vsel %vm1051, %v5074, %v5073
          %v5076 = vrot.slane %v4907, 1
          %v5077 = vsel %vm1054, %v5076, %v5075
          %v5078 = vrot.slane %v4909, 7
          %v5079 = vsel %vm1036, %v5078, %v4908
          %v5080 = vrot.slane %v4910, 6
          %v5081 = vsel %vm1039, %v5080, %v5079
          %v5082 = vrot.slane %v4911, 5
          %v5083 = vsel %vm1042, %v5082, %v5081
          %v5084 = vrot.slane %v4912, 4
          %v5085 = vsel %vm1045, %v5084, %v5083
          %v5086 = vrot.slane %v4913, 3
          %v5087 = vsel %vm1048, %v5086, %v5085
          %v5088 = vrot.slane %v4914, 2
          %v5089 = vsel %vm1051, %v5088, %v5087
          %v5090 = vrot.slane %v4915, 1
          %v5091 = vsel %vm1054, %v5090, %v5089
          %5092 = vset.pattern.permute.xlu0 0
          %5093 = vperm.xlu0 %5092, %v4993
          %v5094 = vpop.permute.xlu0 %5093
          %5095 = vset.pattern.permute.xlu0 0
          %5096 = vperm.xlu0 %5095, %v5007
          %v5097 = vpop.permute.xlu0 %5096
          %5098 = vset.pattern.permute.xlu0 0
          %5099 = vperm.xlu0 %5098, %v5021
          %v5100 = vpop.permute.xlu0 %5099
          %5101 = vset.pattern.permute.xlu0 0
          %5102 = vperm.xlu0 %5101, %v5035
          %v5103 = vpop.permute.xlu0 %5102
          %5104 = vset.pattern.permute.xlu0 0
          %5105 = vperm.xlu0 %5104, %v5049
          %v5106 = vpop.permute.xlu0 %5105
          %5107 = vset.pattern.permute.xlu0 0
          %5108 = vperm.xlu0 %5107, %v5063
          %v5109 = vpop.permute.xlu0 %5108
          %5110 = vset.pattern.permute.xlu0 0
          %5111 = vperm.xlu0 %5110, %v5077
          %v5112 = vpop.permute.xlu0 %5111
          %5113 = vset.pattern.permute.xlu0 0
          %5114 = vperm.xlu0 %5113, %v5091
          %v5115 = vpop.permute.xlu0 %5114
          %v5116 = vlaneseq
          %v5117 = vshrl.u32 %v5116, 7
          %v5118 = vsub.s32 %v1179, %v5117
          %v5119 = vrot.slane %v5094, %v5118
          %v5120 = vlaneseq
          %v5121 = vshrl.u32 %v5120, 7
          %v5122 = vsub.s32 %v1184, %v5121
          %v5123 = vrot.slane %v5097, %v5122
          %v5124 = vsel %vm1189, %v5123, %v5119
          %v5125 = vlaneseq
          %v5126 = vshrl.u32 %v5125, 7
          %v5127 = vsub.s32 %v1191, %v5126
          %v5128 = vrot.slane %v5100, %v5127
          %v5129 = vsel %vm1196, %v5128, %v5124
          %v5130 = vlaneseq
          %v5131 = vshrl.u32 %v5130, 7
          %v5132 = vsub.s32 %v1198, %v5131
          %v5133 = vrot.slane %v5103, %v5132
          %v5134 = vsel %vm1203, %v5133, %v5129
          %v5135 = vlaneseq
          %v5136 = vshrl.u32 %v5135, 7
          %v5137 = vsub.s32 %v1179, %v5136
          %v5138 = vrot.slane %v5106, %v5137
          %v5139 = vlaneseq
          %v5140 = vshrl.u32 %v5139, 7
          %v5141 = vsub.s32 %v1184, %v5140
          %v5142 = vrot.slane %v5109, %v5141
          %v5143 = vsel %vm1189, %v5142, %v5138
          %v5144 = vlaneseq
          %v5145 = vshrl.u32 %v5144, 7
          %v5146 = vsub.s32 %v1191, %v5145
          %v5147 = vrot.slane %v5112, %v5146
          %v5148 = vsel %vm1196, %v5147, %v5143
          %v5149 = vlaneseq
          %v5150 = vshrl.u32 %v5149, 7
          %v5151 = vsub.s32 %v1198, %v5150
          %v5152 = vrot.slane %v5115, %v5151
          %v5153 = vsel %vm1203, %v5152, %v5148
          %v5154 = vsel %vm1036, %v5153, %v5134
          %v5156 = vadd.f32 %v4851, %v5154
          %v5157 = vmul.f32 %v585, %v2418
          %v5158 = vmul.f32 %v585, %v2425
          %v5159 = vmul.f32 %v585, %v2432
          %v5160 = vmul.f32 %v585, %v2439
          %v5161 = vmul.f32 %v585, %v2446
          %v5162 = vmul.f32 %v585, %v2453
          %v5163 = vmul.f32 %v585, %v2460
          %v5164 = vmul.f32 %v585, %v2467
          %v5165 = vmul.f32 %v585, %v2474
          %v5166 = vmul.f32 %v585, %v2481
          %v5167 = vmul.f32 %v585, %v2488
          %v5168 = vmul.f32 %v585, %v2495
          %v5169 = vmul.f32 %v585, %v2502
          %v5170 = vmul.f32 %v585, %v2509
          %v5171 = vmul.f32 %v585, %v2516
          %v5172 = vmul.f32 %v585, %v2523
          %v5173 = vmul.f32 %v585, %v2530
          %v5174 = vmul.f32 %v585, %v2537
          %v5175 = vmul.f32 %v585, %v2544
          %v5176 = vmul.f32 %v585, %v2551
          %v5177 = vmul.f32 %v585, %v2558
          %v5178 = vmul.f32 %v585, %v2565
          %v5179 = vmul.f32 %v585, %v2572
          %v5180 = vmul.f32 %v585, %v2579
          %v5181 = vmul.f32 %v585, %v2586
          %v5182 = vmul.f32 %v585, %v2593
          %v5183 = vmul.f32 %v585, %v2600
          %v5184 = vmul.f32 %v585, %v2607
          %v5185 = vmul.f32 %v585, %v2614
          %v5186 = vmul.f32 %v585, %v2621
          %v5187 = vmul.f32 %v585, %v2628
          %v5188 = vmul.f32 %v585, %v2635
          %v5189 = vmul.f32 %v621, %v2418
          %v5190 = vmul.f32 %v621, %v2425
          %v5191 = vmul.f32 %v621, %v2432
          %v5192 = vmul.f32 %v621, %v2439
          %v5193 = vmul.f32 %v621, %v2446
          %v5194 = vmul.f32 %v621, %v2453
          %v5195 = vmul.f32 %v621, %v2460
          %v5196 = vmul.f32 %v621, %v2467
          %v5197 = vmul.f32 %v621, %v2474
          %v5198 = vmul.f32 %v621, %v2481
          %v5199 = vmul.f32 %v621, %v2488
          %v5200 = vmul.f32 %v621, %v2495
          %v5201 = vmul.f32 %v621, %v2502
          %v5202 = vmul.f32 %v621, %v2509
          %v5203 = vmul.f32 %v621, %v2516
          %v5204 = vmul.f32 %v621, %v2523
          %v5205 = vmul.f32 %v621, %v2530
          %v5206 = vmul.f32 %v621, %v2537
          %v5207 = vmul.f32 %v621, %v2544
          %v5208 = vmul.f32 %v621, %v2551
          %v5209 = vmul.f32 %v621, %v2558
          %v5210 = vmul.f32 %v621, %v2565
          %v5211 = vmul.f32 %v621, %v2572
          %v5212 = vmul.f32 %v621, %v2579
          %v5213 = vmul.f32 %v621, %v2586
          %v5214 = vmul.f32 %v621, %v2593
          %v5215 = vmul.f32 %v621, %v2600
          %v5216 = vmul.f32 %v621, %v2607
          %v5217 = vmul.f32 %v621, %v2614
          %v5218 = vmul.f32 %v621, %v2621
          %v5219 = vmul.f32 %v621, %v2628
          %v5220 = vmul.f32 %v621, %v2635
          %v5285 = vrot.slane %v5158, 7
          %v5286 = vsel %vm1036, %v5285, %v5157
          %v5287 = vrot.slane %v5159, 6
          %v5288 = vsel %vm1039, %v5287, %v5286
          %v5289 = vrot.slane %v5160, 5
          %v5290 = vsel %vm1042, %v5289, %v5288
          %v5291 = vrot.slane %v5161, 4
          %v5292 = vsel %vm1045, %v5291, %v5290
          %v5293 = vrot.slane %v5162, 3
          %v5294 = vsel %vm1048, %v5293, %v5292
          %v5295 = vrot.slane %v5163, 2
          %v5296 = vsel %vm1051, %v5295, %v5294
          %v5297 = vrot.slane %v5164, 1
          %v5298 = vsel %vm1054, %v5297, %v5296
          %v5299 = vrot.slane %v5166, 7
          %v5300 = vsel %vm1036, %v5299, %v5165
          %v5301 = vrot.slane %v5167, 6
          %v5302 = vsel %vm1039, %v5301, %v5300
          %v5303 = vrot.slane %v5168, 5
          %v5304 = vsel %vm1042, %v5303, %v5302
          %v5305 = vrot.slane %v5169, 4
          %v5306 = vsel %vm1045, %v5305, %v5304
          %v5307 = vrot.slane %v5170, 3
          %v5308 = vsel %vm1048, %v5307, %v5306
          %v5309 = vrot.slane %v5171, 2
          %v5310 = vsel %vm1051, %v5309, %v5308
          %v5311 = vrot.slane %v5172, 1
          %v5312 = vsel %vm1054, %v5311, %v5310
          %v5313 = vrot.slane %v5174, 7
          %v5314 = vsel %vm1036, %v5313, %v5173
          %v5315 = vrot.slane %v5175, 6
          %v5316 = vsel %vm1039, %v5315, %v5314
          %v5317 = vrot.slane %v5176, 5
          %v5318 = vsel %vm1042, %v5317, %v5316
          %v5319 = vrot.slane %v5177, 4
          %v5320 = vsel %vm1045, %v5319, %v5318
          %v5321 = vrot.slane %v5178, 3
          %v5322 = vsel %vm1048, %v5321, %v5320
          %v5323 = vrot.slane %v5179, 2
          %v5324 = vsel %vm1051, %v5323, %v5322
          %v5325 = vrot.slane %v5180, 1
          %v5326 = vsel %vm1054, %v5325, %v5324
          %v5327 = vrot.slane %v5182, 7
          %v5328 = vsel %vm1036, %v5327, %v5181
          %v5329 = vrot.slane %v5183, 6
          %v5330 = vsel %vm1039, %v5329, %v5328
          %v5331 = vrot.slane %v5184, 5
          %v5332 = vsel %vm1042, %v5331, %v5330
          %v5333 = vrot.slane %v5185, 4
          %v5334 = vsel %vm1045, %v5333, %v5332
          %v5335 = vrot.slane %v5186, 3
          %v5336 = vsel %vm1048, %v5335, %v5334
          %v5337 = vrot.slane %v5187, 2
          %v5338 = vsel %vm1051, %v5337, %v5336
          %v5339 = vrot.slane %v5188, 1
          %v5340 = vsel %vm1054, %v5339, %v5338
          %v5341 = vrot.slane %v5190, 7
          %v5342 = vsel %vm1036, %v5341, %v5189
          %v5343 = vrot.slane %v5191, 6
          %v5344 = vsel %vm1039, %v5343, %v5342
          %v5345 = vrot.slane %v5192, 5
          %v5346 = vsel %vm1042, %v5345, %v5344
          %v5347 = vrot.slane %v5193, 4
          %v5348 = vsel %vm1045, %v5347, %v5346
          %v5349 = vrot.slane %v5194, 3
          %v5350 = vsel %vm1048, %v5349, %v5348
          %v5351 = vrot.slane %v5195, 2
          %v5352 = vsel %vm1051, %v5351, %v5350
          %v5353 = vrot.slane %v5196, 1
          %v5354 = vsel %vm1054, %v5353, %v5352
          %v5355 = vrot.slane %v5198, 7
          %v5356 = vsel %vm1036, %v5355, %v5197
          %v5357 = vrot.slane %v5199, 6
          %v5358 = vsel %vm1039, %v5357, %v5356
          %v5359 = vrot.slane %v5200, 5
          %v5360 = vsel %vm1042, %v5359, %v5358
          %v5361 = vrot.slane %v5201, 4
          %v5362 = vsel %vm1045, %v5361, %v5360
          %v5363 = vrot.slane %v5202, 3
          %v5364 = vsel %vm1048, %v5363, %v5362
          %v5365 = vrot.slane %v5203, 2
          %v5366 = vsel %vm1051, %v5365, %v5364
          %v5367 = vrot.slane %v5204, 1
          %v5368 = vsel %vm1054, %v5367, %v5366
          %v5369 = vrot.slane %v5206, 7
          %v5370 = vsel %vm1036, %v5369, %v5205
          %v5371 = vrot.slane %v5207, 6
          %v5372 = vsel %vm1039, %v5371, %v5370
          %v5373 = vrot.slane %v5208, 5
          %v5374 = vsel %vm1042, %v5373, %v5372
          %v5375 = vrot.slane %v5209, 4
          %v5376 = vsel %vm1045, %v5375, %v5374
          %v5377 = vrot.slane %v5210, 3
          %v5378 = vsel %vm1048, %v5377, %v5376
          %v5379 = vrot.slane %v5211, 2
          %v5380 = vsel %vm1051, %v5379, %v5378
          %v5381 = vrot.slane %v5212, 1
          %v5382 = vsel %vm1054, %v5381, %v5380
          %v5383 = vrot.slane %v5214, 7
          %v5384 = vsel %vm1036, %v5383, %v5213
          %v5385 = vrot.slane %v5215, 6
          %v5386 = vsel %vm1039, %v5385, %v5384
          %v5387 = vrot.slane %v5216, 5
          %v5388 = vsel %vm1042, %v5387, %v5386
          %v5389 = vrot.slane %v5217, 4
          %v5390 = vsel %vm1045, %v5389, %v5388
          %v5391 = vrot.slane %v5218, 3
          %v5392 = vsel %vm1048, %v5391, %v5390
          %v5393 = vrot.slane %v5219, 2
          %v5394 = vsel %vm1051, %v5393, %v5392
          %v5395 = vrot.slane %v5220, 1
          %v5396 = vsel %vm1054, %v5395, %v5394
          %5397 = vset.pattern.permute.xlu0 0
          %5398 = vperm.xlu0 %5397, %v5298
          %v5399 = vpop.permute.xlu0 %5398
          %5400 = vset.pattern.permute.xlu0 0
          %5401 = vperm.xlu0 %5400, %v5312
          %v5402 = vpop.permute.xlu0 %5401
          %5403 = vset.pattern.permute.xlu0 0
          %5404 = vperm.xlu0 %5403, %v5326
          %v5405 = vpop.permute.xlu0 %5404
          %5406 = vset.pattern.permute.xlu0 0
          %5407 = vperm.xlu0 %5406, %v5340
          %v5408 = vpop.permute.xlu0 %5407
          %5409 = vset.pattern.permute.xlu0 0
          %5410 = vperm.xlu0 %5409, %v5354
          %v5411 = vpop.permute.xlu0 %5410
          %5412 = vset.pattern.permute.xlu0 0
          %5413 = vperm.xlu0 %5412, %v5368
          %v5414 = vpop.permute.xlu0 %5413
          %5415 = vset.pattern.permute.xlu0 0
          %5416 = vperm.xlu0 %5415, %v5382
          %v5417 = vpop.permute.xlu0 %5416
          %5418 = vset.pattern.permute.xlu0 0
          %5419 = vperm.xlu0 %5418, %v5396
          %v5420 = vpop.permute.xlu0 %5419
          %v5421 = vlaneseq
          %v5422 = vshrl.u32 %v5421, 7
          %v5423 = vsub.s32 %v1179, %v5422
          %v5424 = vrot.slane %v5399, %v5423
          %v5425 = vlaneseq
          %v5426 = vshrl.u32 %v5425, 7
          %v5427 = vsub.s32 %v1184, %v5426
          %v5428 = vrot.slane %v5402, %v5427
          %v5429 = vsel %vm1189, %v5428, %v5424
          %v5430 = vlaneseq
          %v5431 = vshrl.u32 %v5430, 7
          %v5432 = vsub.s32 %v1191, %v5431
          %v5433 = vrot.slane %v5405, %v5432
          %v5434 = vsel %vm1196, %v5433, %v5429
          %v5435 = vlaneseq
          %v5436 = vshrl.u32 %v5435, 7
          %v5437 = vsub.s32 %v1198, %v5436
          %v5438 = vrot.slane %v5408, %v5437
          %v5439 = vsel %vm1203, %v5438, %v5434
          %v5440 = vlaneseq
          %v5441 = vshrl.u32 %v5440, 7
          %v5442 = vsub.s32 %v1179, %v5441
          %v5443 = vrot.slane %v5411, %v5442
          %v5444 = vlaneseq
          %v5445 = vshrl.u32 %v5444, 7
          %v5446 = vsub.s32 %v1184, %v5445
          %v5447 = vrot.slane %v5414, %v5446
          %v5448 = vsel %vm1189, %v5447, %v5443
          %v5449 = vlaneseq
          %v5450 = vshrl.u32 %v5449, 7
          %v5451 = vsub.s32 %v1191, %v5450
          %v5452 = vrot.slane %v5417, %v5451
          %v5453 = vsel %vm1196, %v5452, %v5448
          %v5454 = vlaneseq
          %v5455 = vshrl.u32 %v5454, 7
          %v5456 = vsub.s32 %v1198, %v5455
          %v5457 = vrot.slane %v5420, %v5456
          %v5458 = vsel %vm1203, %v5457, %v5453
          %v5459 = vsel %vm1036, %v5458, %v5439
          %v5461 = vadd.f32 %v5156, %v5459
          %v5464 = vunpack.c.l.s4 1966171168
          %v5465 = vunpack.c.0.s8 %v5464
          %v5466 = vlaneseq
          %v5467 = vshrl.u32 %v5466, 7
          %v5468 = vsub.s32 %v5465, %v5467
          %v5469 = vrot.slane %v5461, %v5468
          %v5470 = vcombine.high %v5469, %v5469
          %v5472 = vunpack.c.l.s4 1966171168
          %v5473 = vunpack.c.0.s8 %v5472
          %v5474 = vlaneseq
          %v5475 = vshrl.u32 %v5474, 7
          %v5476 = vsub.s32 %v5473, %v5475
          %v5477 = vrot.slane %v5469, %v5476
          %v5479 = vunpack.c.l.s4 1966171168
          %v5480 = vunpack.c.0.s8 %v5479
          %v5481 = vlaneseq
          %v5482 = vshrl.u32 %v5481, 7
          %v5483 = vsub.s32 %v5480, %v5482
          %v5484 = vrot.slane %v5470, %v5483
          %v5485 = vmax.f32 %v4241, %v5461
          %v5486 = vlaneseq
          %v5487 = vshrl.u32 %v5486, 7
          %v5488 = vsub.s32 0, %v5487
          %v5489 = vrot.slane %v4233, %v5488
          %v5490 = vlaneseq
          %v5491 = vshrl.u32 %v5490, 7
          %v5492 = vsub.s32 0, %v5491
          %v5493 = vrot.slane %v4240, %v5492
          %v5496 = vlaneseq
          %v5497 = vshrl.u32 %v5496, 7
          %v5498 = vsub.s32 0, %v5497
          %v5499 = vrot.slane %v5477, %v5498
          %v5500 = vlaneseq
          %v5501 = vshrl.u32 %v5500, 7
          %v5502 = vsub.s32 0, %v5501
          %v5503 = vrot.slane %v5484, %v5502
          %v5506 = vsel %vm549, %v2988, %v5489
          %v5507 = vsel %vm549, %v2995, %v5493
          %vm5508 = vcmask 1041408
          %v5509 = vsel %vm5508, %v5506, %v5499
          %v5510 = vsel %vm5508, %v5507, %v5503
          %vm5511 = vcmask 256000
          %5512 = vst.msk [vmem:[%s251] sm:$0x7] %vm5511, %v5509
          %5513 = vst.msk [vmem:[%s251 + $0x4] sm:$0x7] %vm5511, %v5510
          %vm5514 = vcmask 254976
          %5515 = vst.msk [vmem:[#allocation8] sm:$0x3] %vm5514, %v5485
        $region48: #{tpu_custom_call.1} parent=31 // pred_fallthru
          _
        %s5516 = smul.u32 2, %s25
        %p5517 = scmp.lt.s32.totalorder %s5516, 1
        %s5518 = scalar_select %p5517, %s5516, 1
        %s5519 = smul.addr %s5518, 4
        %s5520 = scalar_lea.vmem %s3, %s5519
        // Predicated region
        $region49: #{tpu_custom_call.1} parent=31 // pred_check
          %p5521 = pneg %p121
        $region50: #{tpu_custom_call.1} parent=31 // pred_check_branch
          %5523 = sbr.rel (%p5521) target = $region52
        $region51: #{tpu_custom_call.1} parent=31 // pred_region
          %s5524 = smul.u32 2, %s25
        $region52: #{tpu_custom_call.1} parent=31 // pred_fallthru
          _
        // Predicated region
        $region53: #{tpu_custom_call.1} parent=31 // pred_check
          %p5525 = pneg %p147
        $region54: #{tpu_custom_call.1} parent=31 // pred_check_branch
          %5527 = sbr.rel (%p5525) target = $region56
        $region55: #{tpu_custom_call.1} parent=31 // pred_region
          %s5529 = ssub.s32 32, 32
          %5530 = vsyncadd [#allocation5], %s5529
          %s5531 = smul.addr %s25, 32
          %s5532 = scalar_lea.hbm %s4, %s5531
          %s5534 = sshll.u32 [#allocation8], 4
          %s5535 = int_to_ptr.vmem [resolvable:$true] %s5534
          %5537 = dma.vmem_to_hbm [thread:$0]  %s5535, 32, %s5532, [#allocation5]
        $region56: #{tpu_custom_call.1} parent=31 // pred_fallthru
          _
        // Predicated region
        $region57: #{tpu_custom_call.1} parent=31 // pred_check
          %p5538 = pneg %p121
        $region58: #{tpu_custom_call.1} parent=31 // pred_check_branch
          %5540 = sbr.rel (%p5538) target = $region60
        $region59: #{tpu_custom_call.1} parent=31 // pred_region
          %s5541 = smul.u32 2, %s25
          %p5542 = scmp.lt.s32.totalorder %s5541, 1
          %s5543 = scalar_select %p5542, %s5541, 1
          %s5544 = smul.addr %s5543, 4
          %s5545 = scalar_lea.vmem %s3, %s5544
        $region60: #{tpu_custom_call.1} parent=31 // pred_fallthru
          _
        // Predicated region
        $region61: #{tpu_custom_call.1} parent=31 // pred_check
          %p5546 = pneg %p147
        $region62: #{tpu_custom_call.1} parent=31 // pred_check_branch
          %5548 = sbr.rel (%p5546) target = $region64
        $region63: #{tpu_custom_call.1} parent=31 // pred_region
          %5549 = dma.done [#allocation5], 32
        $region64: #{tpu_custom_call.1} parent=31 // pred_fallthru
          _
      $region32: #{tpu_custom_call.1} parent=5 // pred_fallthru
        _
      %p5550 = scmp.le.s32.totalorder 2, %s16
      // Predicated region
      $region65: #{tpu_custom_call.1} parent=5 // pred_check
        %p5551 = pneg %p5550
      $region66: #{tpu_custom_call.1} parent=5 // pred_check_branch
        %5553 = sbr.rel (%p5551) target = $region68
      $region67: #{tpu_custom_call.1} parent=5 // pred_region
        %s5554 = ssub.s32 %s16, 2
      $region68: #{tpu_custom_call.1} parent=5 // pred_fallthru
        _
    $region6: #{tpu_custom_call.1} parent=1 // loop_footer
      %s20 = sadd.s32 1, %s16
    $region7: #{tpu_custom_call.1} parent=1 // loop_footer_branch
      %15 = sbr.rel target = $region3
    $region8: #{tpu_custom_call.1} parent=1 // loop_exit
      _
    %5555 = vsyncpa [#allocation4], 1
    %s5556 = scalar_lea.sflag [#allocation4], 1
    %5557 = vsyncpa %s5556, 1
    %5558 = vsyncpa [#allocation7], 1
    %5559 = vsyncpa [#allocation5], 1
    %s5560 = scalar_lea.sflag [#allocation5], 1
    %5561 = vsyncpa %s5560, 1

</llo_original>
